<compile_context>
chip_gen: v7x
topology: tpu7x:2x2x1
jax: 0.10.0
libtpu: 0.0.40
codegen_flags: <defaults>
</compile_context>

<pallas_src>
from functools import partial

import jax
import jax.numpy as jnp
from jax.experimental import pallas as pl
from jax.experimental.pallas import tpu as pltpu

BN_EPS = 1e-5


def _round_up(x, m):
    return ((x + m - 1) // m) * m


# --------------------------------------------------------------------------- #
# In-kernel helper: 3x3 "same" conv as 9 tap-accumulated MXU matmuls.
# --------------------------------------------------------------------------- #
def _tap_conv(w_ref, src_ref, *, wp, g, mblk):
    """w_ref: (9, Cout, Cin) VMEM ref (tap t = ky*3 + kx).
    src_ref: (Cin, mblk + 2*g) VMEM ref over a halo window of the flattened padded
    grid; halo / spatial-padding / tail lanes must already be zero.
    Returns (Cout, mblk) f32 for the block's output lanes."""
    acc = None
    for t in range(9):
        ky, kx = divmod(t, 3)
        st = g + (ky - 1) * wp + (kx - 1)          # static lane shift of this tap
        p = jnp.dot(w_ref[t], src_ref[:, st:st + mblk],
                    preferred_element_type=jnp.float32)
        acc = p if acc is None else acc + p
    return acc


# --------------------------------------------------------------------------- #
# Pass 1: conv1 (tap-accumulated) + global bn1 statistics.
# --------------------------------------------------------------------------- #
def _conv1_stats_kernel(xwin_ref, mask_ref, w1_ref,
                        c1_ref, sum1_ref, sq1_ref, *, wp, g, mblk):
    c1 = _tap_conv(w1_ref, xwin_ref, wp=wp, g=g, mblk=mblk)
    c1_ref[...] = c1                                 # residual tap (bias-free)

    @pl.when(pl.program_id(0) == 0)
    def _():
        sum1_ref[...] = jnp.zeros_like(sum1_ref)
        sq1_ref[...] = jnp.zeros_like(sq1_ref)

    cm = c1 * mask_ref[...]                          # single masked copy, reused twice
    sum1_ref[...] += jnp.sum(cm, axis=1, keepdims=True)
    sq1_ref[...] += jnp.sum(cm * cm, axis=1, keepdims=True)


# --------------------------------------------------------------------------- #
# Pass 2: bn1 + relu (pointwise, halo overlap recomputed), conv2, bn2 statistics.
# --------------------------------------------------------------------------- #
def _bn1_conv2_stats_kernel(c1win_ref, maskwin_ref, w2_ref, scale1_ref, shift1_ref,
                            c2_ref, sum2_ref, sq2_ref, a1_ref, *, wp, g, mblk):
    # a1 over the whole halo window; mask zeroes spatial padding, tail and halos.
    a1_ref[...] = (jnp.maximum(c1win_ref[...] * scale1_ref[...] + shift1_ref[...], 0.0)
                   * maskwin_ref[...])
    c2 = _tap_conv(w2_ref, a1_ref, wp=wp, g=g, mblk=mblk)
    c2_ref[...] = c2

    @pl.when(pl.program_id(0) == 0)
    def _():
        sum2_ref[...] = jnp.zeros_like(sum2_ref)
        sq2_ref[...] = jnp.zeros_like(sq2_ref)

    cm = c2 * maskwin_ref[:, g:g + mblk]             # center-block mask
    sum2_ref[...] += jnp.sum(cm, axis=1, keepdims=True)
    sq2_ref[...] += jnp.sum(cm * cm, axis=1, keepdims=True)


# --------------------------------------------------------------------------- #
# Pass 3: bn2 + residual + relu (pure elementwise, "parallel" grid axis).
# --------------------------------------------------------------------------- #
def _bn2_residual_kernel(c1_ref, c2_ref, scale2_ref, shift2_ref, out_ref):
    out_ref[...] = jnp.maximum(
        c2_ref[...] * scale2_ref[...] + shift2_ref[...] + c1_ref[...], 0.0)


# --------------------------------------------------------------------------- #
# Wrapper.
# --------------------------------------------------------------------------- #
def conv_block_nested_forward(x_nchw, params, *, lane_block=1024):
    """x_nchw: (B, Cin, H, W) float32; params: PyTorch-layout weights.

    lane_block: lane-block size (multiple of 128).  ~2048 for v5e/v6e (128 MiB VMEM),
    ~1024 for v7x (64 MiB VMEM); small values exercise the multi-block path."""
    x = x_nchw.astype(jnp.float32)
    B, Cin, H, W = x.shape
    Cmid = params["w1"].shape[0]
    Cout = params["w2"].shape[0]
    assert Cmid == Cout, "residual add in conv_block_nested requires mid_ch == out_ch"

    Hp, Wp = H + 2, W + 2
    P = Hp * Wp
    BP = B * P                                      # flat padded pixels, all images
    G = _round_up(Wp + 1, 128)                      # lane-aligned halo (>= tap reach)
    Mblk = _round_up(min(lane_block, _round_up(BP, 128)), 128)
    NB = pl.cdiv(BP, Mblk)                          # number of lane blocks
    M = NB * Mblk                                   # lane-aligned flattened grid
    Win = Mblk + 2 * G                              # halo-window width per block
    n_pix = B * H * W                               # BN population (real pixels)
    inv_n = 1.0 / n_pix

    # (B,Cin,H,W) -> (Cin,B,Hp,Wp) -> flat (Cin, B*P) -> zero tail to M lanes
    xp = jnp.pad(jnp.transpose(x, (1, 0, 2, 3)), ((0, 0), (0, 0), (1, 1), (1, 1)))
    xflat = jnp.pad(xp.reshape(Cin, BP), ((0, 0), (0, M - BP)))

    # interior mask over the flattened padded grid (1 at real pixels)
    q = jnp.arange(P, dtype=jnp.int32)
    r, s = q // Wp, q % Wp
    inter = ((r >= 1) & (r <= H) & (s >= 1) & (s <= W)).astype(jnp.float32)
    mask = jnp.pad(jnp.tile(inter, B), (0, M - BP)).reshape(1, M)

    # Overlapping halo windows (wrapper-side).  TODO(synk): replace with manual
    # double-buffered halo DMAs from one halo-padded HBM buffer at production sizes.
    widx = (jnp.arange(NB) * Mblk)[:, None] + jnp.arange(Win)[None, :]

    def windows(a2d):                               # (C, M) -> (NB, C, Win)
        apad = jnp.pad(a2d, ((0, 0), (G, G)))
        return jnp.transpose(apad[:, widx], (1, 0, 2))

    xwin = windows(xflat)
    maskwin = windows(mask)

    # conv weights (Cout, Cin, 3, 3) -> (tap, Cout, Cin)
    w1s = jnp.transpose(params["w1"], (2, 3, 0, 1)).reshape(9, Cmid, Cin).astype(jnp.float32)
    w2s = jnp.transpose(params["w2"], (2, 3, 0, 1)).reshape(9, Cout, Cmid).astype(jnp.float32)

    b1 = params["b1"].reshape(Cmid, 1).astype(jnp.float32)
    g1 = params["g1"].reshape(Cmid, 1).astype(jnp.float32)
    be1 = params["be1"].reshape(Cmid, 1).astype(jnp.float32)
    g2 = params["g2"].reshape(Cout, 1).astype(jnp.float32)
    be2 = params["be2"].reshape(Cout, 1).astype(jnp.float32)
    # params["b2"] intentionally unused: conv2 bias cancels exactly under training-mode BN.

    def full(shape):                                # whole-array, grid-constant block
        return pl.BlockSpec(shape, lambda j: (0,) * len(shape))

    # ---------------- pass 1: conv1 + bn1 stats (arbitrary: stats accumulate) ----
    c1, s1, q1 = pl.pallas_call(
        partial(_conv1_stats_kernel, wp=Wp, g=G, mblk=Mblk),
        grid=(NB,),
        in_specs=[
            pl.BlockSpec((None, Cin, Win), lambda j: (j, 0, 0)),   # x halo window
            pl.BlockSpec((1, Mblk), lambda j: (0, j)),             # center mask
            full((9, Cmid, Cin)),                                  # conv1 weights
        ],
        out_specs=(
            pl.BlockSpec((Cmid, Mblk), lambda j: (0, j)),          # c1 (residual)
            pl.BlockSpec((Cmid, 1), lambda j: (0, 0)),             # sum(c1*mask)
            pl.BlockSpec((Cmid, 1), lambda j: (0, 0)),             # sum((c1*mask)^2)
        ),
        out_shape=(
            jax.ShapeDtypeStruct((Cmid, M), jnp.float32),
            jax.ShapeDtypeStruct((Cmid, 1), jnp.float32),
            jax.ShapeDtypeStruct((Cmid, 1), jnp.float32),
        ),
        compiler_params=pltpu.CompilerParams(dimension_semantics=("arbitrary",)),
    )(xwin, mask, w1s)

    # tiny per-channel BN1 finalize (global stats across all blocks)
    mean1 = s1 * inv_n
    var1 = jnp.maximum(q1 * inv_n - mean1 * mean1, 0.0)
    scale1 = g1 * jax.lax.rsqrt(var1 + BN_EPS)
    shift1 = be1 - mean1 * scale1                   # b1 drops out of bn1 exactly

    c1win = windows(c1)                             # halo windows of the residual/conv2 input

    # ---------------- pass 2: bn1+relu -> conv2 + bn2 stats ----------------------
    c2, s2, q2 = pl.pallas_call(
        partial(_bn1_conv2_stats_kernel, wp=Wp, g=G, mblk=Mblk),
        grid=(NB,),
        in_specs=[
            pl.BlockSpec((None, Cmid, Win), lambda j: (j, 0, 0)),  # c1 halo window
            pl.BlockSpec((None, 1, Win), lambda j: (j, 0, 0)),     # mask halo window
            full((9, Cout, Cmid)),                                 # conv2 weights
            full((Cmid, 1)),                                       # bn1 scale
            full((Cmid, 1)),                                       # bn1 shift
        ],
        out_specs=(
            pl.BlockSpec((Cout, Mblk), lambda j: (0, j)),
            pl.BlockSpec((Cout, 1), lambda j: (0, 0)),
            pl.BlockSpec((Cout, 1), lambda j: (0, 0)),
        ),
        out_shape=(
            jax.ShapeDtypeStruct((Cout, M), jnp.float32),
            jax.ShapeDtypeStruct((Cout, 1), jnp.float32),
            jax.ShapeDtypeStruct((Cout, 1), jnp.float32),
        ),
        scratch_shapes=[pltpu.VMEM((Cmid, Win), jnp.float32)],     # a1 window buffer
        compiler_params=pltpu.CompilerParams(dimension_semantics=("arbitrary",)),
    )(c1win, maskwin, w2s, scale1, shift1)

    mean2 = s2 * inv_n
    var2 = jnp.maximum(q2 * inv_n - mean2 * mean2, 0.0)
    scale2 = g2 * jax.lax.rsqrt(var2 + BN_EPS)
    shift2 = be2 - mean2 * scale2 + b1              # residual carries conv1 bias

    # ---------------- pass 3: bn2 + residual + relu (parallel over blocks) -------
    out_flat = pl.pallas_call(
        _bn2_residual_kernel,
        grid=(NB,),
        in_specs=[
            pl.BlockSpec((Cout, Mblk), lambda j: (0, j)),          # c1 (residual)
            pl.BlockSpec((Cout, Mblk), lambda j: (0, j)),          # c2
            full((Cout, 1)),                                       # bn2 scale
            full((Cout, 1)),                                       # bn2 shift (+b1)
        ],
        out_specs=pl.BlockSpec((Cout, Mblk), lambda j: (0, j)),
        out_shape=jax.ShapeDtypeStruct((Cout, M), jnp.float32),
        compiler_params=pltpu.CompilerParams(dimension_semantics=("parallel",)),
    )(c1, c2, scale2, shift2)

    # (Cout, M) -> strip tail, un-flatten padded grid, drop padding, back to NCHW
    out = out_flat[:, :BP].reshape(Cout, B, Hp, Wp)[:, :, 1:H + 1, 1:W + 1]
    return jnp.transpose(out, (1, 0, 2, 3))


# ----------------------------- pure-JAX reference ----------------------------- #
def reference_forward(x, params):
    def conv(x, w, b):
        y = jax.lax.conv_general_dilated(
            x, w, window_strides=(1, 1), padding=((1, 1), (1, 1)),
            dimension_numbers=("NCHW", "OIHW", "NCHW"))
        return y + b[None, :, None, None]

    def bn(x, g, be):
        mean = jnp.mean(x, axis=(0, 2, 3), keepdims=True)
        var = jnp.mean((x - mean) ** 2, axis=(0, 2, 3), keepdims=True)
        return ((x - mean) * jax.lax.rsqrt(var + BN_EPS)
                * g[None, :, None, None] + be[None, :, None, None])

    y1 = conv(x, params["w1"], params["b1"])
    a1 = jnp.maximum(bn(y1, params["g1"], params["be1"]), 0.0)
    y2 = conv(a1, params["w2"], params["b2"])
    return jnp.maximum(bn(y2, params["g2"], params["be2"]) + y1, 0.0)


if __name__ == "__main__":
    # Residual add in the module requires mid_ch == out_ch (as used in NestedUNet).
    in_ch, mid_ch, out_ch = 4, 8, 8
    B, H, W = 2, 16, 16

    keys = jax.random.split(jax.random.PRNGKey(0), 9)
    x = jax.random.normal(keys[0], (B, in_ch, H, W), jnp.float32)
    params = {
        "w1": 0.1 * jax.random.normal(keys[1], (mid_ch, in_ch, 3, 3), jnp.float32),
        "b1": 0.1 * jax.random.normal(keys[2], (mid_ch,), jnp.float32),
        "g1": 1.0 + 0.1 * jax.random.normal(keys[3], (mid_ch,), jnp.float32),
        "be1": 0.1 * jax.random.normal(keys[4], (mid_ch,), jnp.float32),
        "w2": 0.1 * jax.random.normal(keys[5], (out_ch, mid_ch, 3, 3), jnp.float32),
        "b2": 0.1 * jax.random.normal(keys[6], (out_ch,), jnp.float32),
        "g2": 1.0 + 0.1 * jax.random.normal(keys[7], (out_ch,), jnp.float32),
        "be2": 0.1 * jax.random.normal(keys[8], (out_ch,), jnp.float32),
    }

    # lane_block=256 -> 3 lane blocks at this toy size, so the gridded / global-stats
    # path is actually exercised (use ~1024 on v7x, ~2048 on v5e/v6e in production).
    fwd = jax.jit(partial(conv_block_nested_forward, lane_block=256))
    out = fwd(x, params)
    jax.block_until_ready(out)

    ref = reference_forward(x, params)
    assert out.shape == (B, out_ch, H, W)
    assert jnp.allclose(out, ref, rtol=1e-4, atol=1e-4), (
        float(jnp.max(jnp.abs(out - ref))))

    print("KERNEL_OK")
</pallas_src>

<mosaic_0001>
module attributes {stable_mosaic.version = 11 : i64} {
  func.func private @main(%arg0: i32) attributes {dimension_semantics = [#tpu.dimension_semantics<core_parallel>], iteration_bounds = array<i64: 2>, tpu.core_type = #tpu.core_type<sc_scalar_subcore>, window_params = []} {
    return
  }
}

module attributes {stable_mosaic.version = 11 : i64} {
  func.func private @main(%arg0: i32) attributes {dimension_semantics = [#tpu.dimension_semantics<core_parallel>], iteration_bounds = array<i64: 2>, tpu.core_type = #tpu.core_type<sc_scalar_subcore>, window_params = []} {
    return
  }
}

module attributes {stable_mosaic.version = 11 : i64} {
  func.func @_conv1_stats_kernel(%arg0: i32, %arg1: memref<1x4x512xf32, #tpu.memory_space<vmem>>, %arg2: memref<1x256xf32, #tpu.memory_space<vmem>>, %arg3: memref<9x8x4xf32, #tpu.memory_space<vmem>>, %arg4: memref<8x256xf32, #tpu.memory_space<vmem>>, %arg5: memref<8x1xf32, #tpu.memory_space<vmem>>, %arg6: memref<8x1xf32, #tpu.memory_space<vmem>>) attributes {dimension_semantics = [#tpu.dimension_semantics<arbitrary>], iteration_bounds = array<i64: 3>, scalar_prefetch = 0 : i64, scratch_operands = 0 : i64, tpu.core_type = #tpu.core_type<tc>, window_params = [{transform_indices = @transform_0, window_bounds = array<i64: 1, 4, 512>}, {transform_indices = @transform_1, window_bounds = array<i64: 1, 256>}, {pipeline_mode = #tpu.pipeline_mode<synchronous>, transform_indices = @transform_2, window_bounds = array<i64: 9, 8, 4>}, {transform_indices = @transform_3, window_bounds = array<i64: 8, 256>}, {pipeline_mode = #tpu.pipeline_mode<synchronous>, transform_indices = @transform_4, window_bounds = array<i64: 8, 1>}, {pipeline_mode = #tpu.pipeline_mode<synchronous>, transform_indices = @transform_5, window_bounds = array<i64: 8, 1>}]} {
    %c0 = arith.constant 0 : index
    %c0_0 = arith.constant 0 : index
    %c0_1 = arith.constant 0 : index
    %0 = vector.load %arg3[%c0, %c0_0, %c0_1] : memref<9x8x4xf32, #tpu.memory_space<vmem>>, vector<1x8x4xf32>
    %1 = vector.shape_cast %0 : vector<1x8x4xf32> to vector<8x4xf32>
    %c0_2 = arith.constant 0 : index
    %c0_3 = arith.constant 0 : index
    %c109 = arith.constant 109 : index
    %2 = vector.load %arg1[%c0_2, %c0_3, %c109] : memref<1x4x512xf32, #tpu.memory_space<vmem>>, vector<1x4x256xf32>
    %3 = vector.shape_cast %2 : vector<1x4x256xf32> to vector<4x256xf32>
    %cst = arith.constant dense<0.000000e+00> : vector<8x256xf32>
    %4 = tpu.matmul %1, %3, %cst {dimension_numbers = #tpu.dot_dimension_numbers<[1], [0], [0], [1], [0, 0, 1, 1], [], []>} : vector<8x4xf32>, vector<4x256xf32>, vector<8x256xf32> -> vector<8x256xf32>
    %c1 = arith.constant 1 : index
    %c0_4 = arith.constant 0 : index
    %c0_5 = arith.constant 0 : index
    %5 = vector.load %arg3[%c1, %c0_4, %c0_5] : memref<9x8x4xf32, #tpu.memory_space<vmem>>, vector<1x8x4xf32>
    %6 = vector.shape_cast %5 : vector<1x8x4xf32> to vector<8x4xf32>
    %c0_6 = arith.constant 0 : index
    %c0_7 = arith.constant 0 : index
    %c110 = arith.constant 110 : index
    %7 = vector.load %arg1[%c0_6, %c0_7, %c110] : memref<1x4x512xf32, #tpu.memory_space<vmem>>, vector<1x4x256xf32>
    %8 = vector.shape_cast %7 : vector<1x4x256xf32> to vector<4x256xf32>
    %cst_8 = arith.constant dense<0.000000e+00> : vector<8x256xf32>
    %9 = tpu.matmul %6, %8, %cst_8 {dimension_numbers = #tpu.dot_dimension_numbers<[1], [0], [0], [1], [0, 0, 1, 1], [], []>} : vector<8x4xf32>, vector<4x256xf32>, vector<8x256xf32> -> vector<8x256xf32>
    %10 = arith.addf %4, %9 : vector<8x256xf32>
    %c2 = arith.constant 2 : index
    %c0_9 = arith.constant 0 : index
    %c0_10 = arith.constant 0 : index
    %11 = vector.load %arg3[%c2, %c0_9, %c0_10] : memref<9x8x4xf32, #tpu.memory_space<vmem>>, vector<1x8x4xf32>
    %12 = vector.shape_cast %11 : vector<1x8x4xf32> to vector<8x4xf32>
    %c0_11 = arith.constant 0 : index
    %c0_12 = arith.constant 0 : index
    %c111 = arith.constant 111 : index
    %13 = vector.load %arg1[%c0_11, %c0_12, %c111] : memref<1x4x512xf32, #tpu.memory_space<vmem>>, vector<1x4x256xf32>
    %14 = vector.shape_cast %13 : vector<1x4x256xf32> to vector<4x256xf32>
    %cst_13 = arith.constant dense<0.000000e+00> : vector<8x256xf32>
    %15 = tpu.matmul %12, %14, %cst_13 {dimension_numbers = #tpu.dot_dimension_numbers<[1], [0], [0], [1], [0, 0, 1, 1], [], []>} : vector<8x4xf32>, vector<4x256xf32>, vector<8x256xf32> -> vector<8x256xf32>
    %16 = arith.addf %10, %15 : vector<8x256xf32>
    %c3 = arith.constant 3 : index
    %c0_14 = arith.constant 0 : index
    %c0_15 = arith.constant 0 : index
    %17 = vector.load %arg3[%c3, %c0_14, %c0_15] : memref<9x8x4xf32, #tpu.memory_space<vmem>>, vector<1x8x4xf32>
    %18 = vector.shape_cast %17 : vector<1x8x4xf32> to vector<8x4xf32>
    %c0_16 = arith.constant 0 : index
    %c0_17 = arith.constant 0 : index
    %c127 = arith.constant 127 : index
    %19 = vector.load %arg1[%c0_16, %c0_17, %c127] : memref<1x4x512xf32, #tpu.memory_space<vmem>>, vector<1x4x256xf32>
    %20 = vector.shape_cast %19 : vector<1x4x256xf32> to vector<4x256xf32>
    %cst_18 = arith.constant dense<0.000000e+00> : vector<8x256xf32>
    %21 = tpu.matmul %18, %20, %cst_18 {dimension_numbers = #tpu.dot_dimension_numbers<[1], [0], [0], [1], [0, 0, 1, 1], [], []>} : vector<8x4xf32>, vector<4x256xf32>, vector<8x256xf32> -> vector<8x256xf32>
    %22 = arith.addf %16, %21 : vector<8x256xf32>
    %c4 = arith.constant 4 : index
    %c0_19 = arith.constant 0 : index
    %c0_20 = arith.constant 0 : index
    %23 = vector.load %arg3[%c4, %c0_19, %c0_20] : memref<9x8x4xf32, #tpu.memory_space<vmem>>, vector<1x8x4xf32>
    %24 = vector.shape_cast %23 : vector<1x8x4xf32> to vector<8x4xf32>
    %c0_21 = arith.constant 0 : index
    %c0_22 = arith.constant 0 : index
    %c128 = arith.constant 128 : index
    %25 = vector.load %arg1[%c0_21, %c0_22, %c128] : memref<1x4x512xf32, #tpu.memory_space<vmem>>, vector<1x4x256xf32>
    %26 = vector.shape_cast %25 : vector<1x4x256xf32> to vector<4x256xf32>
    %cst_23 = arith.constant dense<0.000000e+00> : vector<8x256xf32>
    %27 = tpu.matmul %24, %26, %cst_23 {dimension_numbers = #tpu.dot_dimension_numbers<[1], [0], [0], [1], [0, 0, 1, 1], [], []>} : vector<8x4xf32>, vector<4x256xf32>, vector<8x256xf32> -> vector<8x256xf32>
    %28 = arith.addf %22, %27 : vector<8x256xf32>
    %c5 = arith.constant 5 : index
    %c0_24 = arith.constant 0 : index
    %c0_25 = arith.constant 0 : index
    %29 = vector.load %arg3[%c5, %c0_24, %c0_25] : memref<9x8x4xf32, #tpu.memory_space<vmem>>, vector<1x8x4xf32>
    %30 = vector.shape_cast %29 : vector<1x8x4xf32> to vector<8x4xf32>
    %c0_26 = arith.constant 0 : index
    %c0_27 = arith.constant 0 : index
    %c129 = arith.constant 129 : index
    %31 = vector.load %arg1[%c0_26, %c0_27, %c129] : memref<1x4x512xf32, #tpu.memory_space<vmem>>, vector<1x4x256xf32>
    %32 = vector.shape_cast %31 : vector<1x4x256xf32> to vector<4x256xf32>
    %cst_28 = arith.constant dense<0.000000e+00> : vector<8x256xf32>
    %33 = tpu.matmul %30, %32, %cst_28 {dimension_numbers = #tpu.dot_dimension_numbers<[1], [0], [0], [1], [0, 0, 1, 1], [], []>} : vector<8x4xf32>, vector<4x256xf32>, vector<8x256xf32> -> vector<8x256xf32>
    %34 = arith.addf %28, %33 : vector<8x256xf32>
    %c6 = arith.constant 6 : index
    %c0_29 = arith.constant 0 : index
    %c0_30 = arith.constant 0 : index
    %35 = vector.load %arg3[%c6, %c0_29, %c0_30] : memref<9x8x4xf32, #tpu.memory_space<vmem>>, vector<1x8x4xf32>
    %36 = vector.shape_cast %35 : vector<1x8x4xf32> to vector<8x4xf32>
    %c0_31 = arith.constant 0 : index
    %c0_32 = arith.constant 0 : index
    %c145 = arith.constant 145 : index
    %37 = vector.load %arg1[%c0_31, %c0_32, %c145] : memref<1x4x512xf32, #tpu.memory_space<vmem>>, vector<1x4x256xf32>
    %38 = vector.shape_cast %37 : vector<1x4x256xf32> to vector<4x256xf32>
    %cst_33 = arith.constant dense<0.000000e+00> : vector<8x256xf32>
    %39 = tpu.matmul %36, %38, %cst_33 {dimension_numbers = #tpu.dot_dimension_numbers<[1], [0], [0], [1], [0, 0, 1, 1], [], []>} : vector<8x4xf32>, vector<4x256xf32>, vector<8x256xf32> -> vector<8x256xf32>
    %40 = arith.addf %34, %39 : vector<8x256xf32>
    %c7 = arith.constant 7 : index
    %c0_34 = arith.constant 0 : index
    %c0_35 = arith.constant 0 : index
    %41 = vector.load %arg3[%c7, %c0_34, %c0_35] : memref<9x8x4xf32, #tpu.memory_space<vmem>>, vector<1x8x4xf32>
    %42 = vector.shape_cast %41 : vector<1x8x4xf32> to vector<8x4xf32>
    %c0_36 = arith.constant 0 : index
    %c0_37 = arith.constant 0 : index
    %c146 = arith.constant 146 : index
    %43 = vector.load %arg1[%c0_36, %c0_37, %c146] : memref<1x4x512xf32, #tpu.memory_space<vmem>>, vector<1x4x256xf32>
    %44 = vector.shape_cast %43 : vector<1x4x256xf32> to vector<4x256xf32>
    %cst_38 = arith.constant dense<0.000000e+00> : vector<8x256xf32>
    %45 = tpu.matmul %42, %44, %cst_38 {dimension_numbers = #tpu.dot_dimension_numbers<[1], [0], [0], [1], [0, 0, 1, 1], [], []>} : vector<8x4xf32>, vector<4x256xf32>, vector<8x256xf32> -> vector<8x256xf32>
    %46 = arith.addf %40, %45 : vector<8x256xf32>
    %c8 = arith.constant 8 : index
    %c0_39 = arith.constant 0 : index
    %c0_40 = arith.constant 0 : index
    %47 = vector.load %arg3[%c8, %c0_39, %c0_40] : memref<9x8x4xf32, #tpu.memory_space<vmem>>, vector<1x8x4xf32>
    %48 = vector.shape_cast %47 : vector<1x8x4xf32> to vector<8x4xf32>
    %c0_41 = arith.constant 0 : index
    %c0_42 = arith.constant 0 : index
    %c147 = arith.constant 147 : index
    %49 = vector.load %arg1[%c0_41, %c0_42, %c147] : memref<1x4x512xf32, #tpu.memory_space<vmem>>, vector<1x4x256xf32>
    %50 = vector.shape_cast %49 : vector<1x4x256xf32> to vector<4x256xf32>
    %cst_43 = arith.constant dense<0.000000e+00> : vector<8x256xf32>
    %51 = tpu.matmul %48, %50, %cst_43 {dimension_numbers = #tpu.dot_dimension_numbers<[1], [0], [0], [1], [0, 0, 1, 1], [], []>} : vector<8x4xf32>, vector<4x256xf32>, vector<8x256xf32> -> vector<8x256xf32>
    %52 = arith.addf %46, %51 : vector<8x256xf32>
    %c0_44 = arith.constant 0 : index
    %c0_45 = arith.constant 0 : index
    %53 = vector.load %arg4[%c0_44, %c0_45] : memref<8x256xf32, #tpu.memory_space<vmem>>, vector<8x256xf32>
    tpu.vector_store %arg4[%c0_44, %c0_45], %52 {strides = array<i32>} : memref<8x256xf32, #tpu.memory_space<vmem>>, vector<8x256xf32>,
    %c0_i32 = arith.constant 0 : i32
    %54 = arith.cmpi eq, %arg0, %c0_i32 : i32
    %55 = arith.extui %54 : i1 to i32
    %c0_i32_46 = arith.constant 0 : i32
    %56 = arith.cmpi ne, %55, %c0_i32_46 : i32
    scf.if %56 {
      %cst_59 = arith.constant 0.000000e+00 : f32
      %71 = vector.broadcast %cst_59 : f32 to vector<8x1xf32>
      %c0_60 = arith.constant 0 : index
      %c0_61 = arith.constant 0 : index
      %72 = vector.load %arg5[%c0_60, %c0_61] : memref<8x1xf32, #tpu.memory_space<vmem>>, vector<8x1xf32>
      tpu.vector_store %arg5[%c0_60, %c0_61], %71 {strides = array<i32>} : memref<8x1xf32, #tpu.memory_space<vmem>>, vector<8x1xf32>,
      %cst_62 = arith.constant 0.000000e+00 : f32
      %73 = vector.broadcast %cst_62 : f32 to vector<8x1xf32>
      %c0_63 = arith.constant 0 : index
      %c0_64 = arith.constant 0 : index
      %74 = vector.load %arg6[%c0_63, %c0_64] : memref<8x1xf32, #tpu.memory_space<vmem>>, vector<8x1xf32>
      tpu.vector_store %arg6[%c0_63, %c0_64], %73 {strides = array<i32>} : memref<8x1xf32, #tpu.memory_space<vmem>>, vector<8x1xf32>,
    } else {
    }
    %c0_47 = arith.constant 0 : index
    %c0_48 = arith.constant 0 : index
    %57 = vector.load %arg2[%c0_47, %c0_48] : memref<1x256xf32, #tpu.memory_space<vmem>>, vector<1x256xf32>
    %58 = vector.broadcast %57 : vector<1x256xf32> to vector<8x256xf32>
    %59 = arith.mulf %52, %58 : vector<8x256xf32>
    %c0_49 = arith.constant 0 : index
    %c0_50 = arith.constant 0 : index
    %60 = vector.load %arg5[%c0_49, %c0_50] : memref<8x1xf32, #tpu.memory_space<vmem>>, vector<8x1xf32>
    %cst_51 = arith.constant dense<0.000000e+00> : vector<8xf32>
    %61 = vector.multi_reduction <add>, %59, %cst_51 [1] : vector<8x256xf32> to vector<8xf32>
    %62 = vector.shape_cast %61 : vector<8xf32> to vector<8x1xf32>
    %63 = arith.addf %60, %62 : vector<8x1xf32>
    %c0_52 = arith.constant 0 : index
    %c0_53 = arith.constant 0 : index
    %64 = vector.load %arg5[%c0_52, %c0_53] : memref<8x1xf32, #tpu.memory_space<vmem>>, vector<8x1xf32>
    tpu.vector_store %arg5[%c0_52, %c0_53], %63 {strides = array<i32>} : memref<8x1xf32, #tpu.memory_space<vmem>>, vector<8x1xf32>,
    %c0_54 = arith.constant 0 : index
    %c0_55 = arith.constant 0 : index
    %65 = vector.load %arg6[%c0_54, %c0_55] : memref<8x1xf32, #tpu.memory_space<vmem>>, vector<8x1xf32>
    %66 = arith.mulf %59, %59 : vector<8x256xf32>
    %cst_56 = arith.constant dense<0.000000e+00> : vector<8xf32>
    %67 = vector.multi_reduction <add>, %66, %cst_56 [1] : vector<8x256xf32> to vector<8xf32>
    %68 = vector.shape_cast %67 : vector<8xf32> to vector<8x1xf32>
    %69 = arith.addf %65, %68 : vector<8x1xf32>
    %c0_57 = arith.constant 0 : index
    %c0_58 = arith.constant 0 : index
    %70 = vector.load %arg6[%c0_57, %c0_58] : memref<8x1xf32, #tpu.memory_space<vmem>>, vector<8x1xf32>
    tpu.vector_store %arg6[%c0_57, %c0_58], %69 {strides = array<i32>} : memref<8x1xf32, #tpu.memory_space<vmem>>, vector<8x1xf32>,
    return
  }
  func.func @transform_0(%arg0: i32) -> (i32, i32, i32) {
    %c0_i32 = arith.constant 0 : i32
    %c0_i32_0 = arith.constant 0 : i32
    %c0_i32_1 = arith.constant 0 : i32
    return %arg0, %c0_i32, %c0_i32_0 : i32, i32, i32
  }
  func.func @transform_1(%arg0: i32) -> (i32, i32) {
    %c0_i32 = arith.constant 0 : i32
    %c0_i32_0 = arith.constant 0 : i32
    return %c0_i32, %arg0 : i32, i32
  }
  func.func @transform_2(%arg0: i32) -> (i32, i32, i32) {
    %c0_i32 = arith.constant 0 : i32
    %c0_i32_0 = arith.constant 0 : i32
    %c0_i32_1 = arith.constant 0 : i32
    %c0_i32_2 = arith.constant 0 : i32
    return %c0_i32, %c0_i32_0, %c0_i32_1 : i32, i32, i32
  }
  func.func @transform_3(%arg0: i32) -> (i32, i32) {
    %c0_i32 = arith.constant 0 : i32
    %c0_i32_0 = arith.constant 0 : i32
    return %c0_i32, %arg0 : i32, i32
  }
  func.func @transform_4(%arg0: i32) -> (i32, i32) {
    %c0_i32 = arith.constant 0 : i32
    %c0_i32_0 = arith.constant 0 : i32
    %c0_i32_1 = arith.constant 0 : i32
    return %c0_i32, %c0_i32_0 : i32, i32
  }
  func.func @transform_5(%arg0: i32) -> (i32, i32) {
    %c0_i32 = arith.constant 0 : i32
    %c0_i32_0 = arith.constant 0 : i32
    %c0_i32_1 = arith.constant 0 : i32
    return %c0_i32, %c0_i32_0 : i32, i32
  }
}

module attributes {stable_mosaic.version = 11 : i64} {
  func.func @_bn1_conv2_stats_kernel(%arg0: i32, %arg1: memref<1x8x512xf32, #tpu.memory_space<vmem>>, %arg2: memref<1x1x512xf32, #tpu.memory_space<vmem>>, %arg3: memref<9x8x8xf32, #tpu.memory_space<vmem>>, %arg4: memref<8x1xf32, #tpu.memory_space<vmem>>, %arg5: memref<8x1xf32, #tpu.memory_space<vmem>>, %arg6: memref<8x256xf32, #tpu.memory_space<vmem>>, %arg7: memref<8x1xf32, #tpu.memory_space<vmem>>, %arg8: memref<8x1xf32, #tpu.memory_space<vmem>>, %arg9: memref<8x512xf32, #tpu.memory_space<vmem>>) attributes {dimension_semantics = [#tpu.dimension_semantics<arbitrary>], iteration_bounds = array<i64: 3>, scalar_prefetch = 0 : i64, scratch_operands = 1 : i64, tpu.core_type = #tpu.core_type<tc>, window_params = [{transform_indices = @transform_0, window_bounds = array<i64: 1, 8, 512>}, {transform_indices = @transform_1, window_bounds = array<i64: 1, 1, 512>}, {pipeline_mode = #tpu.pipeline_mode<synchronous>, transform_indices = @transform_2, window_bounds = array<i64: 9, 8, 8>}, {pipeline_mode = #tpu.pipeline_mode<synchronous>, transform_indices = @transform_3, window_bounds = array<i64: 8, 1>}, {pipeline_mode = #tpu.pipeline_mode<synchronous>, transform_indices = @transform_4, window_bounds = array<i64: 8, 1>}, {transform_indices = @transform_5, window_bounds = array<i64: 8, 256>}, {pipeline_mode = #tpu.pipeline_mode<synchronous>, transform_indices = @transform_6, window_bounds = array<i64: 8, 1>}, {pipeline_mode = #tpu.pipeline_mode<synchronous>, transform_indices = @transform_7, window_bounds = array<i64: 8, 1>}]} {
    %c0 = arith.constant 0 : index
    %c0_0 = arith.constant 0 : index
    %c0_1 = arith.constant 0 : index
    %0 = vector.load %arg1[%c0, %c0_0, %c0_1] : memref<1x8x512xf32, #tpu.memory_space<vmem>>, vector<1x8x512xf32>
    %1 = vector.shape_cast %0 : vector<1x8x512xf32> to vector<8x512xf32>
    %c0_2 = arith.constant 0 : index
    %c0_3 = arith.constant 0 : index
    %2 = vector.load %arg4[%c0_2, %c0_3] : memref<8x1xf32, #tpu.memory_space<vmem>>, vector<8x1xf32>
    %3 = vector.broadcast %2 : vector<8x1xf32> to vector<8x512xf32>
    %4 = arith.mulf %1, %3 : vector<8x512xf32>
    %c0_4 = arith.constant 0 : index
    %c0_5 = arith.constant 0 : index
    %5 = vector.load %arg5[%c0_4, %c0_5] : memref<8x1xf32, #tpu.memory_space<vmem>>, vector<8x1xf32>
    %6 = vector.broadcast %5 : vector<8x1xf32> to vector<8x512xf32>
    %7 = arith.addf %4, %6 : vector<8x512xf32>
    %cst = arith.constant 0.000000e+00 : f32
    %8 = vector.broadcast %cst : f32 to vector<8x512xf32>
    %9 = arith.maximumf %7, %8 : vector<8x512xf32>
    %c0_6 = arith.constant 0 : index
    %c0_7 = arith.constant 0 : index
    %c0_8 = arith.constant 0 : index
    %10 = vector.load %arg2[%c0_6, %c0_7, %c0_8] : memref<1x1x512xf32, #tpu.memory_space<vmem>>, vector<1x1x512xf32>
    %11 = vector.shape_cast %10 : vector<1x1x512xf32> to vector<1x512xf32>
    %12 = vector.broadcast %11 : vector<1x512xf32> to vector<8x512xf32>
    %13 = arith.mulf %9, %12 : vector<8x512xf32>
    %c0_9 = arith.constant 0 : index
    %c0_10 = arith.constant 0 : index
    %14 = vector.load %arg9[%c0_9, %c0_10] : memref<8x512xf32, #tpu.memory_space<vmem>>, vector<8x512xf32>
    tpu.vector_store %arg9[%c0_9, %c0_10], %13 {strides = array<i32>} : memref<8x512xf32, #tpu.memory_space<vmem>>, vector<8x512xf32>,
    %c0_11 = arith.constant 0 : index
    %c0_12 = arith.constant 0 : index
    %c0_13 = arith.constant 0 : index
    %15 = vector.load %arg3[%c0_11, %c0_12, %c0_13] : memref<9x8x8xf32, #tpu.memory_space<vmem>>, vector<1x8x8xf32>
    %16 = vector.shape_cast %15 : vector<1x8x8xf32> to vector<8x8xf32>
    %c0_14 = arith.constant 0 : index
    %c109 = arith.constant 109 : index
    %17 = vector.load %arg9[%c0_14, %c109] : memref<8x512xf32, #tpu.memory_space<vmem>>, vector<8x256xf32>
    %cst_15 = arith.constant dense<0.000000e+00> : vector<8x256xf32>
    %18 = tpu.matmul %16, %17, %cst_15 {dimension_numbers = #tpu.dot_dimension_numbers<[1], [0], [0], [1], [0, 0, 1, 1], [], []>} : vector<8x8xf32>, vector<8x256xf32>, vector<8x256xf32> -> vector<8x256xf32>
    %c1 = arith.constant 1 : index
    %c0_16 = arith.constant 0 : index
    %c0_17 = arith.constant 0 : index
    %19 = vector.load %arg3[%c1, %c0_16, %c0_17] : memref<9x8x8xf32, #tpu.memory_space<vmem>>, vector<1x8x8xf32>
    %20 = vector.shape_cast %19 : vector<1x8x8xf32> to vector<8x8xf32>
    %c0_18 = arith.constant 0 : index
    %c110 = arith.constant 110 : index
    %21 = vector.load %arg9[%c0_18, %c110] : memref<8x512xf32, #tpu.memory_space<vmem>>, vector<8x256xf32>
    %cst_19 = arith.constant dense<0.000000e+00> : vector<8x256xf32>
    %22 = tpu.matmul %20, %21, %cst_19 {dimension_numbers = #tpu.dot_dimension_numbers<[1], [0], [0], [1], [0, 0, 1, 1], [], []>} : vector<8x8xf32>, vector<8x256xf32>, vector<8x256xf32> -> vector<8x256xf32>
    %23 = arith.addf %18, %22 : vector<8x256xf32>
    %c2 = arith.constant 2 : index
    %c0_20 = arith.constant 0 : index
    %c0_21 = arith.constant 0 : index
    %24 = vector.load %arg3[%c2, %c0_20, %c0_21] : memref<9x8x8xf32, #tpu.memory_space<vmem>>, vector<1x8x8xf32>
    %25 = vector.shape_cast %24 : vector<1x8x8xf32> to vector<8x8xf32>
    %c0_22 = arith.constant 0 : index
    %c111 = arith.constant 111 : index
    %26 = vector.load %arg9[%c0_22, %c111] : memref<8x512xf32, #tpu.memory_space<vmem>>, vector<8x256xf32>
    %cst_23 = arith.constant dense<0.000000e+00> : vector<8x256xf32>
    %27 = tpu.matmul %25, %26, %cst_23 {dimension_numbers = #tpu.dot_dimension_numbers<[1], [0], [0], [1], [0, 0, 1, 1], [], []>} : vector<8x8xf32>, vector<8x256xf32>, vector<8x256xf32> -> vector<8x256xf32>
    %28 = arith.addf %23, %27 : vector<8x256xf32>
    %c3 = arith.constant 3 : index
    %c0_24 = arith.constant 0 : index
    %c0_25 = arith.constant 0 : index
    %29 = vector.load %arg3[%c3, %c0_24, %c0_25] : memref<9x8x8xf32, #tpu.memory_space<vmem>>, vector<1x8x8xf32>
    %30 = vector.shape_cast %29 : vector<1x8x8xf32> to vector<8x8xf32>
    %c0_26 = arith.constant 0 : index
    %c127 = arith.constant 127 : index
    %31 = vector.load %arg9[%c0_26, %c127] : memref<8x512xf32, #tpu.memory_space<vmem>>, vector<8x256xf32>
    %cst_27 = arith.constant dense<0.000000e+00> : vector<8x256xf32>
    %32 = tpu.matmul %30, %31, %cst_27 {dimension_numbers = #tpu.dot_dimension_numbers<[1], [0], [0], [1], [0, 0, 1, 1], [], []>} : vector<8x8xf32>, vector<8x256xf32>, vector<8x256xf32> -> vector<8x256xf32>
    %33 = arith.addf %28, %32 : vector<8x256xf32>
    %c4 = arith.constant 4 : index
    %c0_28 = arith.constant 0 : index
    %c0_29 = arith.constant 0 : index
    %34 = vector.load %arg3[%c4, %c0_28, %c0_29] : memref<9x8x8xf32, #tpu.memory_space<vmem>>, vector<1x8x8xf32>
    %35 = vector.shape_cast %34 : vector<1x8x8xf32> to vector<8x8xf32>
    %c0_30 = arith.constant 0 : index
    %c128 = arith.constant 128 : index
    %36 = vector.load %arg9[%c0_30, %c128] : memref<8x512xf32, #tpu.memory_space<vmem>>, vector<8x256xf32>
    %cst_31 = arith.constant dense<0.000000e+00> : vector<8x256xf32>
    %37 = tpu.matmul %35, %36, %cst_31 {dimension_numbers = #tpu.dot_dimension_numbers<[1], [0], [0], [1], [0, 0, 1, 1], [], []>} : vector<8x8xf32>, vector<8x256xf32>, vector<8x256xf32> -> vector<8x256xf32>
    %38 = arith.addf %33, %37 : vector<8x256xf32>
    %c5 = arith.constant 5 : index
    %c0_32 = arith.constant 0 : index
    %c0_33 = arith.constant 0 : index
    %39 = vector.load %arg3[%c5, %c0_32, %c0_33] : memref<9x8x8xf32, #tpu.memory_space<vmem>>, vector<1x8x8xf32>
    %40 = vector.shape_cast %39 : vector<1x8x8xf32> to vector<8x8xf32>
    %c0_34 = arith.constant 0 : index
    %c129 = arith.constant 129 : index
    %41 = vector.load %arg9[%c0_34, %c129] : memref<8x512xf32, #tpu.memory_space<vmem>>, vector<8x256xf32>
    %cst_35 = arith.constant dense<0.000000e+00> : vector<8x256xf32>
    %42 = tpu.matmul %40, %41, %cst_35 {dimension_numbers = #tpu.dot_dimension_numbers<[1], [0], [0], [1], [0, 0, 1, 1], [], []>} : vector<8x8xf32>, vector<8x256xf32>, vector<8x256xf32> -> vector<8x256xf32>
    %43 = arith.addf %38, %42 : vector<8x256xf32>
    %c6 = arith.constant 6 : index
    %c0_36 = arith.constant 0 : index
    %c0_37 = arith.constant 0 : index
    %44 = vector.load %arg3[%c6, %c0_36, %c0_37] : memref<9x8x8xf32, #tpu.memory_space<vmem>>, vector<1x8x8xf32>
    %45 = vector.shape_cast %44 : vector<1x8x8xf32> to vector<8x8xf32>
    %c0_38 = arith.constant 0 : index
    %c145 = arith.constant 145 : index
    %46 = vector.load %arg9[%c0_38, %c145] : memref<8x512xf32, #tpu.memory_space<vmem>>, vector<8x256xf32>
    %cst_39 = arith.constant dense<0.000000e+00> : vector<8x256xf32>
    %47 = tpu.matmul %45, %46, %cst_39 {dimension_numbers = #tpu.dot_dimension_numbers<[1], [0], [0], [1], [0, 0, 1, 1], [], []>} : vector<8x8xf32>, vector<8x256xf32>, vector<8x256xf32> -> vector<8x256xf32>
    %48 = arith.addf %43, %47 : vector<8x256xf32>
    %c7 = arith.constant 7 : index
    %c0_40 = arith.constant 0 : index
    %c0_41 = arith.constant 0 : index
    %49 = vector.load %arg3[%c7, %c0_40, %c0_41] : memref<9x8x8xf32, #tpu.memory_space<vmem>>, vector<1x8x8xf32>
    %50 = vector.shape_cast %49 : vector<1x8x8xf32> to vector<8x8xf32>
    %c0_42 = arith.constant 0 : index
    %c146 = arith.constant 146 : index
    %51 = vector.load %arg9[%c0_42, %c146] : memref<8x512xf32, #tpu.memory_space<vmem>>, vector<8x256xf32>
    %cst_43 = arith.constant dense<0.000000e+00> : vector<8x256xf32>
    %52 = tpu.matmul %50, %51, %cst_43 {dimension_numbers = #tpu.dot_dimension_numbers<[1], [0], [0], [1], [0, 0, 1, 1], [], []>} : vector<8x8xf32>, vector<8x256xf32>, vector<8x256xf32> -> vector<8x256xf32>
    %53 = arith.addf %48, %52 : vector<8x256xf32>
    %c8 = arith.constant 8 : index
    %c0_44 = arith.constant 0 : index
    %c0_45 = arith.constant 0 : index
    %54 = vector.load %arg3[%c8, %c0_44, %c0_45] : memref<9x8x8xf32, #tpu.memory_space<vmem>>, vector<1x8x8xf32>
    %55 = vector.shape_cast %54 : vector<1x8x8xf32> to vector<8x8xf32>
    %c0_46 = arith.constant 0 : index
    %c147 = arith.constant 147 : index
    %56 = vector.load %arg9[%c0_46, %c147] : memref<8x512xf32, #tpu.memory_space<vmem>>, vector<8x256xf32>
    %cst_47 = arith.constant dense<0.000000e+00> : vector<8x256xf32>
    %57 = tpu.matmul %55, %56, %cst_47 {dimension_numbers = #tpu.dot_dimension_numbers<[1], [0], [0], [1], [0, 0, 1, 1], [], []>} : vector<8x8xf32>, vector<8x256xf32>, vector<8x256xf32> -> vector<8x256xf32>
    %58 = arith.addf %53, %57 : vector<8x256xf32>
    %c0_48 = arith.constant 0 : index
    %c0_49 = arith.constant 0 : index
    %59 = vector.load %arg6[%c0_48, %c0_49] : memref<8x256xf32, #tpu.memory_space<vmem>>, vector<8x256xf32>
    tpu.vector_store %arg6[%c0_48, %c0_49], %58 {strides = array<i32>} : memref<8x256xf32, #tpu.memory_space<vmem>>, vector<8x256xf32>,
    %c0_i32 = arith.constant 0 : i32
    %60 = arith.cmpi eq, %arg0, %c0_i32 : i32
    %61 = arith.extui %60 : i1 to i32
    %c0_i32_50 = arith.constant 0 : i32
    %62 = arith.cmpi ne, %61, %c0_i32_50 : i32
    scf.if %62 {
      %cst_64 = arith.constant 0.000000e+00 : f32
      %78 = vector.broadcast %cst_64 : f32 to vector<8x1xf32>
      %c0_65 = arith.constant 0 : index
      %c0_66 = arith.constant 0 : index
      %79 = vector.load %arg7[%c0_65, %c0_66] : memref<8x1xf32, #tpu.memory_space<vmem>>, vector<8x1xf32>
      tpu.vector_store %arg7[%c0_65, %c0_66], %78 {strides = array<i32>} : memref<8x1xf32, #tpu.memory_space<vmem>>, vector<8x1xf32>,
      %cst_67 = arith.constant 0.000000e+00 : f32
      %80 = vector.broadcast %cst_67 : f32 to vector<8x1xf32>
      %c0_68 = arith.constant 0 : index
      %c0_69 = arith.constant 0 : index
      %81 = vector.load %arg8[%c0_68, %c0_69] : memref<8x1xf32, #tpu.memory_space<vmem>>, vector<8x1xf32>
      tpu.vector_store %arg8[%c0_68, %c0_69], %80 {strides = array<i32>} : memref<8x1xf32, #tpu.memory_space<vmem>>, vector<8x1xf32>,
    } else {
    }
    %c0_51 = arith.constant 0 : index
    %c0_52 = arith.constant 0 : index
    %c128_53 = arith.constant 128 : index
    %63 = vector.load %arg2[%c0_51, %c0_52, %c128_53] : memref<1x1x512xf32, #tpu.memory_space<vmem>>, vector<1x1x256xf32>
    %64 = vector.shape_cast %63 : vector<1x1x256xf32> to vector<1x256xf32>
    %65 = vector.broadcast %64 : vector<1x256xf32> to vector<8x256xf32>
    %66 = arith.mulf %58, %65 : vector<8x256xf32>
    %c0_54 = arith.constant 0 : index
    %c0_55 = arith.constant 0 : index
    %67 = vector.load %arg7[%c0_54, %c0_55] : memref<8x1xf32, #tpu.memory_space<vmem>>, vector<8x1xf32>
    %cst_56 = arith.constant dense<0.000000e+00> : vector<8xf32>
    %68 = vector.multi_reduction <add>, %66, %cst_56 [1] : vector<8x256xf32> to vector<8xf32>
    %69 = vector.shape_cast %68 : vector<8xf32> to vector<8x1xf32>
    %70 = arith.addf %67, %69 : vector<8x1xf32>
    %c0_57 = arith.constant 0 : index
    %c0_58 = arith.constant 0 : index
    %71 = vector.load %arg7[%c0_57, %c0_58] : memref<8x1xf32, #tpu.memory_space<vmem>>, vector<8x1xf32>
    tpu.vector_store %arg7[%c0_57, %c0_58], %70 {strides = array<i32>} : memref<8x1xf32, #tpu.memory_space<vmem>>, vector<8x1xf32>,
    %c0_59 = arith.constant 0 : index
    %c0_60 = arith.constant 0 : index
    %72 = vector.load %arg8[%c0_59, %c0_60] : memref<8x1xf32, #tpu.memory_space<vmem>>, vector<8x1xf32>
    %73 = arith.mulf %66, %66 : vector<8x256xf32>
    %cst_61 = arith.constant dense<0.000000e+00> : vector<8xf32>
    %74 = vector.multi_reduction <add>, %73, %cst_61 [1] : vector<8x256xf32> to vector<8xf32>
    %75 = vector.shape_cast %74 : vector<8xf32> to vector<8x1xf32>
    %76 = arith.addf %72, %75 : vector<8x1xf32>
    %c0_62 = arith.constant 0 : index
    %c0_63 = arith.constant 0 : index
    %77 = vector.load %arg8[%c0_62, %c0_63] : memref<8x1xf32, #tpu.memory_space<vmem>>, vector<8x1xf32>
    tpu.vector_store %arg8[%c0_62, %c0_63], %76 {strides = array<i32>} : memref<8x1xf32, #tpu.memory_space<vmem>>, vector<8x1xf32>,
    return
  }
  func.func @transform_0(%arg0: i32) -> (i32, i32, i32) {
    %c0_i32 = arith.constant 0 : i32
    %c0_i32_0 = arith.constant 0 : i32
    %c0_i32_1 = arith.constant 0 : i32
    return %arg0, %c0_i32, %c0_i32_0 : i32, i32, i32
  }
  func.func @transform_1(%arg0: i32) -> (i32, i32, i32) {
    %c0_i32 = arith.constant 0 : i32
    %c0_i32_0 = arith.constant 0 : i32
    %c0_i32_1 = arith.constant 0 : i32
    return %arg0, %c0_i32, %c0_i32_0 : i32, i32, i32
  }
  func.func @transform_2(%arg0: i32) -> (i32, i32, i32) {
    %c0_i32 = arith.constant 0 : i32
    %c0_i32_0 = arith.constant 0 : i32
    %c0_i32_1 = arith.constant 0 : i32
    %c0_i32_2 = arith.constant 0 : i32
    return %c0_i32, %c0_i32_0, %c0_i32_1 : i32, i32, i32
  }
  func.func @transform_3(%arg0: i32) -> (i32, i32) {
    %c0_i32 = arith.constant 0 : i32
    %c0_i32_0 = arith.constant 0 : i32
    %c0_i32_1 = arith.constant 0 : i32
    return %c0_i32, %c0_i32_0 : i32, i32
  }
  func.func @transform_4(%arg0: i32) -> (i32, i32) {
    %c0_i32 = arith.constant 0 : i32
    %c0_i32_0 = arith.constant 0 : i32
    %c0_i32_1 = arith.constant 0 : i32
    return %c0_i32, %c0_i32_0 : i32, i32
  }
  func.func @transform_5(%arg0: i32) -> (i32, i32) {
    %c0_i32 = arith.constant 0 : i32
    %c0_i32_0 = arith.constant 0 : i32
    return %c0_i32, %arg0 : i32, i32
  }
  func.func @transform_6(%arg0: i32) -> (i32, i32) {
    %c0_i32 = arith.constant 0 : i32
    %c0_i32_0 = arith.constant 0 : i32
    %c0_i32_1 = arith.constant 0 : i32
    return %c0_i32, %c0_i32_0 : i32, i32
  }
  func.func @transform_7(%arg0: i32) -> (i32, i32) {
    %c0_i32 = arith.constant 0 : i32
    %c0_i32_0 = arith.constant 0 : i32
    %c0_i32_1 = arith.constant 0 : i32
    return %c0_i32, %c0_i32_0 : i32, i32
  }
}

module attributes {stable_mosaic.version = 11 : i64} {
  func.func @_bn2_residual_kernel(%arg0: i32, %arg1: memref<8x256xf32, #tpu.memory_space<vmem>>, %arg2: memref<8x256xf32, #tpu.memory_space<vmem>>, %arg3: memref<8x1xf32, #tpu.memory_space<vmem>>, %arg4: memref<8x1xf32, #tpu.memory_space<vmem>>, %arg5: memref<8x256xf32, #tpu.memory_space<vmem>>) attributes {dimension_semantics = [#tpu.dimension_semantics<parallel>], iteration_bounds = array<i64: 3>, scalar_prefetch = 0 : i64, scratch_operands = 0 : i64, tpu.core_type = #tpu.core_type<tc>, window_params = [{transform_indices = @transform_0, window_bounds = array<i64: 8, 256>}, {transform_indices = @transform_1, window_bounds = array<i64: 8, 256>}, {pipeline_mode = #tpu.pipeline_mode<synchronous>, transform_indices = @transform_2, window_bounds = array<i64: 8, 1>}, {pipeline_mode = #tpu.pipeline_mode<synchronous>, transform_indices = @transform_3, window_bounds = array<i64: 8, 1>}, {transform_indices = @transform_4, window_bounds = array<i64: 8, 256>}]} {
    %c0 = arith.constant 0 : index
    %c0_0 = arith.constant 0 : index
    %0 = vector.load %arg2[%c0, %c0_0] : memref<8x256xf32, #tpu.memory_space<vmem>>, vector<8x256xf32>
    %c0_1 = arith.constant 0 : index
    %c0_2 = arith.constant 0 : index
    %1 = vector.load %arg3[%c0_1, %c0_2] : memref<8x1xf32, #tpu.memory_space<vmem>>, vector<8x1xf32>
    %2 = vector.broadcast %1 : vector<8x1xf32> to vector<8x256xf32>
    %3 = arith.mulf %0, %2 : vector<8x256xf32>
    %c0_3 = arith.constant 0 : index
    %c0_4 = arith.constant 0 : index
    %4 = vector.load %arg4[%c0_3, %c0_4] : memref<8x1xf32, #tpu.memory_space<vmem>>, vector<8x1xf32>
    %5 = vector.broadcast %4 : vector<8x1xf32> to vector<8x256xf32>
    %6 = arith.addf %3, %5 : vector<8x256xf32>
    %c0_5 = arith.constant 0 : index
    %c0_6 = arith.constant 0 : index
    %7 = vector.load %arg1[%c0_5, %c0_6] : memref<8x256xf32, #tpu.memory_space<vmem>>, vector<8x256xf32>
    %8 = arith.addf %6, %7 : vector<8x256xf32>
    %cst = arith.constant 0.000000e+00 : f32
    %9 = vector.broadcast %cst : f32 to vector<8x256xf32>
    %10 = arith.maximumf %8, %9 : vector<8x256xf32>
    %c0_7 = arith.constant 0 : index
    %c0_8 = arith.constant 0 : index
    %11 = vector.load %arg5[%c0_7, %c0_8] : memref<8x256xf32, #tpu.memory_space<vmem>>, vector<8x256xf32>
    tpu.vector_store %arg5[%c0_7, %c0_8], %10 {strides = array<i32>} : memref<8x256xf32, #tpu.memory_space<vmem>>, vector<8x256xf32>,
    return
  }
  func.func @transform_0(%arg0: i32) -> (i32, i32) {
    %c0_i32 = arith.constant 0 : i32
    %c0_i32_0 = arith.constant 0 : i32
    return %c0_i32, %arg0 : i32, i32
  }
  func.func @transform_1(%arg0: i32) -> (i32, i32) {
    %c0_i32 = arith.constant 0 : i32
    %c0_i32_0 = arith.constant 0 : i32
    return %c0_i32, %arg0 : i32, i32
  }
  func.func @transform_2(%arg0: i32) -> (i32, i32) {
    %c0_i32 = arith.constant 0 : i32
    %c0_i32_0 = arith.constant 0 : i32
    %c0_i32_1 = arith.constant 0 : i32
    return %c0_i32, %c0_i32_0 : i32, i32
  }
  func.func @transform_3(%arg0: i32) -> (i32, i32) {
    %c0_i32 = arith.constant 0 : i32
    %c0_i32_0 = arith.constant 0 : i32
    %c0_i32_1 = arith.constant 0 : i32
    return %c0_i32, %c0_i32_0 : i32, i32
  }
  func.func @transform_4(%arg0: i32) -> (i32, i32) {
    %c0_i32 = arith.constant 0 : i32
    %c0_i32_0 = arith.constant 0 : i32
    return %c0_i32, %arg0 : i32, i32
  }
}

</mosaic_0001>

<llo_original>
// kernel: tile.9
$region0: #{tile.9}
  %s0 = inlined_call_operand.vmem [shape: f32[2,324], index: 0, kind: input, shape index: {}]
  %s1 = inlined_call_operand.vmem [shape: f32[648], index: 1, kind: output, shape index: {}]
  $region1: #{tile.9} parent=0
    #allocation0 [shape = 'u8[12288]{0}', space=vmem, size = 0x3000, scoped, tag = 'scoped mem for input reshape']
    %s3 = sshllo.u32 0, 2
    %s4 = smul.addr 2, 2
    %s5 = scalar_lea.vmem %s0, %s4
    %v6 = vld [vmem:[%s5] sm:%s3]
    %s7 = scalar_lea.vmem [#allocation0], 16
    %8 = vst [vmem:[%s7] sm:%s3] %v6
    %s9 = scalar_lea.vmem %s0, 2
    %v10 = vld [vmem:[%s9] sm:%s3]
    %s11 = scalar_lea.vmem [#allocation0], 8
    %12 = vst [vmem:[%s11] sm:%s3] %v10
    %v13 = vld [vmem:[%s0] sm:%s3]
    %14 = vst [vmem:[#allocation0] sm:%s3] %v13
    %s15 = scalar_lea.vmem [#allocation0], 16
    %v16 = vld [vmem:[%s15] sm:$0x1]
    %vm17 = vcmask 556032
    %s18 = scalar_lea.vmem %s1, 2
    %19 = vst.msk [vmem:[%s18] sm:$0x1] %vm17, %v16
    %s20 = smov 3
    %v21 = vld [vmem:[#allocation0] ss:$8 sm:%s20]
    %22 = vst [vmem:[%s1] sm:$0x3] %v21
    %s23 = scalar_lea.vmem [#allocation0], 17
    %v24 = vld [vmem:[%s23] sm:$0x1]
    %s25 = scalar_lea.vmem [#allocation0], 1
    %v26 = vld [vmem:[%s25] ss:$8 sm:$0x7]
    %vm27 = vcmask 490496
    %v28 = vsel %vm27, %v26, %v24
    %29 = vrot.lane.b32.xlu0 %v28, 68
    %v30 = vpop.permute.xlu0 %29
    %vm31 = vcmask 64512
    %s32 = scalar_lea.vmem %s1, 5
    %33 = vst.msk [vmem:[%s32] sm:$0x1] %vm31, %v30
    %vm34 = vcmask 1048096
    %s35 = scalar_lea.vmem %s1, 2
    %36 = vst.msk [vmem:[%s35] sm:$0x7] %vm34, %v30
    %s37 = scalar_lea.vmem [#allocation0], 1
    %s38 = smov 3
    %v39 = vld [vmem:[%s37] ss:$8 sm:%s38]
    %40 = vrot.lane.b32.xlu0 %v39, 68
    %v41 = vpop.permute.xlu0 %40
    %vm42 = vcmask 556032
    %s43 = scalar_lea.vmem %s1, 3
    %44 = vst.msk [vmem:[%s43] sm:$0x3] %vm42, %v41

// kernel: tile.8
$region0: #{tile.8}
  #allocation0 [shape = 's32[1]{0}', space=sflag, size = 0x4, scoped, tag = 'scoped memory for tile.8']
  %s0 = inlined_call_operand.vmem [shape: f32[324], index: 0, kind: input, shape index: {}]
  %s1 = inlined_call_operand.vmem [shape: f32[2,324], index: 1, kind: output, shape index: {}]
  // Predicated region
  $region2: #{tile.8} parent=0 // pred_check
    _
  $region3: #{tile.8} parent=0 // pred_check_branch
    %3 = sbr.rel (0) target = $region5
  $region4: #{tile.8} parent=0 // pred_region
    _
  $region5: #{tile.8} parent=0 // pred_fallthru
    _
  %v4 = vld [vmem:[%s0] ss:$0 sm:$0xff]
  %5 = vst [vmem:[%s1] sm:$0x3] %v4
  %s6 = scalar_lea.vmem %s0, 1
  %v7 = vld [vmem:[%s6] ss:$0 sm:$0xff]
  %s8 = scalar_lea.vmem %s1, 2
  %9 = vst [vmem:[%s8] sm:$0x3] %v7
  %s10 = scalar_lea.vmem %s0, 2
  %v11 = vld [vmem:[%s10] ss:$0 sm:$0xff]
  %s12 = scalar_lea.vmem %s1, 4
  %13 = vst [vmem:[%s12] sm:$0x3] %v11

// kernel: conv_block_nested_forward.5
$region0: #{conv_block_nested_forward.5}
  #allocation0 [shape = 'u32[]', space=smem, size = 0x4, offset = 0x4, fixed_abs, tag = 'smem constant byte address 0x4 - core index']
  #allocation1 [shape = 'u32[144,128]{1,0:T(1,128)}', space=vmem, size = 0x12000, scoped, tag = 'internal scratch']
  %s0 = inlined_call_operand.vmem [shape: f32[8,768], index: 0, kind: input, shape index: {}]
  %s1 = inlined_call_operand.vmem [shape: f32[8,768], index: 1, kind: input, shape index: {}]
  %s2 = inlined_call_operand.vmem [shape: f32[8,1], index: 2, kind: input, shape index: {}]
  %s3 = inlined_call_operand.vmem [shape: f32[8,1], index: 3, kind: input, shape index: {}]
  %s4 = inlined_call_operand.vmem [shape: f32[8,768], index: 4, kind: output, shape index: {}]
  %s5 = sld [smem:[#allocation0]]
  $region49: #{conv_block_nested_forward.5} parent=0
    _
  %s7 = ssub.s32 1, %s5
  %s8 = scalar_select 0, %s7, %s5
  loop: start=0, step=1, limit=5
  $region2: #{conv_block_nested_forward.5} parent=0 // loop_pre_header
    _
  $region3: #{conv_block_nested_forward.5} parent=0 // loop_header
    %s10 = sphi 0, %s14
    %p11 = scmp.ge.s32.totalorder %s10, 5
    %s20 = sphi 0, %s22
    %s23 = sphi 0, %s20
    %s24 = sphi 0, %s23
    %s40 = sphi 0, %s24
    %s46 = sphi 0, %s48
    %s49 = sphi 0, %s46
    %s50 = sphi 0, %s49
    %s66 = sphi 0, %s50
    %s70 = sphi 0, %s70
    %s72 = sphi 0, %s70
    %s73 = sphi 0, %s72
    %s87 = sphi 0, %s73
    %s91 = sphi 0, %s91
    %s93 = sphi 0, %s91
    %s94 = sphi 0, %s93
    %s108 = sphi 0, %s94
    %s114 = sphi 0, %s116
    %s117 = sphi 0, %s114
    %s118 = sphi 0, %s117
    %s134 = sphi 0, %s118
  $region4: #{conv_block_nested_forward.5} parent=0 // loop_header_branch
    %13 = sbr.rel (%p11) target = $region8
  $region5: #{conv_block_nested_forward.5} parent=0 // loop_body
    %s15 = ssub.s32 %s10, 1
    %s16 = ssub.s32 %s10, 2
    %s17 = sadd.s32 %s10, 1
    %s18 = ssub.s32 %s10, %s17
    %p19 = scmp.eq.s32.totalorder %s18, 0
    %s21 = sadd.s32 %s20, 1
    %s22 = scalar_select %p19, %s20, %s21
    %p25 = pneg %p19
    %p26 = scmp.eq.s32.totalorder %s10, 2
    %p27 = por %p25, %p26
    %p28 = scmp.ne.s32.totalorder %s20, %s23
    %p29 = scmp.eq.s32.totalorder %s10, 0
    %p30 = por %p28, %p29
    %p31 = scmp.ne.s32.totalorder %s20, %s23
    %p32 = scmp.eq.s32.totalorder %s15, 2
    %p33 = por %p31, %p32
    %p34 = scmp.ne.s32.totalorder %s23, %s24
    %p35 = scmp.eq.s32.totalorder %s15, 0
    %p36 = por %p34, %p35
    %p37 = scmp.ne.s32.totalorder %s23, %s24
    %p38 = scmp.eq.s32.totalorder %s16, 2
    %p39 = por %p37, %p38
    %p41 = scmp.ne.s32.totalorder %s24, %s40
    %p42 = scmp.eq.s32.totalorder %s16, 0
    %p43 = por %p41, %p42
    %s44 = ssub.s32 %s10, %s17
    %p45 = scmp.eq.s32.totalorder %s44, 0
    %s47 = sadd.s32 %s46, 1
    %s48 = scalar_select %p45, %s46, %s47
    %p51 = pneg %p45
    %p52 = scmp.eq.s32.totalorder %s10, 2
    %p53 = por %p51, %p52
    %p54 = scmp.ne.s32.totalorder %s46, %s49
    %p55 = scmp.eq.s32.totalorder %s10, 0
    %p56 = por %p54, %p55
    %p57 = scmp.ne.s32.totalorder %s46, %s49
    %p58 = scmp.eq.s32.totalorder %s15, 2
    %p59 = por %p57, %p58
    %p60 = scmp.ne.s32.totalorder %s49, %s50
    %p61 = scmp.eq.s32.totalorder %s15, 0
    %p62 = por %p60, %p61
    %p63 = scmp.ne.s32.totalorder %s49, %s50
    %p64 = scmp.eq.s32.totalorder %s16, 2
    %p65 = por %p63, %p64
    %p67 = scmp.ne.s32.totalorder %s50, %s66
    %p68 = scmp.eq.s32.totalorder %s16, 0
    %p69 = por %p67, %p68
    %s71 = sadd.s32 %s70, 1
    %p74 = scmp.eq.s32.totalorder %s10, 2
    %p75 = scmp.ne.s32.totalorder %s70, %s72
    %p76 = scmp.eq.s32.totalorder %s10, 0
    %p77 = por %p75, %p76
    %p78 = scmp.ne.s32.totalorder %s70, %s72
    %p79 = scmp.eq.s32.totalorder %s15, 2
    %p80 = por %p78, %p79
    %p81 = scmp.ne.s32.totalorder %s72, %s73
    %p82 = scmp.eq.s32.totalorder %s15, 0
    %p83 = por %p81, %p82
    %p84 = scmp.ne.s32.totalorder %s72, %s73
    %p85 = scmp.eq.s32.totalorder %s16, 2
    %p86 = por %p84, %p85
    %p88 = scmp.ne.s32.totalorder %s73, %s87
    %p89 = scmp.eq.s32.totalorder %s16, 0
    %p90 = por %p88, %p89
    %s92 = sadd.s32 %s91, 1
    %p95 = scmp.eq.s32.totalorder %s10, 2
    %p96 = scmp.ne.s32.totalorder %s91, %s93
    %p97 = scmp.eq.s32.totalorder %s10, 0
    %p98 = por %p96, %p97
    %p99 = scmp.ne.s32.totalorder %s91, %s93
    %p100 = scmp.eq.s32.totalorder %s15, 2
    %p101 = por %p99, %p100
    %p102 = scmp.ne.s32.totalorder %s93, %s94
    %p103 = scmp.eq.s32.totalorder %s15, 0
    %p104 = por %p102, %p103
    %p105 = scmp.ne.s32.totalorder %s93, %s94
    %p106 = scmp.eq.s32.totalorder %s16, 2
    %p107 = por %p105, %p106
    %p109 = scmp.ne.s32.totalorder %s94, %s108
    %p110 = scmp.eq.s32.totalorder %s16, 0
    %p111 = por %p109, %p110
    %s112 = ssub.s32 %s10, %s17
    %p113 = scmp.eq.s32.totalorder %s112, 0
    %s115 = sadd.s32 %s114, 1
    %s116 = scalar_select %p113, %s114, %s115
    %p119 = pneg %p113
    %p120 = scmp.eq.s32.totalorder %s10, 2
    %p121 = por %p119, %p120
    %p122 = scmp.ne.s32.totalorder %s114, %s117
    %p123 = scmp.eq.s32.totalorder %s10, 0
    %p124 = por %p122, %p123
    %p125 = scmp.ne.s32.totalorder %s114, %s117
    %p126 = scmp.eq.s32.totalorder %s15, 2
    %p127 = por %p125, %p126
    %p128 = scmp.ne.s32.totalorder %s117, %s118
    %p129 = scmp.eq.s32.totalorder %s15, 0
    %p130 = por %p128, %p129
    %p131 = scmp.ne.s32.totalorder %s117, %s118
    %p132 = scmp.eq.s32.totalorder %s16, 2
    %p133 = por %p131, %p132
    %p135 = scmp.ne.s32.totalorder %s118, %s134
    %p136 = scmp.eq.s32.totalorder %s16, 0
    %p137 = por %p135, %p136
    %p138 = scmp.le.s32.totalorder 1, %s10
    %p139 = scmp.lt.s32.totalorder %s10, 4
    %p140 = pnand %p138, %p139
    %p141 = pneg %p140
    // Predicated region
    $region9: #{conv_block_nested_forward.5} parent=5 // pred_check
      _
    $region10: #{conv_block_nested_forward.5} parent=5 // pred_check_branch
      %143 = sbr.rel (%p140) target = $region12
    $region11: #{conv_block_nested_forward.5} parent=5 // pred_region
      %s144 = ssub.s32 %s10, 1
      // Predicated region
      $region13: #{conv_block_nested_forward.5} parent=11 // pred_check
        %p145 = pneg %p83
      $region14: #{conv_block_nested_forward.5} parent=11 // pred_check_branch
        %147 = sbr.rel (%p145) target = $region16
      $region15: #{conv_block_nested_forward.5} parent=11 // pred_region
        _
      $region16: #{conv_block_nested_forward.5} parent=11 // pred_fallthru
        _
      // Predicated region
      $region17: #{conv_block_nested_forward.5} parent=11 // pred_check
        %p148 = pneg %p104
      $region18: #{conv_block_nested_forward.5} parent=11 // pred_check_branch
        %150 = sbr.rel (%p148) target = $region20
      $region19: #{conv_block_nested_forward.5} parent=11 // pred_region
        _
      $region20: #{conv_block_nested_forward.5} parent=11 // pred_fallthru
        _
    $region12: #{conv_block_nested_forward.5} parent=5 // pred_fallthru
      _
    %p151 = scmp.lt.s32.totalorder %s10, 3
    // Predicated region
    $region21: #{conv_block_nested_forward.5} parent=5 // pred_check
      %p152 = pneg %p151
    $region22: #{conv_block_nested_forward.5} parent=5 // pred_check_branch
      %154 = sbr.rel (%p152) target = $region24
    $region23: #{conv_block_nested_forward.5} parent=5 // pred_region
      // Predicated region
      $region25: #{conv_block_nested_forward.5} parent=23 // pred_check
        %p155 = pneg %p30
      $region26: #{conv_block_nested_forward.5} parent=23 // pred_check_branch
        %157 = sbr.rel (%p155) target = $region28
      $region27: #{conv_block_nested_forward.5} parent=23 // pred_region
        %s158 = smul.u32 2, %s10
        %p159 = scmp.lt.s32.totalorder %s158, 5
        %s160 = scalar_select %p159, %s158, 5
        %s161 = smul.addr %s160, 8
        %s162 = scalar_lea.vmem %s0, %s161
        %s163 = smul.u32 2, %s10
      $region28: #{conv_block_nested_forward.5} parent=23 // pred_fallthru
        _
      // Predicated region
      $region29: #{conv_block_nested_forward.5} parent=23 // pred_check
        %p164 = pneg %p56
      $region30: #{conv_block_nested_forward.5} parent=23 // pred_check_branch
        %166 = sbr.rel (%p164) target = $region32
      $region31: #{conv_block_nested_forward.5} parent=23 // pred_region
        %s167 = smul.u32 2, %s10
        %p168 = scmp.lt.s32.totalorder %s167, 5
        %s169 = scalar_select %p168, %s167, 5
        %s170 = smul.addr %s169, 8
        %s171 = scalar_lea.vmem %s1, %s170
        %s172 = smul.u32 2, %s10
      $region32: #{conv_block_nested_forward.5} parent=23 // pred_fallthru
        _
    $region24: #{conv_block_nested_forward.5} parent=5 // pred_fallthru
      _
    %p173 = scmp.le.s32.totalorder 1, %s10
    %p174 = scmp.lt.s32.totalorder %s10, 4
    %p175 = pnand %p173, %p174
    %p176 = pneg %p175
    // Predicated region
    $region33: #{conv_block_nested_forward.5} parent=5 // pred_check
      _
    $region34: #{conv_block_nested_forward.5} parent=5 // pred_check_branch
      %178 = sbr.rel (%p175) target = $region36
    $region35: #{conv_block_nested_forward.5} parent=5 // pred_region
      %s179 = ssub.s32 %s10, 1
      %s180 = smul.u32 2, %s15
      %p181 = scmp.lt.s32.totalorder %s180, 5
      %s182 = scalar_select %p181, %s180, 5
      %s183 = smul.addr %s182, 8
      %s184 = scalar_lea.vmem %s0, %s183
      %p185 = pneg %p36
      %p186 = pneg %p33
      %s187 = smul.u32 2, %s15
      %p188 = scmp.lt.s32.totalorder %s187, 5
      %s189 = scalar_select %p188, %s187, 5
      %s190 = smul.addr %s189, 8
      %s191 = scalar_lea.vmem %s1, %s190
      %p192 = pneg %p62
      %p193 = pneg %p59
      %p194 = pneg %p83
      %p195 = pneg %p80
      %p196 = pneg %p104
      %p197 = pneg %p101
      %p198 = pneg %p130
      %p199 = pneg %p127
      %s200 = smul.u32 2, %s15
      %p201 = scmp.lt.s32.totalorder %s200, 5
      %s202 = scalar_select %p201, %s200, 5
      %s203 = smul.addr %s202, 8
      %s204 = scalar_lea.vmem %s4, %s203
      %s205 = smul.u32 2, %s15
      %p206 = scmp.lt.s32.totalorder %s205, 5
      %s207 = scalar_select %p206, %s205, 5
      %s208 = smul.addr %s207, 8
      %s209 = scalar_lea.vmem %s0, %s208
      %s210 = smul.u32 2, %s15
      %s211 = smul.u32 2, %s15
      %p212 = scmp.lt.s32.totalorder %s211, 5
      %s213 = scalar_select %p212, %s211, 5
      %s214 = smul.addr %s213, 8
      %s215 = scalar_lea.vmem %s1, %s214
      %s216 = smul.u32 2, %s15
      %s217 = smul.u32 2, %s15
      %p218 = scmp.lt.s32.totalorder %s217, 5
      %s219 = scalar_select %p218, %s217, 5
      %s220 = smul.addr %s219, 8
      %s221 = scalar_lea.vmem %s4, %s220
      %s222 = smul.u32 2, %s15
      %v223 = vld [vmem:[%s215] sm:$0xff]
      %v224 = vld [vmem:[%s215 + $0x8] sm:$0xff]
      %v225 = vld [vmem:[%s2] sm:$0xff]
      %227 = vset.pattern.permute.xlu0 0
      %228 = vperm.xlu0 %227, %v225
      %v229 = vpop.permute.xlu0 %228
      %v231 = vmul.f32 %v223, %v229
      %v232 = vmul.f32 %v224, %v229
      %v233 = vld [vmem:[%s3] sm:$0xff]
      %235 = vset.pattern.permute.xlu0 0
      %236 = vperm.xlu0 %235, %v233
      %v237 = vpop.permute.xlu0 %236
      %v239 = vadd.f32 %v231, %v237
      %v240 = vadd.f32 %v232, %v237
      %v241 = vld [vmem:[%s209] sm:$0xff]
      %v242 = vld [vmem:[%s209 + $0x8] sm:$0xff]
      %v243 = vadd.f32 %v239, %v241
      %v244 = vadd.f32 %v240, %v242
      %v245 = vmax.f32 %v243, 0.0
      %v246 = vmax.f32 %v244, 0.0
      %247 = vst [vmem:[%s221] sm:$0xff] %v245
      %248 = vst [vmem:[%s221 + $0x8] sm:$0xff] %v246
      %s249 = smul.u32 2, %s15
      %p250 = scmp.lt.s32.totalorder %s249, 5
      %s251 = scalar_select %p250, %s249, 5
      %s252 = smul.addr %s251, 8
      %s253 = scalar_lea.vmem %s4, %s252
      // Predicated region
      $region37: #{conv_block_nested_forward.5} parent=35 // pred_check
        %p254 = pneg %p127
      $region38: #{conv_block_nested_forward.5} parent=35 // pred_check_branch
        %256 = sbr.rel (%p254) target = $region40
      $region39: #{conv_block_nested_forward.5} parent=35 // pred_region
        %s257 = smul.u32 2, %s15
      $region40: #{conv_block_nested_forward.5} parent=35 // pred_fallthru
        _
    $region36: #{conv_block_nested_forward.5} parent=5 // pred_fallthru
      _
    %p258 = scmp.le.s32.totalorder 2, %s10
    // Predicated region
    $region41: #{conv_block_nested_forward.5} parent=5 // pred_check
      %p259 = pneg %p258
    $region42: #{conv_block_nested_forward.5} parent=5 // pred_check_branch
      %261 = sbr.rel (%p259) target = $region44
    $region43: #{conv_block_nested_forward.5} parent=5 // pred_region
      %s262 = ssub.s32 %s10, 2
      // Predicated region
      $region45: #{conv_block_nested_forward.5} parent=43 // pred_check
        %p263 = pneg %p133
      $region46: #{conv_block_nested_forward.5} parent=43 // pred_check_branch
        %265 = sbr.rel (%p263) target = $region48
      $region47: #{conv_block_nested_forward.5} parent=43 // pred_region
        %s266 = smul.u32 2, %s16
        %p267 = scmp.lt.s32.totalorder %s266, 5
        %s268 = scalar_select %p267, %s266, 5
        %s269 = smul.addr %s268, 8
        %s270 = scalar_lea.vmem %s4, %s269
      $region48: #{conv_block_nested_forward.5} parent=43 // pred_fallthru
        _
    $region44: #{conv_block_nested_forward.5} parent=5 // pred_fallthru
      _
  $region6: #{conv_block_nested_forward.5} parent=0 // loop_footer
    %s14 = sadd.s32 1, %s10
  $region7: #{conv_block_nested_forward.5} parent=0 // loop_footer_branch
    %9 = sbr.rel target = $region3
  $region8: #{conv_block_nested_forward.5} parent=0 // loop_exit
    _

// kernel: conv_block_nested_forward.3
$region0: #{conv_block_nested_forward.3}
  #allocation0 [shape = 'u32[]', space=smem, size = 0x4, offset = 0x4, fixed_abs, tag = 'smem constant byte address 0x4 - core index']
  #allocation1 [shape = 'u32[144,128]{1,0:T(1,128)}', space=vmem, size = 0x12000, scoped, tag = 'internal scratch']
  %s0 = inlined_call_operand.vmem [shape: f32[3,4,512], index: 0, kind: input, shape index: {}]
  %s1 = inlined_call_operand.vmem [shape: f32[1,768], index: 1, kind: input, shape index: {}]
  %s2 = inlined_call_operand.vmem [shape: f32[9,8,4], index: 2, kind: input, shape index: {}]
  %s3 = inlined_call_operand.vmem [shape: f32[8,768], index: 3, kind: output, shape index: {0}]
  %s4 = inlined_call_operand.vmem [shape: f32[8,1], index: 4, kind: output, shape index: {1}]
  %s5 = inlined_call_operand.vmem [shape: f32[8,1], index: 5, kind: output, shape index: {2}]
  %6 = xla_tuple %s3, %s4, %s5
  %s7 = sld [smem:[#allocation0]]
  $region65: #{conv_block_nested_forward.3} parent=0
    _
  %s9 = ssub.s32 1, %s7
  %s10 = scalar_select 0, %s9, %s7
  loop: start=0, step=1, limit=5
  $region2: #{conv_block_nested_forward.3} parent=0 // loop_pre_header
    _
  $region3: #{conv_block_nested_forward.3} parent=0 // loop_header
    %s12 = sphi 0, %s16
    %p13 = scmp.ge.s32.totalorder %s12, 5
    %s22 = sphi 0, %s24
    %s25 = sphi 0, %s22
    %s26 = sphi 0, %s25
    %s42 = sphi 0, %s26
    %s48 = sphi 0, %s50
    %s51 = sphi 0, %s48
    %s52 = sphi 0, %s51
    %s68 = sphi 0, %s52
    %s72 = sphi 0, %s72
    %s74 = sphi 0, %s72
    %s75 = sphi 0, %s74
    %s89 = sphi 0, %s75
    %s95 = sphi 0, %s97
    %s98 = sphi 0, %s95
    %s99 = sphi 0, %s98
    %s115 = sphi 0, %s99
    %s119 = sphi 0, %s119
    %s121 = sphi 0, %s119
    %s122 = sphi 0, %s121
    %s136 = sphi 0, %s122
    %s140 = sphi 0, %s140
    %s142 = sphi 0, %s140
    %s143 = sphi 0, %s142
    %s157 = sphi 0, %s143
  $region4: #{conv_block_nested_forward.3} parent=0 // loop_header_branch
    %15 = sbr.rel (%p13) target = $region8
  $region5: #{conv_block_nested_forward.3} parent=0 // loop_body
    %s17 = ssub.s32 %s12, 1
    %s18 = ssub.s32 %s12, 2
    %s19 = sadd.s32 %s12, 1
    %s20 = ssub.s32 %s12, %s19
    %p21 = scmp.eq.s32.totalorder %s20, 0
    %s23 = sadd.s32 %s22, 1
    %s24 = scalar_select %p21, %s22, %s23
    %p27 = pneg %p21
    %p28 = scmp.eq.s32.totalorder %s12, 2
    %p29 = por %p27, %p28
    %p30 = scmp.ne.s32.totalorder %s22, %s25
    %p31 = scmp.eq.s32.totalorder %s12, 0
    %p32 = por %p30, %p31
    %p33 = scmp.ne.s32.totalorder %s22, %s25
    %p34 = scmp.eq.s32.totalorder %s17, 2
    %p35 = por %p33, %p34
    %p36 = scmp.ne.s32.totalorder %s25, %s26
    %p37 = scmp.eq.s32.totalorder %s17, 0
    %p38 = por %p36, %p37
    %p39 = scmp.ne.s32.totalorder %s25, %s26
    %p40 = scmp.eq.s32.totalorder %s18, 2
    %p41 = por %p39, %p40
    %p43 = scmp.ne.s32.totalorder %s26, %s42
    %p44 = scmp.eq.s32.totalorder %s18, 0
    %p45 = por %p43, %p44
    %s46 = ssub.s32 %s12, %s19
    %p47 = scmp.eq.s32.totalorder %s46, 0
    %s49 = sadd.s32 %s48, 1
    %s50 = scalar_select %p47, %s48, %s49
    %p53 = pneg %p47
    %p54 = scmp.eq.s32.totalorder %s12, 2
    %p55 = por %p53, %p54
    %p56 = scmp.ne.s32.totalorder %s48, %s51
    %p57 = scmp.eq.s32.totalorder %s12, 0
    %p58 = por %p56, %p57
    %p59 = scmp.ne.s32.totalorder %s48, %s51
    %p60 = scmp.eq.s32.totalorder %s17, 2
    %p61 = por %p59, %p60
    %p62 = scmp.ne.s32.totalorder %s51, %s52
    %p63 = scmp.eq.s32.totalorder %s17, 0
    %p64 = por %p62, %p63
    %p65 = scmp.ne.s32.totalorder %s51, %s52
    %p66 = scmp.eq.s32.totalorder %s18, 2
    %p67 = por %p65, %p66
    %p69 = scmp.ne.s32.totalorder %s52, %s68
    %p70 = scmp.eq.s32.totalorder %s18, 0
    %p71 = por %p69, %p70
    %s73 = sadd.s32 %s72, 1
    %p76 = scmp.eq.s32.totalorder %s12, 2
    %p77 = scmp.ne.s32.totalorder %s72, %s74
    %p78 = scmp.eq.s32.totalorder %s12, 0
    %p79 = por %p77, %p78
    %p80 = scmp.ne.s32.totalorder %s72, %s74
    %p81 = scmp.eq.s32.totalorder %s17, 2
    %p82 = por %p80, %p81
    %p83 = scmp.ne.s32.totalorder %s74, %s75
    %p84 = scmp.eq.s32.totalorder %s17, 0
    %p85 = por %p83, %p84
    %p86 = scmp.ne.s32.totalorder %s74, %s75
    %p87 = scmp.eq.s32.totalorder %s18, 2
    %p88 = por %p86, %p87
    %p90 = scmp.ne.s32.totalorder %s75, %s89
    %p91 = scmp.eq.s32.totalorder %s18, 0
    %p92 = por %p90, %p91
    %s93 = ssub.s32 %s12, %s19
    %p94 = scmp.eq.s32.totalorder %s93, 0
    %s96 = sadd.s32 %s95, 1
    %s97 = scalar_select %p94, %s95, %s96
    %p100 = pneg %p94
    %p101 = scmp.eq.s32.totalorder %s12, 2
    %p102 = por %p100, %p101
    %p103 = scmp.ne.s32.totalorder %s95, %s98
    %p104 = scmp.eq.s32.totalorder %s12, 0
    %p105 = por %p103, %p104
    %p106 = scmp.ne.s32.totalorder %s95, %s98
    %p107 = scmp.eq.s32.totalorder %s17, 2
    %p108 = por %p106, %p107
    %p109 = scmp.ne.s32.totalorder %s98, %s99
    %p110 = scmp.eq.s32.totalorder %s17, 0
    %p111 = por %p109, %p110
    %p112 = scmp.ne.s32.totalorder %s98, %s99
    %p113 = scmp.eq.s32.totalorder %s18, 2
    %p114 = por %p112, %p113
    %p116 = scmp.ne.s32.totalorder %s99, %s115
    %p117 = scmp.eq.s32.totalorder %s18, 0
    %p118 = por %p116, %p117
    %s120 = sadd.s32 %s119, 1
    %p123 = scmp.eq.s32.totalorder %s12, 2
    %p124 = scmp.ne.s32.totalorder %s119, %s121
    %p125 = scmp.eq.s32.totalorder %s12, 0
    %p126 = por %p124, %p125
    %p127 = scmp.ne.s32.totalorder %s119, %s121
    %p128 = scmp.eq.s32.totalorder %s17, 2
    %p129 = por %p127, %p128
    %p130 = scmp.ne.s32.totalorder %s121, %s122
    %p131 = scmp.eq.s32.totalorder %s17, 0
    %p132 = por %p130, %p131
    %p133 = scmp.ne.s32.totalorder %s121, %s122
    %p134 = scmp.eq.s32.totalorder %s18, 2
    %p135 = por %p133, %p134
    %p137 = scmp.ne.s32.totalorder %s122, %s136
    %p138 = scmp.eq.s32.totalorder %s18, 0
    %p139 = por %p137, %p138
    %s141 = sadd.s32 %s140, 1
    %p144 = scmp.eq.s32.totalorder %s12, 2
    %p145 = scmp.ne.s32.totalorder %s140, %s142
    %p146 = scmp.eq.s32.totalorder %s12, 0
    %p147 = por %p145, %p146
    %p148 = scmp.ne.s32.totalorder %s140, %s142
    %p149 = scmp.eq.s32.totalorder %s17, 2
    %p150 = por %p148, %p149
    %p151 = scmp.ne.s32.totalorder %s142, %s143
    %p152 = scmp.eq.s32.totalorder %s17, 0
    %p153 = por %p151, %p152
    %p154 = scmp.ne.s32.totalorder %s142, %s143
    %p155 = scmp.eq.s32.totalorder %s18, 2
    %p156 = por %p154, %p155
    %p158 = scmp.ne.s32.totalorder %s143, %s157
    %p159 = scmp.eq.s32.totalorder %s18, 0
    %p160 = por %p158, %p159
    %p161 = scmp.le.s32.totalorder 1, %s12
    %p162 = scmp.lt.s32.totalorder %s12, 4
    %p163 = pnand %p161, %p162
    %p164 = pneg %p163
    // Predicated region
    $region9: #{conv_block_nested_forward.3} parent=5 // pred_check
      _
    $region10: #{conv_block_nested_forward.3} parent=5 // pred_check_branch
      %166 = sbr.rel (%p163) target = $region12
    $region11: #{conv_block_nested_forward.3} parent=5 // pred_region
      %s167 = ssub.s32 %s12, 1
      // Predicated region
      $region13: #{conv_block_nested_forward.3} parent=11 // pred_check
        %p168 = pneg %p85
      $region14: #{conv_block_nested_forward.3} parent=11 // pred_check_branch
        %170 = sbr.rel (%p168) target = $region16
      $region15: #{conv_block_nested_forward.3} parent=11 // pred_region
        _
      $region16: #{conv_block_nested_forward.3} parent=11 // pred_fallthru
        _
    $region12: #{conv_block_nested_forward.3} parent=5 // pred_fallthru
      _
    %p171 = scmp.lt.s32.totalorder %s12, 3
    // Predicated region
    $region17: #{conv_block_nested_forward.3} parent=5 // pred_check
      %p172 = pneg %p171
    $region18: #{conv_block_nested_forward.3} parent=5 // pred_check_branch
      %174 = sbr.rel (%p172) target = $region20
    $region19: #{conv_block_nested_forward.3} parent=5 // pred_region
      // Predicated region
      $region21: #{conv_block_nested_forward.3} parent=19 // pred_check
        %p175 = pneg %p32
      $region22: #{conv_block_nested_forward.3} parent=19 // pred_check_branch
        %177 = sbr.rel (%p175) target = $region24
      $region23: #{conv_block_nested_forward.3} parent=19 // pred_region
        %p178 = scmp.lt.s32.totalorder %s12, 2
        %s179 = scalar_select %p178, %s12, 2
        %s180 = smul.addr %s179, 4
        %s181 = smul.addr %s180, 4
        %s182 = scalar_lea.vmem %s0, %s181
      $region24: #{conv_block_nested_forward.3} parent=19 // pred_fallthru
        _
      // Predicated region
      $region25: #{conv_block_nested_forward.3} parent=19 // pred_check
        %p183 = pneg %p58
      $region26: #{conv_block_nested_forward.3} parent=19 // pred_check_branch
        %185 = sbr.rel (%p183) target = $region28
      $region27: #{conv_block_nested_forward.3} parent=19 // pred_region
        %s186 = smul.u32 2, %s12
        %p187 = scmp.lt.s32.totalorder %s186, 5
        %s188 = scalar_select %p187, %s186, 5
        %s189 = scalar_lea.vmem %s1, %s188
        %s190 = smul.u32 2, %s12
      $region28: #{conv_block_nested_forward.3} parent=19 // pred_fallthru
        _
    $region20: #{conv_block_nested_forward.3} parent=5 // pred_fallthru
      _
    %p191 = scmp.le.s32.totalorder 1, %s12
    %p192 = scmp.lt.s32.totalorder %s12, 4
    %p193 = pnand %p191, %p192
    %p194 = pneg %p193
    // Predicated region
    $region29: #{conv_block_nested_forward.3} parent=5 // pred_check
      _
    $region30: #{conv_block_nested_forward.3} parent=5 // pred_check_branch
      %196 = sbr.rel (%p193) target = $region32
    $region31: #{conv_block_nested_forward.3} parent=5 // pred_region
      %s197 = ssub.s32 %s12, 1
      %p198 = scmp.lt.s32.totalorder %s17, 2
      %s199 = scalar_select %p198, %s17, 2
      %s200 = smul.addr %s199, 4
      %s201 = smul.addr %s200, 4
      %s202 = scalar_lea.vmem %s0, %s201
      %p203 = pneg %p38
      %p204 = pneg %p35
      %s205 = smul.u32 2, %s17
      %p206 = scmp.lt.s32.totalorder %s205, 5
      %s207 = scalar_select %p206, %s205, 5
      %s208 = scalar_lea.vmem %s1, %s207
      %p209 = pneg %p64
      %p210 = pneg %p61
      %p211 = pneg %p85
      %p212 = pneg %p82
      %p213 = pneg %p111
      %p214 = pneg %p108
      %s215 = smul.u32 2, %s17
      %p216 = scmp.lt.s32.totalorder %s215, 5
      %s217 = scalar_select %p216, %s215, 5
      %s218 = smul.addr %s217, 8
      %s219 = scalar_lea.vmem %s3, %s218
      %p220 = pneg %p132
      %p221 = pneg %p129
      %p222 = pneg %p153
      %p223 = pneg %p150
      %p224 = scmp.lt.s32.totalorder %s17, 2
      %s225 = scalar_select %p224, %s17, 2
      %s226 = smul.addr %s225, 4
      %s227 = smul.addr %s226, 4
      %s228 = scalar_lea.vmem %s0, %s227
      %s229 = smul.u32 2, %s17
      %p230 = scmp.lt.s32.totalorder %s229, 5
      %s231 = scalar_select %p230, %s229, 5
      %s232 = scalar_lea.vmem %s1, %s231
      %s233 = smul.u32 2, %s17
      %s234 = smul.u32 2, %s17
      %p235 = scmp.lt.s32.totalorder %s234, 5
      %s236 = scalar_select %p235, %s234, 5
      %s237 = smul.addr %s236, 8
      %s238 = scalar_lea.vmem %s3, %s237
      %s239 = smul.u32 2, %s17
      %v240 = vld [vmem:[%s2] sm:$0xff]
      %v241 = vld [vmem:[%s228] sm:$0xff]
      %v242 = vld [vmem:[%s228 + $0x8] sm:$0xf]
      %s243 = scalar_lea.vmem %s2, 8
      %v244 = vld [vmem:[%s243] sm:$0xff]
      %v247 = vcombine.high %v241, %v241
      %248 = vrot.lane.b32.xlu0 %v241, 18
      %v249 = vpop.permute.xlu0 %248
      %250 = vrot.lane.b32.xlu0 %v247, 18
      %v251 = vpop.permute.xlu0 %250
      %252 = vrot.lane.b32.xlu0 %v242, 18
      %v253 = vpop.permute.xlu0 %252
      %vm254 = vcmask 146432
      %v255 = vsel %vm254, %v249, %v251
      %v256 = vsel %vm254, %v251, %v253
      %vm257 = vcmask 31744
      %v259 = vsel %vm257, %v244, 0
      %vm261 = vcmask 1043456
      %v262 = vsel %vm261, %v255, 0
      %v264 = vsel %vm261, %v256, 0
      %266 = vmatprep.subr.mxu0 %v264
      %267 = vmatpush1.msra.mxu0 %v262
      %268 = vmatprep.subr.mxu0 0.0
      %269 = vmatpush1.msra.mxu0 0.0
      %270 = vmatprep.subr.mxu0 0.0
      %271 = vmatpush1.msra.mxu0 0.0
      %272 = vmatprep.subr.mxu0 0.0
      %273 = vmatpush1.msra.mxu0 0.0
      %274 = vmatprep.subr.mxu0 0.0
      %275 = vmatpush1.msra.mxu0 0.0
      %276 = vmatprep.subr.mxu0 0.0
      %277 = vmatpush1.msra.mxu0 0.0
      %278 = vmatprep.subr.mxu0 0.0
      %279 = vmatpush1.msra.mxu0 0.0
      %280 = vmatprep.subr.mxu0 0.0
      %281 = vmatpush1.msra.mxu0 0.0
      %282 = vmatprep.subr.mxu0 0.0
      %283 = vmatpush1.msra.mxu0 0.0
      %284 = vmatprep.subr.mxu0 0.0
      %285 = vmatpush1.msra.mxu0 0.0
      %286 = vmatprep.subr.mxu0 0.0
      %287 = vmatpush1.msra.mxu0 0.0
      %288 = vmatprep.subr.mxu0 0.0
      %289 = vmatpush1.msra.mxu0 0.0
      %290 = vmatprep.subr.mxu0 0.0
      %291 = vmatpush1.msra.mxu0 0.0
      %292 = vmatprep.subr.mxu0 0.0
      %293 = vmatpush1.msra.mxu0 0.0
      %294 = vmatprep.subr.mxu0 0.0
      %295 = vmatpush1.msra.mxu0 0.0
      %296 = vmatprep.subr.mxu0 0.0
      %297 = vmatpush1.msra.mxu0 0.0
      %298 = vmatprep.subr.mxu0 0.0
      %299 = vmatpush1.msra.mxu0 0.0
      %300 = vmatprep.subr.mxu0 0.0
      %301 = vmatpush1.msra.mxu0 0.0
      %302 = vmatprep.subr.mxu0 0.0
      %303 = vmatpush1.msra.mxu0 0.0
      %304 = vmatprep.subr.mxu0 0.0
      %305 = vmatpush1.msra.mxu0 0.0
      %306 = vmatprep.subr.mxu0 0.0
      %307 = vmatpush1.msra.mxu0 0.0
      %308 = vmatprep.subr.mxu0 0.0
      %309 = vmatpush1.msra.mxu0 0.0
      %310 = vmatprep.subr.mxu0 0.0
      %311 = vmatpush1.msra.mxu0 0.0
      %312 = vmatprep.subr.mxu0 0.0
      %313 = vmatpush1.msra.mxu0 0.0
      %314 = vmatprep.subr.mxu0 0.0
      %315 = vmatpush1.msra.mxu0 0.0
      %316 = vmatprep.subr.mxu0 0.0
      %317 = vmatpush1.msra.mxu0 0.0
      %318 = vmatprep.subr.mxu0 0.0
      %319 = vmatpush1.msra.mxu0 0.0
      %320 = vmatprep.subr.mxu0 0.0
      %321 = vmatpush1.msra.mxu0 0.0
      %322 = vmatprep.subr.mxu0 0.0
      %323 = vmatpush1.msra.mxu0 0.0
      %324 = vmatprep.subr.mxu0 0.0
      %325 = vmatpush1.msra.mxu0 0.0
      %326 = vmatprep.subr.mxu0 0.0
      %327 = vmatpush1.msra.mxu0 0.0
      %328 = vmatprep.subr.mxu0 0.0
      %329 = vmatpush1.msra.mxu0 0.0
      %330 = vmatprep.mubr.f32.mxu0 0.0
      %331 = vmatmul.mubr.f32.gmra.mrb[0].mxu0 %v259
      %v332 = vpop.f32.mrb[0].mxu0
      %v333 = vadd.f32 0.0, %v332
      %v334 = vpop.f32.mrb[0].mxu0
      %v335 = vadd.f32 0.0, %v334
      %336 = vdwg.mxu0
      %337 = vrot.lane.b32.xlu0 %v241, 19
      %v338 = vpop.permute.xlu0 %337
      %339 = vrot.lane.b32.xlu0 %v247, 19
      %v340 = vpop.permute.xlu0 %339
      %341 = vrot.lane.b32.xlu0 %v242, 19
      %v342 = vpop.permute.xlu0 %341
      %vm343 = vcmask 154624
      %v344 = vsel %vm343, %v338, %v340
      %v345 = vsel %vm343, %v340, %v342
      %v347 = vsel %vm257, %v240, 0
      %v349 = vsel %vm261, %v344, 0
      %v351 = vsel %vm261, %v345, 0
      %353 = vmatprep.subr.mxu0 %v351
      %354 = vmatpush1.msra.mxu0 %v349
      %355 = vmatprep.subr.mxu0 0.0
      %356 = vmatpush1.msra.mxu0 0.0
      %357 = vmatprep.subr.mxu0 0.0
      %358 = vmatpush1.msra.mxu0 0.0
      %359 = vmatprep.subr.mxu0 0.0
      %360 = vmatpush1.msra.mxu0 0.0
      %361 = vmatprep.subr.mxu0 0.0
      %362 = vmatpush1.msra.mxu0 0.0
      %363 = vmatprep.subr.mxu0 0.0
      %364 = vmatpush1.msra.mxu0 0.0
      %365 = vmatprep.subr.mxu0 0.0
      %366 = vmatpush1.msra.mxu0 0.0
      %367 = vmatprep.subr.mxu0 0.0
      %368 = vmatpush1.msra.mxu0 0.0
      %369 = vmatprep.subr.mxu0 0.0
      %370 = vmatpush1.msra.mxu0 0.0
      %371 = vmatprep.subr.mxu0 0.0
      %372 = vmatpush1.msra.mxu0 0.0
      %373 = vmatprep.subr.mxu0 0.0
      %374 = vmatpush1.msra.mxu0 0.0
      %375 = vmatprep.subr.mxu0 0.0
      %376 = vmatpush1.msra.mxu0 0.0
      %377 = vmatprep.subr.mxu0 0.0
      %378 = vmatpush1.msra.mxu0 0.0
      %379 = vmatprep.subr.mxu0 0.0
      %380 = vmatpush1.msra.mxu0 0.0
      %381 = vmatprep.subr.mxu0 0.0
      %382 = vmatpush1.msra.mxu0 0.0
      %383 = vmatprep.subr.mxu0 0.0
      %384 = vmatpush1.msra.mxu0 0.0
      %385 = vmatprep.subr.mxu0 0.0
      %386 = vmatpush1.msra.mxu0 0.0
      %387 = vmatprep.subr.mxu0 0.0
      %388 = vmatpush1.msra.mxu0 0.0
      %389 = vmatprep.subr.mxu0 0.0
      %390 = vmatpush1.msra.mxu0 0.0
      %391 = vmatprep.subr.mxu0 0.0
      %392 = vmatpush1.msra.mxu0 0.0
      %393 = vmatprep.subr.mxu0 0.0
      %394 = vmatpush1.msra.mxu0 0.0
      %395 = vmatprep.subr.mxu0 0.0
      %396 = vmatpush1.msra.mxu0 0.0
      %397 = vmatprep.subr.mxu0 0.0
      %398 = vmatpush1.msra.mxu0 0.0
      %399 = vmatprep.subr.mxu0 0.0
      %400 = vmatpush1.msra.mxu0 0.0
      %401 = vmatprep.subr.mxu0 0.0
      %402 = vmatpush1.msra.mxu0 0.0
      %403 = vmatprep.subr.mxu0 0.0
      %404 = vmatpush1.msra.mxu0 0.0
      %405 = vmatprep.subr.mxu0 0.0
      %406 = vmatpush1.msra.mxu0 0.0
      %407 = vmatprep.subr.mxu0 0.0
      %408 = vmatpush1.msra.mxu0 0.0
      %409 = vmatprep.subr.mxu0 0.0
      %410 = vmatpush1.msra.mxu0 0.0
      %411 = vmatprep.subr.mxu0 0.0
      %412 = vmatpush1.msra.mxu0 0.0
      %413 = vmatprep.subr.mxu0 0.0
      %414 = vmatpush1.msra.mxu0 0.0
      %415 = vmatprep.subr.mxu0 0.0
      %416 = vmatpush1.msra.mxu0 0.0
      %417 = vmatprep.mubr.f32.mxu0 0.0
      %418 = vmatmul.mubr.f32.gmra.mrb[0].mxu0 %v347
      %v419 = vpop.f32.mrb[0].mxu0
      %v420 = vadd.f32 %v333, %v419
      %v421 = vpop.f32.mrb[0].mxu0
      %v422 = vadd.f32 %v335, %v421
      %423 = vdwg.mxu0
      %s424 = scalar_lea.vmem %s2, 16
      %v425 = vld [vmem:[%s424] sm:$0xff]
      %v426 = vld [vmem:[%s228] sm:$0xff]
      %v427 = vld [vmem:[%s228 + $0x8] sm:$0xf]
      %v430 = vcombine.high %v426, %v426
      %431 = vrot.lane.b32.xlu0 %v426, 17
      %v432 = vpop.permute.xlu0 %431
      %433 = vrot.lane.b32.xlu0 %v430, 17
      %v434 = vpop.permute.xlu0 %433
      %435 = vrot.lane.b32.xlu0 %v427, 17
      %v436 = vpop.permute.xlu0 %435
      %vm437 = vcmask 138240
      %v438 = vsel %vm437, %v432, %v434
      %v439 = vsel %vm437, %v434, %v436
      %v441 = vsel %vm257, %v425, 0
      %v443 = vsel %vm261, %v438, 0
      %v445 = vsel %vm261, %v439, 0
      %447 = vmatprep.subr.mxu0 %v445
      %448 = vmatpush1.msra.mxu0 %v443
      %449 = vmatprep.subr.mxu0 0.0
      %450 = vmatpush1.msra.mxu0 0.0
      %451 = vmatprep.subr.mxu0 0.0
      %452 = vmatpush1.msra.mxu0 0.0
      %453 = vmatprep.subr.mxu0 0.0
      %454 = vmatpush1.msra.mxu0 0.0
      %455 = vmatprep.subr.mxu0 0.0
      %456 = vmatpush1.msra.mxu0 0.0
      %457 = vmatprep.subr.mxu0 0.0
      %458 = vmatpush1.msra.mxu0 0.0
      %459 = vmatprep.subr.mxu0 0.0
      %460 = vmatpush1.msra.mxu0 0.0
      %461 = vmatprep.subr.mxu0 0.0
      %462 = vmatpush1.msra.mxu0 0.0
      %463 = vmatprep.subr.mxu0 0.0
      %464 = vmatpush1.msra.mxu0 0.0
      %465 = vmatprep.subr.mxu0 0.0
      %466 = vmatpush1.msra.mxu0 0.0
      %467 = vmatprep.subr.mxu0 0.0
      %468 = vmatpush1.msra.mxu0 0.0
      %469 = vmatprep.subr.mxu0 0.0
      %470 = vmatpush1.msra.mxu0 0.0
      %471 = vmatprep.subr.mxu0 0.0
      %472 = vmatpush1.msra.mxu0 0.0
      %473 = vmatprep.subr.mxu0 0.0
      %474 = vmatpush1.msra.mxu0 0.0
      %475 = vmatprep.subr.mxu0 0.0
      %476 = vmatpush1.msra.mxu0 0.0
      %477 = vmatprep.subr.mxu0 0.0
      %478 = vmatpush1.msra.mxu0 0.0
      %479 = vmatprep.subr.mxu0 0.0
      %480 = vmatpush1.msra.mxu0 0.0
      %481 = vmatprep.subr.mxu0 0.0
      %482 = vmatpush1.msra.mxu0 0.0
      %483 = vmatprep.subr.mxu0 0.0
      %484 = vmatpush1.msra.mxu0 0.0
      %485 = vmatprep.subr.mxu0 0.0
      %486 = vmatpush1.msra.mxu0 0.0
      %487 = vmatprep.subr.mxu0 0.0
      %488 = vmatpush1.msra.mxu0 0.0
      %489 = vmatprep.subr.mxu0 0.0
      %490 = vmatpush1.msra.mxu0 0.0
      %491 = vmatprep.subr.mxu0 0.0
      %492 = vmatpush1.msra.mxu0 0.0
      %493 = vmatprep.subr.mxu0 0.0
      %494 = vmatpush1.msra.mxu0 0.0
      %495 = vmatprep.subr.mxu0 0.0
      %496 = vmatpush1.msra.mxu0 0.0
      %497 = vmatprep.subr.mxu0 0.0
      %498 = vmatpush1.msra.mxu0 0.0
      %499 = vmatprep.subr.mxu0 0.0
      %500 = vmatpush1.msra.mxu0 0.0
      %501 = vmatprep.subr.mxu0 0.0
      %502 = vmatpush1.msra.mxu0 0.0
      %503 = vmatprep.subr.mxu0 0.0
      %504 = vmatpush1.msra.mxu0 0.0
      %505 = vmatprep.subr.mxu0 0.0
      %506 = vmatpush1.msra.mxu0 0.0
      %507 = vmatprep.subr.mxu0 0.0
      %508 = vmatpush1.msra.mxu0 0.0
      %509 = vmatprep.subr.mxu0 0.0
      %510 = vmatpush1.msra.mxu0 0.0
      %511 = vmatprep.mubr.f32.mxu0 0.0
      %512 = vmatmul.mubr.f32.gmra.mrb[0].mxu0 %v441
      %v513 = vpop.f32.mrb[0].mxu0
      %v514 = vadd.f32 0.0, %v513
      %v515 = vpop.f32.mrb[0].mxu0
      %v516 = vadd.f32 0.0, %v515
      %517 = vdwg.mxu0
      %v518 = vadd.f32 %v420, %v514
      %v519 = vadd.f32 %v422, %v516
      %s520 = scalar_lea.vmem %s2, 24
      %v521 = vld [vmem:[%s520] sm:$0xff]
      %v522 = vld [vmem:[%s228] sm:$0xff]
      %v523 = vld [vmem:[%s228 + $0x8] sm:$0xf]
      %v526 = vcombine.high %v522, %v522
      %527 = vrot.lane.b32.xlu0 %v522, 1
      %v528 = vpop.permute.xlu0 %527
      %529 = vrot.lane.b32.xlu0 %v526, 1
      %v530 = vpop.permute.xlu0 %529
      %531 = vrot.lane.b32.xlu0 %v523, 1
      %v532 = vpop.permute.xlu0 %531
      %vm533 = vcmask 7168
      %v534 = vsel %vm533, %v528, %v530
      %v535 = vsel %vm533, %v530, %v532
      %v537 = vsel %vm257, %v521, 0
      %v539 = vsel %vm261, %v534, 0
      %v541 = vsel %vm261, %v535, 0
      %543 = vmatprep.subr.mxu0 %v541
      %544 = vmatpush1.msra.mxu0 %v539
      %545 = vmatprep.subr.mxu0 0.0
      %546 = vmatpush1.msra.mxu0 0.0
      %547 = vmatprep.subr.mxu0 0.0
      %548 = vmatpush1.msra.mxu0 0.0
      %549 = vmatprep.subr.mxu0 0.0
      %550 = vmatpush1.msra.mxu0 0.0
      %551 = vmatprep.subr.mxu0 0.0
      %552 = vmatpush1.msra.mxu0 0.0
      %553 = vmatprep.subr.mxu0 0.0
      %554 = vmatpush1.msra.mxu0 0.0
      %555 = vmatprep.subr.mxu0 0.0
      %556 = vmatpush1.msra.mxu0 0.0
      %557 = vmatprep.subr.mxu0 0.0
      %558 = vmatpush1.msra.mxu0 0.0
      %559 = vmatprep.subr.mxu0 0.0
      %560 = vmatpush1.msra.mxu0 0.0
      %561 = vmatprep.subr.mxu0 0.0
      %562 = vmatpush1.msra.mxu0 0.0
      %563 = vmatprep.subr.mxu0 0.0
      %564 = vmatpush1.msra.mxu0 0.0
      %565 = vmatprep.subr.mxu0 0.0
      %566 = vmatpush1.msra.mxu0 0.0
      %567 = vmatprep.subr.mxu0 0.0
      %568 = vmatpush1.msra.mxu0 0.0
      %569 = vmatprep.subr.mxu0 0.0
      %570 = vmatpush1.msra.mxu0 0.0
      %571 = vmatprep.subr.mxu0 0.0
      %572 = vmatpush1.msra.mxu0 0.0
      %573 = vmatprep.subr.mxu0 0.0
      %574 = vmatpush1.msra.mxu0 0.0
      %575 = vmatprep.subr.mxu0 0.0
      %576 = vmatpush1.msra.mxu0 0.0
      %577 = vmatprep.subr.mxu0 0.0
      %578 = vmatpush1.msra.mxu0 0.0
      %579 = vmatprep.subr.mxu0 0.0
      %580 = vmatpush1.msra.mxu0 0.0
      %581 = vmatprep.subr.mxu0 0.0
      %582 = vmatpush1.msra.mxu0 0.0
      %583 = vmatprep.subr.mxu0 0.0
      %584 = vmatpush1.msra.mxu0 0.0
      %585 = vmatprep.subr.mxu0 0.0
      %586 = vmatpush1.msra.mxu0 0.0
      %587 = vmatprep.subr.mxu0 0.0
      %588 = vmatpush1.msra.mxu0 0.0
      %589 = vmatprep.subr.mxu0 0.0
      %590 = vmatpush1.msra.mxu0 0.0
      %591 = vmatprep.subr.mxu0 0.0
      %592 = vmatpush1.msra.mxu0 0.0
      %593 = vmatprep.subr.mxu0 0.0
      %594 = vmatpush1.msra.mxu0 0.0
      %595 = vmatprep.subr.mxu0 0.0
      %596 = vmatpush1.msra.mxu0 0.0
      %597 = vmatprep.subr.mxu0 0.0
      %598 = vmatpush1.msra.mxu0 0.0
      %599 = vmatprep.subr.mxu0 0.0
      %600 = vmatpush1.msra.mxu0 0.0
      %601 = vmatprep.subr.mxu0 0.0
      %602 = vmatpush1.msra.mxu0 0.0
      %603 = vmatprep.subr.mxu0 0.0
      %604 = vmatpush1.msra.mxu0 0.0
      %605 = vmatprep.subr.mxu0 0.0
      %606 = vmatpush1.msra.mxu0 0.0
      %607 = vmatprep.mubr.f32.mxu0 0.0
      %608 = vmatmul.mubr.f32.gmra.mrb[0].mxu0 %v537
      %v609 = vpop.f32.mrb[0].mxu0
      %v610 = vadd.f32 0.0, %v609
      %v611 = vpop.f32.mrb[0].mxu0
      %v612 = vadd.f32 0.0, %v611
      %613 = vdwg.mxu0
      %v614 = vadd.f32 %v518, %v610
      %v615 = vadd.f32 %v519, %v612
      %s616 = scalar_lea.vmem %s2, 32
      %v617 = vld [vmem:[%s616] sm:$0xff]
      %v618 = vld [vmem:[%s228 + $0x4] sm:$0xff]
      %v620 = vcombine.high %v618, %v618
      %v622 = vsel %vm257, %v617, 0
      %v624 = vsel %vm261, %v618, 0
      %v626 = vsel %vm261, %v620, 0
      %628 = vmatprep.subr.mxu0 %v626
      %629 = vmatpush1.msra.mxu0 %v624
      %630 = vmatprep.subr.mxu0 0.0
      %631 = vmatpush1.msra.mxu0 0.0
      %632 = vmatprep.subr.mxu0 0.0
      %633 = vmatpush1.msra.mxu0 0.0
      %634 = vmatprep.subr.mxu0 0.0
      %635 = vmatpush1.msra.mxu0 0.0
      %636 = vmatprep.subr.mxu0 0.0
      %637 = vmatpush1.msra.mxu0 0.0
      %638 = vmatprep.subr.mxu0 0.0
      %639 = vmatpush1.msra.mxu0 0.0
      %640 = vmatprep.subr.mxu0 0.0
      %641 = vmatpush1.msra.mxu0 0.0
      %642 = vmatprep.subr.mxu0 0.0
      %643 = vmatpush1.msra.mxu0 0.0
      %644 = vmatprep.subr.mxu0 0.0
      %645 = vmatpush1.msra.mxu0 0.0
      %646 = vmatprep.subr.mxu0 0.0
      %647 = vmatpush1.msra.mxu0 0.0
      %648 = vmatprep.subr.mxu0 0.0
      %649 = vmatpush1.msra.mxu0 0.0
      %650 = vmatprep.subr.mxu0 0.0
      %651 = vmatpush1.msra.mxu0 0.0
      %652 = vmatprep.subr.mxu0 0.0
      %653 = vmatpush1.msra.mxu0 0.0
      %654 = vmatprep.subr.mxu0 0.0
      %655 = vmatpush1.msra.mxu0 0.0
      %656 = vmatprep.subr.mxu0 0.0
      %657 = vmatpush1.msra.mxu0 0.0
      %658 = vmatprep.subr.mxu0 0.0
      %659 = vmatpush1.msra.mxu0 0.0
      %660 = vmatprep.subr.mxu0 0.0
      %661 = vmatpush1.msra.mxu0 0.0
      %662 = vmatprep.subr.mxu0 0.0
      %663 = vmatpush1.msra.mxu0 0.0
      %664 = vmatprep.subr.mxu0 0.0
      %665 = vmatpush1.msra.mxu0 0.0
      %666 = vmatprep.subr.mxu0 0.0
      %667 = vmatpush1.msra.mxu0 0.0
      %668 = vmatprep.subr.mxu0 0.0
      %669 = vmatpush1.msra.mxu0 0.0
      %670 = vmatprep.subr.mxu0 0.0
      %671 = vmatpush1.msra.mxu0 0.0
      %672 = vmatprep.subr.mxu0 0.0
      %673 = vmatpush1.msra.mxu0 0.0
      %674 = vmatprep.subr.mxu0 0.0
      %675 = vmatpush1.msra.mxu0 0.0
      %676 = vmatprep.subr.mxu0 0.0
      %677 = vmatpush1.msra.mxu0 0.0
      %678 = vmatprep.subr.mxu0 0.0
      %679 = vmatpush1.msra.mxu0 0.0
      %680 = vmatprep.subr.mxu0 0.0
      %681 = vmatpush1.msra.mxu0 0.0
      %682 = vmatprep.subr.mxu0 0.0
      %683 = vmatpush1.msra.mxu0 0.0
      %684 = vmatprep.subr.mxu0 0.0
      %685 = vmatpush1.msra.mxu0 0.0
      %686 = vmatprep.subr.mxu0 0.0
      %687 = vmatpush1.msra.mxu0 0.0
      %688 = vmatprep.subr.mxu0 0.0
      %689 = vmatpush1.msra.mxu0 0.0
      %690 = vmatprep.subr.mxu0 0.0
      %691 = vmatpush1.msra.mxu0 0.0
      %692 = vmatprep.mubr.f32.mxu0 0.0
      %693 = vmatmul.mubr.f32.gmra.mrb[0].mxu0 %v622
      %v694 = vpop.f32.mrb[0].mxu0
      %v695 = vadd.f32 0.0, %v694
      %v696 = vpop.f32.mrb[0].mxu0
      %v697 = vadd.f32 0.0, %v696
      %698 = vdwg.mxu0
      %v699 = vadd.f32 %v614, %v695
      %v700 = vadd.f32 %v615, %v697
      %s701 = scalar_lea.vmem %s2, 40
      %v702 = vld [vmem:[%s701] sm:$0xff]
      %v703 = vld [vmem:[%s228 + $0x4] sm:$0xff]
      %v704 = vld [vmem:[%s228 + $0xc] sm:$0xf]
      %v707 = vcombine.high %v703, %v703
      %708 = vrot.lane.b32.xlu0 %v703, 127
      %v709 = vpop.permute.xlu0 %708
      %710 = vrot.lane.b32.xlu0 %v707, 127
      %v711 = vpop.permute.xlu0 %710
      %712 = vrot.lane.b32.xlu0 %v704, 127
      %v713 = vpop.permute.xlu0 %712
      %vm714 = vcmask 1039360
      %v715 = vsel %vm714, %v709, %v711
      %v716 = vsel %vm714, %v711, %v713
      %v718 = vsel %vm257, %v702, 0
      %v720 = vsel %vm261, %v715, 0
      %v722 = vsel %vm261, %v716, 0
      %724 = vmatprep.subr.mxu0 %v722
      %725 = vmatpush1.msra.mxu0 %v720
      %726 = vmatprep.subr.mxu0 0.0
      %727 = vmatpush1.msra.mxu0 0.0
      %728 = vmatprep.subr.mxu0 0.0
      %729 = vmatpush1.msra.mxu0 0.0
      %730 = vmatprep.subr.mxu0 0.0
      %731 = vmatpush1.msra.mxu0 0.0
      %732 = vmatprep.subr.mxu0 0.0
      %733 = vmatpush1.msra.mxu0 0.0
      %734 = vmatprep.subr.mxu0 0.0
      %735 = vmatpush1.msra.mxu0 0.0
      %736 = vmatprep.subr.mxu0 0.0
      %737 = vmatpush1.msra.mxu0 0.0
      %738 = vmatprep.subr.mxu0 0.0
      %739 = vmatpush1.msra.mxu0 0.0
      %740 = vmatprep.subr.mxu0 0.0
      %741 = vmatpush1.msra.mxu0 0.0
      %742 = vmatprep.subr.mxu0 0.0
      %743 = vmatpush1.msra.mxu0 0.0
      %744 = vmatprep.subr.mxu0 0.0
      %745 = vmatpush1.msra.mxu0 0.0
      %746 = vmatprep.subr.mxu0 0.0
      %747 = vmatpush1.msra.mxu0 0.0
      %748 = vmatprep.subr.mxu0 0.0
      %749 = vmatpush1.msra.mxu0 0.0
      %750 = vmatprep.subr.mxu0 0.0
      %751 = vmatpush1.msra.mxu0 0.0
      %752 = vmatprep.subr.mxu0 0.0
      %753 = vmatpush1.msra.mxu0 0.0
      %754 = vmatprep.subr.mxu0 0.0
      %755 = vmatpush1.msra.mxu0 0.0
      %756 = vmatprep.subr.mxu0 0.0
      %757 = vmatpush1.msra.mxu0 0.0
      %758 = vmatprep.subr.mxu0 0.0
      %759 = vmatpush1.msra.mxu0 0.0
      %760 = vmatprep.subr.mxu0 0.0
      %761 = vmatpush1.msra.mxu0 0.0
      %762 = vmatprep.subr.mxu0 0.0
      %763 = vmatpush1.msra.mxu0 0.0
      %764 = vmatprep.subr.mxu0 0.0
      %765 = vmatpush1.msra.mxu0 0.0
      %766 = vmatprep.subr.mxu0 0.0
      %767 = vmatpush1.msra.mxu0 0.0
      %768 = vmatprep.subr.mxu0 0.0
      %769 = vmatpush1.msra.mxu0 0.0
      %770 = vmatprep.subr.mxu0 0.0
      %771 = vmatpush1.msra.mxu0 0.0
      %772 = vmatprep.subr.mxu0 0.0
      %773 = vmatpush1.msra.mxu0 0.0
      %774 = vmatprep.subr.mxu0 0.0
      %775 = vmatpush1.msra.mxu0 0.0
      %776 = vmatprep.subr.mxu0 0.0
      %777 = vmatpush1.msra.mxu0 0.0
      %778 = vmatprep.subr.mxu0 0.0
      %779 = vmatpush1.msra.mxu0 0.0
      %780 = vmatprep.subr.mxu0 0.0
      %781 = vmatpush1.msra.mxu0 0.0
      %782 = vmatprep.subr.mxu0 0.0
      %783 = vmatpush1.msra.mxu0 0.0
      %784 = vmatprep.subr.mxu0 0.0
      %785 = vmatpush1.msra.mxu0 0.0
      %786 = vmatprep.subr.mxu0 0.0
      %787 = vmatpush1.msra.mxu0 0.0
      %788 = vmatprep.mubr.f32.mxu0 0.0
      %789 = vmatmul.mubr.f32.gmra.mrb[0].mxu0 %v718
      %v790 = vpop.f32.mrb[0].mxu0
      %v791 = vadd.f32 0.0, %v790
      %v792 = vpop.f32.mrb[0].mxu0
      %v793 = vadd.f32 0.0, %v792
      %794 = vdwg.mxu0
      %v795 = vadd.f32 %v699, %v791
      %v796 = vadd.f32 %v700, %v793
      %s797 = scalar_lea.vmem %s2, 48
      %v798 = vld [vmem:[%s797] sm:$0xff]
      %v799 = vld [vmem:[%s228 + $0x4] sm:$0xff]
      %v800 = vld [vmem:[%s228 + $0xc] sm:$0xf]
      %v803 = vcombine.high %v799, %v799
      %804 = vrot.lane.b32.xlu0 %v799, 111
      %v805 = vpop.permute.xlu0 %804
      %806 = vrot.lane.b32.xlu0 %v803, 111
      %v807 = vpop.permute.xlu0 %806
      %808 = vrot.lane.b32.xlu0 %v800, 111
      %v809 = vpop.permute.xlu0 %808
      %vm810 = vcmask 908288
      %v811 = vsel %vm810, %v805, %v807
      %v812 = vsel %vm810, %v807, %v809
      %v814 = vsel %vm257, %v798, 0
      %v816 = vsel %vm261, %v811, 0
      %v818 = vsel %vm261, %v812, 0
      %820 = vmatprep.subr.mxu0 %v818
      %821 = vmatpush1.msra.mxu0 %v816
      %822 = vmatprep.subr.mxu0 0.0
      %823 = vmatpush1.msra.mxu0 0.0
      %824 = vmatprep.subr.mxu0 0.0
      %825 = vmatpush1.msra.mxu0 0.0
      %826 = vmatprep.subr.mxu0 0.0
      %827 = vmatpush1.msra.mxu0 0.0
      %828 = vmatprep.subr.mxu0 0.0
      %829 = vmatpush1.msra.mxu0 0.0
      %830 = vmatprep.subr.mxu0 0.0
      %831 = vmatpush1.msra.mxu0 0.0
      %832 = vmatprep.subr.mxu0 0.0
      %833 = vmatpush1.msra.mxu0 0.0
      %834 = vmatprep.subr.mxu0 0.0
      %835 = vmatpush1.msra.mxu0 0.0
      %836 = vmatprep.subr.mxu0 0.0
      %837 = vmatpush1.msra.mxu0 0.0
      %838 = vmatprep.subr.mxu0 0.0
      %839 = vmatpush1.msra.mxu0 0.0
      %840 = vmatprep.subr.mxu0 0.0
      %841 = vmatpush1.msra.mxu0 0.0
      %842 = vmatprep.subr.mxu0 0.0
      %843 = vmatpush1.msra.mxu0 0.0
      %844 = vmatprep.subr.mxu0 0.0
      %845 = vmatpush1.msra.mxu0 0.0
      %846 = vmatprep.subr.mxu0 0.0
      %847 = vmatpush1.msra.mxu0 0.0
      %848 = vmatprep.subr.mxu0 0.0
      %849 = vmatpush1.msra.mxu0 0.0
      %850 = vmatprep.subr.mxu0 0.0
      %851 = vmatpush1.msra.mxu0 0.0
      %852 = vmatprep.subr.mxu0 0.0
      %853 = vmatpush1.msra.mxu0 0.0
      %854 = vmatprep.subr.mxu0 0.0
      %855 = vmatpush1.msra.mxu0 0.0
      %856 = vmatprep.subr.mxu0 0.0
      %857 = vmatpush1.msra.mxu0 0.0
      %858 = vmatprep.subr.mxu0 0.0
      %859 = vmatpush1.msra.mxu0 0.0
      %860 = vmatprep.subr.mxu0 0.0
      %861 = vmatpush1.msra.mxu0 0.0
      %862 = vmatprep.subr.mxu0 0.0
      %863 = vmatpush1.msra.mxu0 0.0
      %864 = vmatprep.subr.mxu0 0.0
      %865 = vmatpush1.msra.mxu0 0.0
      %866 = vmatprep.subr.mxu0 0.0
      %867 = vmatpush1.msra.mxu0 0.0
      %868 = vmatprep.subr.mxu0 0.0
      %869 = vmatpush1.msra.mxu0 0.0
      %870 = vmatprep.subr.mxu0 0.0
      %871 = vmatpush1.msra.mxu0 0.0
      %872 = vmatprep.subr.mxu0 0.0
      %873 = vmatpush1.msra.mxu0 0.0
      %874 = vmatprep.subr.mxu0 0.0
      %875 = vmatpush1.msra.mxu0 0.0
      %876 = vmatprep.subr.mxu0 0.0
      %877 = vmatpush1.msra.mxu0 0.0
      %878 = vmatprep.subr.mxu0 0.0
      %879 = vmatpush1.msra.mxu0 0.0
      %880 = vmatprep.subr.mxu0 0.0
      %881 = vmatpush1.msra.mxu0 0.0
      %882 = vmatprep.subr.mxu0 0.0
      %883 = vmatpush1.msra.mxu0 0.0
      %884 = vmatprep.mubr.f32.mxu0 0.0
      %885 = vmatmul.mubr.f32.gmra.mrb[0].mxu0 %v814
      %v886 = vpop.f32.mrb[0].mxu0
      %v887 = vadd.f32 0.0, %v886
      %v888 = vpop.f32.mrb[0].mxu0
      %v889 = vadd.f32 0.0, %v888
      %890 = vdwg.mxu0
      %v891 = vadd.f32 %v795, %v887
      %v892 = vadd.f32 %v796, %v889
      %s893 = scalar_lea.vmem %s2, 56
      %v894 = vld [vmem:[%s893] sm:$0xff]
      %v895 = vld [vmem:[%s228 + $0x4] sm:$0xff]
      %v896 = vld [vmem:[%s228 + $0xc] sm:$0xf]
      %v899 = vcombine.high %v895, %v895
      %900 = vrot.lane.b32.xlu0 %v895, 110
      %v901 = vpop.permute.xlu0 %900
      %902 = vrot.lane.b32.xlu0 %v899, 110
      %v903 = vpop.permute.xlu0 %902
      %904 = vrot.lane.b32.xlu0 %v896, 110
      %v905 = vpop.permute.xlu0 %904
      %vm906 = vcmask 900096
      %v907 = vsel %vm906, %v901, %v903
      %v908 = vsel %vm906, %v903, %v905
      %v910 = vsel %vm257, %v894, 0
      %v912 = vsel %vm261, %v907, 0
      %v914 = vsel %vm261, %v908, 0
      %916 = vmatprep.subr.mxu0 %v914
      %917 = vmatpush1.msra.mxu0 %v912
      %918 = vmatprep.subr.mxu0 0.0
      %919 = vmatpush1.msra.mxu0 0.0
      %920 = vmatprep.subr.mxu0 0.0
      %921 = vmatpush1.msra.mxu0 0.0
      %922 = vmatprep.subr.mxu0 0.0
      %923 = vmatpush1.msra.mxu0 0.0
      %924 = vmatprep.subr.mxu0 0.0
      %925 = vmatpush1.msra.mxu0 0.0
      %926 = vmatprep.subr.mxu0 0.0
      %927 = vmatpush1.msra.mxu0 0.0
      %928 = vmatprep.subr.mxu0 0.0
      %929 = vmatpush1.msra.mxu0 0.0
      %930 = vmatprep.subr.mxu0 0.0
      %931 = vmatpush1.msra.mxu0 0.0
      %932 = vmatprep.subr.mxu0 0.0
      %933 = vmatpush1.msra.mxu0 0.0
      %934 = vmatprep.subr.mxu0 0.0
      %935 = vmatpush1.msra.mxu0 0.0
      %936 = vmatprep.subr.mxu0 0.0
      %937 = vmatpush1.msra.mxu0 0.0
      %938 = vmatprep.subr.mxu0 0.0
      %939 = vmatpush1.msra.mxu0 0.0
      %940 = vmatprep.subr.mxu0 0.0
      %941 = vmatpush1.msra.mxu0 0.0
      %942 = vmatprep.subr.mxu0 0.0
      %943 = vmatpush1.msra.mxu0 0.0
      %944 = vmatprep.subr.mxu0 0.0
      %945 = vmatpush1.msra.mxu0 0.0
      %946 = vmatprep.subr.mxu0 0.0
      %947 = vmatpush1.msra.mxu0 0.0
      %948 = vmatprep.subr.mxu0 0.0
      %949 = vmatpush1.msra.mxu0 0.0
      %950 = vmatprep.subr.mxu0 0.0
      %951 = vmatpush1.msra.mxu0 0.0
      %952 = vmatprep.subr.mxu0 0.0
      %953 = vmatpush1.msra.mxu0 0.0
      %954 = vmatprep.subr.mxu0 0.0
      %955 = vmatpush1.msra.mxu0 0.0
      %956 = vmatprep.subr.mxu0 0.0
      %957 = vmatpush1.msra.mxu0 0.0
      %958 = vmatprep.subr.mxu0 0.0
      %959 = vmatpush1.msra.mxu0 0.0
      %960 = vmatprep.subr.mxu0 0.0
      %961 = vmatpush1.msra.mxu0 0.0
      %962 = vmatprep.subr.mxu0 0.0
      %963 = vmatpush1.msra.mxu0 0.0
      %964 = vmatprep.subr.mxu0 0.0
      %965 = vmatpush1.msra.mxu0 0.0
      %966 = vmatprep.subr.mxu0 0.0
      %967 = vmatpush1.msra.mxu0 0.0
      %968 = vmatprep.subr.mxu0 0.0
      %969 = vmatpush1.msra.mxu0 0.0
      %970 = vmatprep.subr.mxu0 0.0
      %971 = vmatpush1.msra.mxu0 0.0
      %972 = vmatprep.subr.mxu0 0.0
      %973 = vmatpush1.msra.mxu0 0.0
      %974 = vmatprep.subr.mxu0 0.0
      %975 = vmatpush1.msra.mxu0 0.0
      %976 = vmatprep.subr.mxu0 0.0
      %977 = vmatpush1.msra.mxu0 0.0
      %978 = vmatprep.subr.mxu0 0.0
      %979 = vmatpush1.msra.mxu0 0.0
      %980 = vmatprep.mubr.f32.mxu0 0.0
      %981 = vmatmul.mubr.f32.gmra.mrb[0].mxu0 %v910
      %v982 = vpop.f32.mrb[0].mxu0
      %v983 = vadd.f32 0.0, %v982
      %v984 = vpop.f32.mrb[0].mxu0
      %v985 = vadd.f32 0.0, %v984
      %986 = vdwg.mxu0
      %v987 = vadd.f32 %v891, %v983
      %v988 = vadd.f32 %v892, %v985
      %s989 = scalar_lea.vmem %s2, 64
      %v990 = vld [vmem:[%s989] sm:$0xff]
      %v991 = vld [vmem:[%s228 + $0x4] sm:$0xff]
      %v992 = vld [vmem:[%s228 + $0xc] sm:$0xf]
      %v995 = vcombine.high %v991, %v991
      %996 = vrot.lane.b32.xlu0 %v991, 109
      %v997 = vpop.permute.xlu0 %996
      %998 = vrot.lane.b32.xlu0 %v995, 109
      %v999 = vpop.permute.xlu0 %998
      %1000 = vrot.lane.b32.xlu0 %v992, 109
      %v1001 = vpop.permute.xlu0 %1000
      %vm1002 = vcmask 891904
      %v1003 = vsel %vm1002, %v997, %v999
      %v1004 = vsel %vm1002, %v999, %v1001
      %v1006 = vsel %vm257, %v990, 0
      %v1008 = vsel %vm261, %v1003, 0
      %v1010 = vsel %vm261, %v1004, 0
      %1012 = vmatprep.subr.mxu0 %v1010
      %1013 = vmatpush1.msra.mxu0 %v1008
      %1014 = vmatprep.subr.mxu0 0.0
      %1015 = vmatpush1.msra.mxu0 0.0
      %1016 = vmatprep.subr.mxu0 0.0
      %1017 = vmatpush1.msra.mxu0 0.0
      %1018 = vmatprep.subr.mxu0 0.0
      %1019 = vmatpush1.msra.mxu0 0.0
      %1020 = vmatprep.subr.mxu0 0.0
      %1021 = vmatpush1.msra.mxu0 0.0
      %1022 = vmatprep.subr.mxu0 0.0
      %1023 = vmatpush1.msra.mxu0 0.0
      %1024 = vmatprep.subr.mxu0 0.0
      %1025 = vmatpush1.msra.mxu0 0.0
      %1026 = vmatprep.subr.mxu0 0.0
      %1027 = vmatpush1.msra.mxu0 0.0
      %1028 = vmatprep.subr.mxu0 0.0
      %1029 = vmatpush1.msra.mxu0 0.0
      %1030 = vmatprep.subr.mxu0 0.0
      %1031 = vmatpush1.msra.mxu0 0.0
      %1032 = vmatprep.subr.mxu0 0.0
      %1033 = vmatpush1.msra.mxu0 0.0
      %1034 = vmatprep.subr.mxu0 0.0
      %1035 = vmatpush1.msra.mxu0 0.0
      %1036 = vmatprep.subr.mxu0 0.0
      %1037 = vmatpush1.msra.mxu0 0.0
      %1038 = vmatprep.subr.mxu0 0.0
      %1039 = vmatpush1.msra.mxu0 0.0
      %1040 = vmatprep.subr.mxu0 0.0
      %1041 = vmatpush1.msra.mxu0 0.0
      %1042 = vmatprep.subr.mxu0 0.0
      %1043 = vmatpush1.msra.mxu0 0.0
      %1044 = vmatprep.subr.mxu0 0.0
      %1045 = vmatpush1.msra.mxu0 0.0
      %1046 = vmatprep.subr.mxu0 0.0
      %1047 = vmatpush1.msra.mxu0 0.0
      %1048 = vmatprep.subr.mxu0 0.0
      %1049 = vmatpush1.msra.mxu0 0.0
      %1050 = vmatprep.subr.mxu0 0.0
      %1051 = vmatpush1.msra.mxu0 0.0
      %1052 = vmatprep.subr.mxu0 0.0
      %1053 = vmatpush1.msra.mxu0 0.0
      %1054 = vmatprep.subr.mxu0 0.0
      %1055 = vmatpush1.msra.mxu0 0.0
      %1056 = vmatprep.subr.mxu0 0.0
      %1057 = vmatpush1.msra.mxu0 0.0
      %1058 = vmatprep.subr.mxu0 0.0
      %1059 = vmatpush1.msra.mxu0 0.0
      %1060 = vmatprep.subr.mxu0 0.0
      %1061 = vmatpush1.msra.mxu0 0.0
      %1062 = vmatprep.subr.mxu0 0.0
      %1063 = vmatpush1.msra.mxu0 0.0
      %1064 = vmatprep.subr.mxu0 0.0
      %1065 = vmatpush1.msra.mxu0 0.0
      %1066 = vmatprep.subr.mxu0 0.0
      %1067 = vmatpush1.msra.mxu0 0.0
      %1068 = vmatprep.subr.mxu0 0.0
      %1069 = vmatpush1.msra.mxu0 0.0
      %1070 = vmatprep.subr.mxu0 0.0
      %1071 = vmatpush1.msra.mxu0 0.0
      %1072 = vmatprep.subr.mxu0 0.0
      %1073 = vmatpush1.msra.mxu0 0.0
      %1074 = vmatprep.subr.mxu0 0.0
      %1075 = vmatpush1.msra.mxu0 0.0
      %1076 = vmatprep.mubr.f32.mxu0 0.0
      %1077 = vmatmul.mubr.f32.gmra.mrb[0].mxu0 %v1006
      %v1078 = vpop.f32.mrb[0].mxu0
      %v1079 = vadd.f32 0.0, %v1078
      %v1080 = vpop.f32.mrb[0].mxu0
      %v1081 = vadd.f32 0.0, %v1080
      %1082 = vdwg.mxu0
      %v1083 = vadd.f32 %v987, %v1079
      %v1084 = vadd.f32 %v988, %v1081
      %1085 = vst [vmem:[%s238] sm:$0xff] %v1083
      %1086 = vst [vmem:[%s238 + $0x8] sm:$0xff] %v1084
      %p1087 = scmp.eq.s32.totalorder %s17, 0
      // Predicated region
      $region33: #{conv_block_nested_forward.3} parent=31 // pred_check
        %p1088 = pneg %p1087
      $region34: #{conv_block_nested_forward.3} parent=31 // pred_check_branch
        %1090 = sbr.rel (%p1088) target = $region36
      $region35: #{conv_block_nested_forward.3} parent=31 // pred_region
        %1091 = vst.msk [vmem:[%s4] sm:$0xff] %vm533, 0.0
        %1092 = vst.msk [vmem:[%s5] sm:$0xff] %vm533, 0.0
      $region36: #{conv_block_nested_forward.3} parent=31 // pred_fallthru
        _
      %v1093 = vld [vmem:[%s232] sm:$0x3]
      %v1095 = vlaneseq
      %v1096 = vshrl.u32 %v1095, 7
      %v1097 = vsub.s32 0, %v1096
      %v1098 = vrot.slane %v1093, %v1097
      %v1099 = vlaneseq
      %v1100 = vshrl.u32 %v1099, 7
      %v1101 = vsub.s32 1, %v1100
      %v1102 = vrot.slane %v1093, %v1101
      %v1105 = vmul.f32 %v1083, %v1098
      %v1106 = vmul.f32 %v1084, %v1102
      %v1107 = vld [vmem:[%s4] sm:$0xff]
      %v1108 = vadd.f32 %v1105, %v1106
      %1109 = vadd.xlane.f32.xlu0 %v1108
      %v1110 = vpop.xlane.xlu0 %1109
      %v1111 = vadd.f32 %v1107, %v1110
      %1112 = vst.msk [vmem:[%s4] sm:$0xff] %vm533, %v1111
      %v1113 = vld [vmem:[%s5] sm:$0xff]
      %v1114 = vmul.f32 %v1105, %v1105
      %v1115 = vmul.f32 %v1106, %v1106
      %v1116 = vadd.f32 %v1114, %v1115
      %1117 = vadd.xlane.f32.xlu0 %v1116
      %v1118 = vpop.xlane.xlu0 %1117
      %v1119 = vadd.f32 %v1113, %v1118
      %1120 = vst.msk [vmem:[%s5] sm:$0xff] %vm533, %v1119
      %s1121 = smul.u32 2, %s17
      %p1122 = scmp.lt.s32.totalorder %s1121, 5
      %s1123 = scalar_select %p1122, %s1121, 5
      %s1124 = smul.addr %s1123, 8
      %s1125 = scalar_lea.vmem %s3, %s1124
      // Predicated region
      $region37: #{conv_block_nested_forward.3} parent=31 // pred_check
        %p1126 = pneg %p108
      $region38: #{conv_block_nested_forward.3} parent=31 // pred_check_branch
        %1128 = sbr.rel (%p1126) target = $region40
      $region39: #{conv_block_nested_forward.3} parent=31 // pred_region
        %s1129 = smul.u32 2, %s17
      $region40: #{conv_block_nested_forward.3} parent=31 // pred_fallthru
        _
      // Predicated region
      $region41: #{conv_block_nested_forward.3} parent=31 // pred_check
        %p1130 = pneg %p129
      $region42: #{conv_block_nested_forward.3} parent=31 // pred_check_branch
        %1132 = sbr.rel (%p1130) target = $region44
      $region43: #{conv_block_nested_forward.3} parent=31 // pred_region
        _
      $region44: #{conv_block_nested_forward.3} parent=31 // pred_fallthru
        _
      // Predicated region
      $region45: #{conv_block_nested_forward.3} parent=31 // pred_check
        %p1133 = pneg %p150
      $region46: #{conv_block_nested_forward.3} parent=31 // pred_check_branch
        %1135 = sbr.rel (%p1133) target = $region48
      $region47: #{conv_block_nested_forward.3} parent=31 // pred_region
        _
      $region48: #{conv_block_nested_forward.3} parent=31 // pred_fallthru
        _
      // Predicated region
      $region49: #{conv_block_nested_forward.3} parent=31 // pred_check
        %p1136 = pneg %p129
      $region50: #{conv_block_nested_forward.3} parent=31 // pred_check_branch
        %1138 = sbr.rel (%p1136) target = $region52
      $region51: #{conv_block_nested_forward.3} parent=31 // pred_region
        _
      $region52: #{conv_block_nested_forward.3} parent=31 // pred_fallthru
        _
      // Predicated region
      $region53: #{conv_block_nested_forward.3} parent=31 // pred_check
        %p1139 = pneg %p150
      $region54: #{conv_block_nested_forward.3} parent=31 // pred_check_branch
        %1141 = sbr.rel (%p1139) target = $region56
      $region55: #{conv_block_nested_forward.3} parent=31 // pred_region
        _
      $region56: #{conv_block_nested_forward.3} parent=31 // pred_fallthru
        _
    $region32: #{conv_block_nested_forward.3} parent=5 // pred_fallthru
      _
    %p1142 = scmp.le.s32.totalorder 2, %s12
    // Predicated region
    $region57: #{conv_block_nested_forward.3} parent=5 // pred_check
      %p1143 = pneg %p1142
    $region58: #{conv_block_nested_forward.3} parent=5 // pred_check_branch
      %1145 = sbr.rel (%p1143) target = $region60
    $region59: #{conv_block_nested_forward.3} parent=5 // pred_region
      %s1146 = ssub.s32 %s12, 2
      // Predicated region
      $region61: #{conv_block_nested_forward.3} parent=59 // pred_check
        %p1147 = pneg %p114
      $region62: #{conv_block_nested_forward.3} parent=59 // pred_check_branch
        %1149 = sbr.rel (%p1147) target = $region64
      $region63: #{conv_block_nested_forward.3} parent=59 // pred_region
        %s1150 = smul.u32 2, %s18
        %p1151 = scmp.lt.s32.totalorder %s1150, 5
        %s1152 = scalar_select %p1151, %s1150, 5
        %s1153 = smul.addr %s1152, 8
        %s1154 = scalar_lea.vmem %s3, %s1153
      $region64: #{conv_block_nested_forward.3} parent=59 // pred_fallthru
        _
    $region60: #{conv_block_nested_forward.3} parent=5 // pred_fallthru
      _
  $region6: #{conv_block_nested_forward.3} parent=0 // loop_footer
    %s16 = sadd.s32 1, %s12
  $region7: #{conv_block_nested_forward.3} parent=0 // loop_footer_branch
    %11 = sbr.rel target = $region3
  $region8: #{conv_block_nested_forward.3} parent=0 // loop_exit
    _

// kernel: conv_block_nested_forward.4
$region0: #{conv_block_nested_forward.4}
  #allocation0 [shape = 'u32[]', space=smem, size = 0x4, offset = 0x4, fixed_abs, tag = 'smem constant byte address 0x4 - core index']
  #allocation1 [shape = 'u32[144,128]{1,0:T(1,128)}', space=vmem, size = 0x12000, scoped, tag = 'internal scratch']
  #allocation2 [shape = 'f32[8,512]{1,0:T(8,128)}', space=vmem, size = 0x4000, scoped, tag = 'scratch operand']
  %s0 = inlined_call_operand.vmem [shape: f32[3,8,512], index: 0, kind: input, shape index: {}]
  %s1 = inlined_call_operand.vmem [shape: f32[3,1,512], index: 1, kind: input, shape index: {}]
  %s2 = inlined_call_operand.vmem [shape: f32[9,8,8], index: 2, kind: input, shape index: {}]
  %s3 = inlined_call_operand.vmem [shape: f32[8,1], index: 3, kind: input, shape index: {}]
  %s4 = inlined_call_operand.vmem [shape: f32[8,1], index: 4, kind: input, shape index: {}]
  %s5 = inlined_call_operand.vmem [shape: f32[8,768], index: 5, kind: output, shape index: {0}]
  %s6 = inlined_call_operand.vmem [shape: f32[8,1], index: 6, kind: output, shape index: {1}]
  %s7 = inlined_call_operand.vmem [shape: f32[8,1], index: 7, kind: output, shape index: {2}]
  %8 = xla_tuple %s5, %s6, %s7
  %s9 = sld [smem:[#allocation0]]
  $region73: #{conv_block_nested_forward.4} parent=0
    _
  %s11 = ssub.s32 1, %s9
  %s12 = scalar_select 0, %s11, %s9
  loop: start=0, step=1, limit=5
  $region2: #{conv_block_nested_forward.4} parent=0 // loop_pre_header
    _
  $region3: #{conv_block_nested_forward.4} parent=0 // loop_header
    %s14 = sphi 0, %s18
    %p15 = scmp.ge.s32.totalorder %s14, 5
    %s24 = sphi 0, %s26
    %s27 = sphi 0, %s24
    %s28 = sphi 0, %s27
    %s44 = sphi 0, %s28
    %s50 = sphi 0, %s52
    %s53 = sphi 0, %s50
    %s54 = sphi 0, %s53
    %s70 = sphi 0, %s54
    %s74 = sphi 0, %s74
    %s76 = sphi 0, %s74
    %s77 = sphi 0, %s76
    %s91 = sphi 0, %s77
    %s95 = sphi 0, %s95
    %s97 = sphi 0, %s95
    %s98 = sphi 0, %s97
    %s112 = sphi 0, %s98
    %s116 = sphi 0, %s116
    %s118 = sphi 0, %s116
    %s119 = sphi 0, %s118
    %s133 = sphi 0, %s119
    %s139 = sphi 0, %s141
    %s142 = sphi 0, %s139
    %s143 = sphi 0, %s142
    %s159 = sphi 0, %s143
    %s163 = sphi 0, %s163
    %s165 = sphi 0, %s163
    %s166 = sphi 0, %s165
    %s180 = sphi 0, %s166
    %s184 = sphi 0, %s184
    %s186 = sphi 0, %s184
    %s187 = sphi 0, %s186
    %s201 = sphi 0, %s187
  $region4: #{conv_block_nested_forward.4} parent=0 // loop_header_branch
    %17 = sbr.rel (%p15) target = $region8
  $region5: #{conv_block_nested_forward.4} parent=0 // loop_body
    %s19 = ssub.s32 %s14, 1
    %s20 = ssub.s32 %s14, 2
    %s21 = sadd.s32 %s14, 1
    %s22 = ssub.s32 %s14, %s21
    %p23 = scmp.eq.s32.totalorder %s22, 0
    %s25 = sadd.s32 %s24, 1
    %s26 = scalar_select %p23, %s24, %s25
    %p29 = pneg %p23
    %p30 = scmp.eq.s32.totalorder %s14, 2
    %p31 = por %p29, %p30
    %p32 = scmp.ne.s32.totalorder %s24, %s27
    %p33 = scmp.eq.s32.totalorder %s14, 0
    %p34 = por %p32, %p33
    %p35 = scmp.ne.s32.totalorder %s24, %s27
    %p36 = scmp.eq.s32.totalorder %s19, 2
    %p37 = por %p35, %p36
    %p38 = scmp.ne.s32.totalorder %s27, %s28
    %p39 = scmp.eq.s32.totalorder %s19, 0
    %p40 = por %p38, %p39
    %p41 = scmp.ne.s32.totalorder %s27, %s28
    %p42 = scmp.eq.s32.totalorder %s20, 2
    %p43 = por %p41, %p42
    %p45 = scmp.ne.s32.totalorder %s28, %s44
    %p46 = scmp.eq.s32.totalorder %s20, 0
    %p47 = por %p45, %p46
    %s48 = ssub.s32 %s14, %s21
    %p49 = scmp.eq.s32.totalorder %s48, 0
    %s51 = sadd.s32 %s50, 1
    %s52 = scalar_select %p49, %s50, %s51
    %p55 = pneg %p49
    %p56 = scmp.eq.s32.totalorder %s14, 2
    %p57 = por %p55, %p56
    %p58 = scmp.ne.s32.totalorder %s50, %s53
    %p59 = scmp.eq.s32.totalorder %s14, 0
    %p60 = por %p58, %p59
    %p61 = scmp.ne.s32.totalorder %s50, %s53
    %p62 = scmp.eq.s32.totalorder %s19, 2
    %p63 = por %p61, %p62
    %p64 = scmp.ne.s32.totalorder %s53, %s54
    %p65 = scmp.eq.s32.totalorder %s19, 0
    %p66 = por %p64, %p65
    %p67 = scmp.ne.s32.totalorder %s53, %s54
    %p68 = scmp.eq.s32.totalorder %s20, 2
    %p69 = por %p67, %p68
    %p71 = scmp.ne.s32.totalorder %s54, %s70
    %p72 = scmp.eq.s32.totalorder %s20, 0
    %p73 = por %p71, %p72
    %s75 = sadd.s32 %s74, 1
    %p78 = scmp.eq.s32.totalorder %s14, 2
    %p79 = scmp.ne.s32.totalorder %s74, %s76
    %p80 = scmp.eq.s32.totalorder %s14, 0
    %p81 = por %p79, %p80
    %p82 = scmp.ne.s32.totalorder %s74, %s76
    %p83 = scmp.eq.s32.totalorder %s19, 2
    %p84 = por %p82, %p83
    %p85 = scmp.ne.s32.totalorder %s76, %s77
    %p86 = scmp.eq.s32.totalorder %s19, 0
    %p87 = por %p85, %p86
    %p88 = scmp.ne.s32.totalorder %s76, %s77
    %p89 = scmp.eq.s32.totalorder %s20, 2
    %p90 = por %p88, %p89
    %p92 = scmp.ne.s32.totalorder %s77, %s91
    %p93 = scmp.eq.s32.totalorder %s20, 0
    %p94 = por %p92, %p93
    %s96 = sadd.s32 %s95, 1
    %p99 = scmp.eq.s32.totalorder %s14, 2
    %p100 = scmp.ne.s32.totalorder %s95, %s97
    %p101 = scmp.eq.s32.totalorder %s14, 0
    %p102 = por %p100, %p101
    %p103 = scmp.ne.s32.totalorder %s95, %s97
    %p104 = scmp.eq.s32.totalorder %s19, 2
    %p105 = por %p103, %p104
    %p106 = scmp.ne.s32.totalorder %s97, %s98
    %p107 = scmp.eq.s32.totalorder %s19, 0
    %p108 = por %p106, %p107
    %p109 = scmp.ne.s32.totalorder %s97, %s98
    %p110 = scmp.eq.s32.totalorder %s20, 2
    %p111 = por %p109, %p110
    %p113 = scmp.ne.s32.totalorder %s98, %s112
    %p114 = scmp.eq.s32.totalorder %s20, 0
    %p115 = por %p113, %p114
    %s117 = sadd.s32 %s116, 1
    %p120 = scmp.eq.s32.totalorder %s14, 2
    %p121 = scmp.ne.s32.totalorder %s116, %s118
    %p122 = scmp.eq.s32.totalorder %s14, 0
    %p123 = por %p121, %p122
    %p124 = scmp.ne.s32.totalorder %s116, %s118
    %p125 = scmp.eq.s32.totalorder %s19, 2
    %p126 = por %p124, %p125
    %p127 = scmp.ne.s32.totalorder %s118, %s119
    %p128 = scmp.eq.s32.totalorder %s19, 0
    %p129 = por %p127, %p128
    %p130 = scmp.ne.s32.totalorder %s118, %s119
    %p131 = scmp.eq.s32.totalorder %s20, 2
    %p132 = por %p130, %p131
    %p134 = scmp.ne.s32.totalorder %s119, %s133
    %p135 = scmp.eq.s32.totalorder %s20, 0
    %p136 = por %p134, %p135
    %s137 = ssub.s32 %s14, %s21
    %p138 = scmp.eq.s32.totalorder %s137, 0
    %s140 = sadd.s32 %s139, 1
    %s141 = scalar_select %p138, %s139, %s140
    %p144 = pneg %p138
    %p145 = scmp.eq.s32.totalorder %s14, 2
    %p146 = por %p144, %p145
    %p147 = scmp.ne.s32.totalorder %s139, %s142
    %p148 = scmp.eq.s32.totalorder %s14, 0
    %p149 = por %p147, %p148
    %p150 = scmp.ne.s32.totalorder %s139, %s142
    %p151 = scmp.eq.s32.totalorder %s19, 2
    %p152 = por %p150, %p151
    %p153 = scmp.ne.s32.totalorder %s142, %s143
    %p154 = scmp.eq.s32.totalorder %s19, 0
    %p155 = por %p153, %p154
    %p156 = scmp.ne.s32.totalorder %s142, %s143
    %p157 = scmp.eq.s32.totalorder %s20, 2
    %p158 = por %p156, %p157
    %p160 = scmp.ne.s32.totalorder %s143, %s159
    %p161 = scmp.eq.s32.totalorder %s20, 0
    %p162 = por %p160, %p161
    %s164 = sadd.s32 %s163, 1
    %p167 = scmp.eq.s32.totalorder %s14, 2
    %p168 = scmp.ne.s32.totalorder %s163, %s165
    %p169 = scmp.eq.s32.totalorder %s14, 0
    %p170 = por %p168, %p169
    %p171 = scmp.ne.s32.totalorder %s163, %s165
    %p172 = scmp.eq.s32.totalorder %s19, 2
    %p173 = por %p171, %p172
    %p174 = scmp.ne.s32.totalorder %s165, %s166
    %p175 = scmp.eq.s32.totalorder %s19, 0
    %p176 = por %p174, %p175
    %p177 = scmp.ne.s32.totalorder %s165, %s166
    %p178 = scmp.eq.s32.totalorder %s20, 2
    %p179 = por %p177, %p178
    %p181 = scmp.ne.s32.totalorder %s166, %s180
    %p182 = scmp.eq.s32.totalorder %s20, 0
    %p183 = por %p181, %p182
    %s185 = sadd.s32 %s184, 1
    %p188 = scmp.eq.s32.totalorder %s14, 2
    %p189 = scmp.ne.s32.totalorder %s184, %s186
    %p190 = scmp.eq.s32.totalorder %s14, 0
    %p191 = por %p189, %p190
    %p192 = scmp.ne.s32.totalorder %s184, %s186
    %p193 = scmp.eq.s32.totalorder %s19, 2
    %p194 = por %p192, %p193
    %p195 = scmp.ne.s32.totalorder %s186, %s187
    %p196 = scmp.eq.s32.totalorder %s19, 0
    %p197 = por %p195, %p196
    %p198 = scmp.ne.s32.totalorder %s186, %s187
    %p199 = scmp.eq.s32.totalorder %s20, 2
    %p200 = por %p198, %p199
    %p202 = scmp.ne.s32.totalorder %s187, %s201
    %p203 = scmp.eq.s32.totalorder %s20, 0
    %p204 = por %p202, %p203
    %p205 = scmp.le.s32.totalorder 1, %s14
    %p206 = scmp.lt.s32.totalorder %s14, 4
    %p207 = pnand %p205, %p206
    %p208 = pneg %p207
    // Predicated region
    $region9: #{conv_block_nested_forward.4} parent=5 // pred_check
      _
    $region10: #{conv_block_nested_forward.4} parent=5 // pred_check_branch
      %210 = sbr.rel (%p207) target = $region12
    $region11: #{conv_block_nested_forward.4} parent=5 // pred_region
      %s211 = ssub.s32 %s14, 1
      // Predicated region
      $region13: #{conv_block_nested_forward.4} parent=11 // pred_check
        %p212 = pneg %p87
      $region14: #{conv_block_nested_forward.4} parent=11 // pred_check_branch
        %214 = sbr.rel (%p212) target = $region16
      $region15: #{conv_block_nested_forward.4} parent=11 // pred_region
        _
      $region16: #{conv_block_nested_forward.4} parent=11 // pred_fallthru
        _
      // Predicated region
      $region17: #{conv_block_nested_forward.4} parent=11 // pred_check
        %p215 = pneg %p108
      $region18: #{conv_block_nested_forward.4} parent=11 // pred_check_branch
        %217 = sbr.rel (%p215) target = $region20
      $region19: #{conv_block_nested_forward.4} parent=11 // pred_region
        _
      $region20: #{conv_block_nested_forward.4} parent=11 // pred_fallthru
        _
      // Predicated region
      $region21: #{conv_block_nested_forward.4} parent=11 // pred_check
        %p218 = pneg %p129
      $region22: #{conv_block_nested_forward.4} parent=11 // pred_check_branch
        %220 = sbr.rel (%p218) target = $region24
      $region23: #{conv_block_nested_forward.4} parent=11 // pred_region
        _
      $region24: #{conv_block_nested_forward.4} parent=11 // pred_fallthru
        _
    $region12: #{conv_block_nested_forward.4} parent=5 // pred_fallthru
      _
    %p221 = scmp.lt.s32.totalorder %s14, 3
    // Predicated region
    $region25: #{conv_block_nested_forward.4} parent=5 // pred_check
      %p222 = pneg %p221
    $region26: #{conv_block_nested_forward.4} parent=5 // pred_check_branch
      %224 = sbr.rel (%p222) target = $region28
    $region27: #{conv_block_nested_forward.4} parent=5 // pred_region
      // Predicated region
      $region29: #{conv_block_nested_forward.4} parent=27 // pred_check
        %p225 = pneg %p34
      $region30: #{conv_block_nested_forward.4} parent=27 // pred_check_branch
        %227 = sbr.rel (%p225) target = $region32
      $region31: #{conv_block_nested_forward.4} parent=27 // pred_region
        %p228 = scmp.lt.s32.totalorder %s14, 2
        %s229 = scalar_select %p228, %s14, 2
        %s230 = smul.addr %s229, 4
        %s231 = smul.addr %s230, 8
        %s232 = scalar_lea.vmem %s0, %s231
      $region32: #{conv_block_nested_forward.4} parent=27 // pred_fallthru
        _
      // Predicated region
      $region33: #{conv_block_nested_forward.4} parent=27 // pred_check
        %p233 = pneg %p60
      $region34: #{conv_block_nested_forward.4} parent=27 // pred_check_branch
        %235 = sbr.rel (%p233) target = $region36
      $region35: #{conv_block_nested_forward.4} parent=27 // pred_region
        %p236 = scmp.lt.s32.totalorder %s14, 2
        %s237 = scalar_select %p236, %s14, 2
        %s238 = smul.addr %s237, 4
        %s239 = scalar_lea.vmem %s1, %s238
      $region36: #{conv_block_nested_forward.4} parent=27 // pred_fallthru
        _
    $region28: #{conv_block_nested_forward.4} parent=5 // pred_fallthru
      _
    %p240 = scmp.le.s32.totalorder 1, %s14
    %p241 = scmp.lt.s32.totalorder %s14, 4
    %p242 = pnand %p240, %p241
    %p243 = pneg %p242
    // Predicated region
    $region37: #{conv_block_nested_forward.4} parent=5 // pred_check
      _
    $region38: #{conv_block_nested_forward.4} parent=5 // pred_check_branch
      %245 = sbr.rel (%p242) target = $region40
    $region39: #{conv_block_nested_forward.4} parent=5 // pred_region
      %s246 = ssub.s32 %s14, 1
      %p247 = scmp.lt.s32.totalorder %s19, 2
      %s248 = scalar_select %p247, %s19, 2
      %s249 = smul.addr %s248, 4
      %s250 = smul.addr %s249, 8
      %s251 = scalar_lea.vmem %s0, %s250
      %p252 = pneg %p40
      %p253 = pneg %p37
      %p254 = scmp.lt.s32.totalorder %s19, 2
      %s255 = scalar_select %p254, %s19, 2
      %s256 = smul.addr %s255, 4
      %s257 = scalar_lea.vmem %s1, %s256
      %p258 = pneg %p66
      %p259 = pneg %p63
      %p260 = pneg %p87
      %p261 = pneg %p84
      %p262 = pneg %p108
      %p263 = pneg %p105
      %p264 = pneg %p129
      %p265 = pneg %p126
      %p266 = pneg %p155
      %p267 = pneg %p152
      %s268 = smul.u32 2, %s19
      %p269 = scmp.lt.s32.totalorder %s268, 5
      %s270 = scalar_select %p269, %s268, 5
      %s271 = smul.addr %s270, 8
      %s272 = scalar_lea.vmem %s5, %s271
      %p273 = pneg %p176
      %p274 = pneg %p173
      %p275 = pneg %p197
      %p276 = pneg %p194
      %p277 = scmp.lt.s32.totalorder %s19, 2
      %s278 = scalar_select %p277, %s19, 2
      %s279 = smul.addr %s278, 4
      %s280 = smul.addr %s279, 8
      %s281 = scalar_lea.vmem %s0, %s280
      %p282 = scmp.lt.s32.totalorder %s19, 2
      %s283 = scalar_select %p282, %s19, 2
      %s284 = smul.addr %s283, 4
      %s285 = scalar_lea.vmem %s1, %s284
      %s286 = smul.u32 2, %s19
      %p287 = scmp.lt.s32.totalorder %s286, 5
      %s288 = scalar_select %p287, %s286, 5
      %s289 = smul.addr %s288, 8
      %s290 = scalar_lea.vmem %s5, %s289
      %s291 = smul.u32 2, %s19
      %v292 = vld [vmem:[%s281] sm:$0xff]
      %v293 = vld [vmem:[%s281 + $0x8] sm:$0xff]
      %v294 = vld [vmem:[%s281 + $0x10] sm:$0xff]
      %v295 = vld [vmem:[%s281 + $0x18] sm:$0xff]
      %v296 = vld [vmem:[%s3] sm:$0xff]
      %298 = vset.pattern.permute.xlu0 0
      %299 = vperm.xlu0 %298, %v296
      %v300 = vpop.permute.xlu0 %299
      %v302 = vmul.f32 %v292, %v300
      %v303 = vmul.f32 %v293, %v300
      %v304 = vmul.f32 %v294, %v300
      %v305 = vmul.f32 %v295, %v300
      %v306 = vld [vmem:[%s4] sm:$0xff]
      %308 = vset.pattern.permute.xlu0 0
      %309 = vperm.xlu0 %308, %v306
      %v310 = vpop.permute.xlu0 %309
      %v312 = vadd.f32 %v302, %v310
      %v313 = vadd.f32 %v303, %v310
      %v314 = vadd.f32 %v304, %v310
      %v315 = vadd.f32 %v305, %v310
      %v316 = vmax.f32 %v312, 0.0
      %v317 = vmax.f32 %v313, 0.0
      %v318 = vmax.f32 %v314, 0.0
      %v319 = vmax.f32 %v315, 0.0
      %v320 = vld [vmem:[%s285] sm:$0xf]
      %v322 = vlaneseq
      %v323 = vshrl.u32 %v322, 7
      %v324 = vsub.s32 0, %v323
      %v325 = vrot.slane %v320, %v324
      %v326 = vlaneseq
      %v327 = vshrl.u32 %v326, 7
      %v328 = vsub.s32 1, %v327
      %v329 = vrot.slane %v320, %v328
      %v330 = vlaneseq
      %v331 = vshrl.u32 %v330, 7
      %v332 = vsub.s32 2, %v331
      %v333 = vrot.slane %v320, %v332
      %v334 = vlaneseq
      %v335 = vshrl.u32 %v334, 7
      %v336 = vsub.s32 3, %v335
      %v337 = vrot.slane %v320, %v336
      %v342 = vmul.f32 %v316, %v325
      %v343 = vmul.f32 %v317, %v329
      %v344 = vmul.f32 %v318, %v333
      %v345 = vmul.f32 %v319, %v337
      %346 = vst [vmem:[#allocation2] sm:$0xff] %v342
      %347 = vst [vmem:[#allocation2 + $0x8] sm:$0xff] %v343
      %348 = vst [vmem:[#allocation2 + $0x10] sm:$0xff] %v344
      %349 = vst [vmem:[#allocation2 + $0x18] sm:$0xff] %v345
      %v350 = vld [vmem:[%s2] sm:$0xff]
      %v351 = vld [vmem:[#allocation2] sm:$0xff]
      %v352 = vld [vmem:[#allocation2 + $0x8] sm:$0xff]
      %v353 = vld [vmem:[#allocation2 + $0x10] sm:$0xff]
      %s354 = scalar_lea.vmem %s2, 8
      %v355 = vld [vmem:[%s354] sm:$0xff]
      %359 = vrot.lane.b32.xlu0 %v351, 18
      %v360 = vpop.permute.xlu0 %359
      %361 = vrot.lane.b32.xlu0 %v352, 18
      %v362 = vpop.permute.xlu0 %361
      %363 = vrot.lane.b32.xlu0 %v353, 18
      %v364 = vpop.permute.xlu0 %363
      %vm365 = vcmask 146432
      %v366 = vsel %vm365, %v360, %v362
      %v367 = vsel %vm365, %v362, %v364
      %vm370 = vcmask 64512
      %v372 = vsel %vm370, %v355, 0
      %374 = vmatprep.subr.mxu0 %v367
      %375 = vmatpush1.msra.mxu0 %v366
      %376 = vmatprep.subr.mxu0 0.0
      %377 = vmatpush1.msra.mxu0 0.0
      %378 = vmatprep.subr.mxu0 0.0
      %379 = vmatpush1.msra.mxu0 0.0
      %380 = vmatprep.subr.mxu0 0.0
      %381 = vmatpush1.msra.mxu0 0.0
      %382 = vmatprep.subr.mxu0 0.0
      %383 = vmatpush1.msra.mxu0 0.0
      %384 = vmatprep.subr.mxu0 0.0
      %385 = vmatpush1.msra.mxu0 0.0
      %386 = vmatprep.subr.mxu0 0.0
      %387 = vmatpush1.msra.mxu0 0.0
      %388 = vmatprep.subr.mxu0 0.0
      %389 = vmatpush1.msra.mxu0 0.0
      %390 = vmatprep.subr.mxu0 0.0
      %391 = vmatpush1.msra.mxu0 0.0
      %392 = vmatprep.subr.mxu0 0.0
      %393 = vmatpush1.msra.mxu0 0.0
      %394 = vmatprep.subr.mxu0 0.0
      %395 = vmatpush1.msra.mxu0 0.0
      %396 = vmatprep.subr.mxu0 0.0
      %397 = vmatpush1.msra.mxu0 0.0
      %398 = vmatprep.subr.mxu0 0.0
      %399 = vmatpush1.msra.mxu0 0.0
      %400 = vmatprep.subr.mxu0 0.0
      %401 = vmatpush1.msra.mxu0 0.0
      %402 = vmatprep.subr.mxu0 0.0
      %403 = vmatpush1.msra.mxu0 0.0
      %404 = vmatprep.subr.mxu0 0.0
      %405 = vmatpush1.msra.mxu0 0.0
      %406 = vmatprep.subr.mxu0 0.0
      %407 = vmatpush1.msra.mxu0 0.0
      %408 = vmatprep.subr.mxu0 0.0
      %409 = vmatpush1.msra.mxu0 0.0
      %410 = vmatprep.subr.mxu0 0.0
      %411 = vmatpush1.msra.mxu0 0.0
      %412 = vmatprep.subr.mxu0 0.0
      %413 = vmatpush1.msra.mxu0 0.0
      %414 = vmatprep.subr.mxu0 0.0
      %415 = vmatpush1.msra.mxu0 0.0
      %416 = vmatprep.subr.mxu0 0.0
      %417 = vmatpush1.msra.mxu0 0.0
      %418 = vmatprep.subr.mxu0 0.0
      %419 = vmatpush1.msra.mxu0 0.0
      %420 = vmatprep.subr.mxu0 0.0
      %421 = vmatpush1.msra.mxu0 0.0
      %422 = vmatprep.subr.mxu0 0.0
      %423 = vmatpush1.msra.mxu0 0.0
      %424 = vmatprep.subr.mxu0 0.0
      %425 = vmatpush1.msra.mxu0 0.0
      %426 = vmatprep.subr.mxu0 0.0
      %427 = vmatpush1.msra.mxu0 0.0
      %428 = vmatprep.subr.mxu0 0.0
      %429 = vmatpush1.msra.mxu0 0.0
      %430 = vmatprep.subr.mxu0 0.0
      %431 = vmatpush1.msra.mxu0 0.0
      %432 = vmatprep.subr.mxu0 0.0
      %433 = vmatpush1.msra.mxu0 0.0
      %434 = vmatprep.subr.mxu0 0.0
      %435 = vmatpush1.msra.mxu0 0.0
      %436 = vmatprep.subr.mxu0 0.0
      %437 = vmatpush1.msra.mxu0 0.0
      %438 = vmatprep.mubr.f32.mxu0 0.0
      %439 = vmatmul.mubr.f32.gmra.mrb[0].mxu0 %v372
      %v440 = vpop.f32.mrb[0].mxu0
      %v441 = vadd.f32 0.0, %v440
      %v442 = vpop.f32.mrb[0].mxu0
      %v443 = vadd.f32 0.0, %v442
      %444 = vdwg.mxu0
      %445 = vrot.lane.b32.xlu0 %v351, 19
      %v446 = vpop.permute.xlu0 %445
      %447 = vrot.lane.b32.xlu0 %v352, 19
      %v448 = vpop.permute.xlu0 %447
      %449 = vrot.lane.b32.xlu0 %v353, 19
      %v450 = vpop.permute.xlu0 %449
      %vm451 = vcmask 154624
      %v452 = vsel %vm451, %v446, %v448
      %v453 = vsel %vm451, %v448, %v450
      %v457 = vsel %vm370, %v350, 0
      %459 = vmatprep.subr.mxu0 %v453
      %460 = vmatpush1.msra.mxu0 %v452
      %461 = vmatprep.subr.mxu0 0.0
      %462 = vmatpush1.msra.mxu0 0.0
      %463 = vmatprep.subr.mxu0 0.0
      %464 = vmatpush1.msra.mxu0 0.0
      %465 = vmatprep.subr.mxu0 0.0
      %466 = vmatpush1.msra.mxu0 0.0
      %467 = vmatprep.subr.mxu0 0.0
      %468 = vmatpush1.msra.mxu0 0.0
      %469 = vmatprep.subr.mxu0 0.0
      %470 = vmatpush1.msra.mxu0 0.0
      %471 = vmatprep.subr.mxu0 0.0
      %472 = vmatpush1.msra.mxu0 0.0
      %473 = vmatprep.subr.mxu0 0.0
      %474 = vmatpush1.msra.mxu0 0.0
      %475 = vmatprep.subr.mxu0 0.0
      %476 = vmatpush1.msra.mxu0 0.0
      %477 = vmatprep.subr.mxu0 0.0
      %478 = vmatpush1.msra.mxu0 0.0
      %479 = vmatprep.subr.mxu0 0.0
      %480 = vmatpush1.msra.mxu0 0.0
      %481 = vmatprep.subr.mxu0 0.0
      %482 = vmatpush1.msra.mxu0 0.0
      %483 = vmatprep.subr.mxu0 0.0
      %484 = vmatpush1.msra.mxu0 0.0
      %485 = vmatprep.subr.mxu0 0.0
      %486 = vmatpush1.msra.mxu0 0.0
      %487 = vmatprep.subr.mxu0 0.0
      %488 = vmatpush1.msra.mxu0 0.0
      %489 = vmatprep.subr.mxu0 0.0
      %490 = vmatpush1.msra.mxu0 0.0
      %491 = vmatprep.subr.mxu0 0.0
      %492 = vmatpush1.msra.mxu0 0.0
      %493 = vmatprep.subr.mxu0 0.0
      %494 = vmatpush1.msra.mxu0 0.0
      %495 = vmatprep.subr.mxu0 0.0
      %496 = vmatpush1.msra.mxu0 0.0
      %497 = vmatprep.subr.mxu0 0.0
      %498 = vmatpush1.msra.mxu0 0.0
      %499 = vmatprep.subr.mxu0 0.0
      %500 = vmatpush1.msra.mxu0 0.0
      %501 = vmatprep.subr.mxu0 0.0
      %502 = vmatpush1.msra.mxu0 0.0
      %503 = vmatprep.subr.mxu0 0.0
      %504 = vmatpush1.msra.mxu0 0.0
      %505 = vmatprep.subr.mxu0 0.0
      %506 = vmatpush1.msra.mxu0 0.0
      %507 = vmatprep.subr.mxu0 0.0
      %508 = vmatpush1.msra.mxu0 0.0
      %509 = vmatprep.subr.mxu0 0.0
      %510 = vmatpush1.msra.mxu0 0.0
      %511 = vmatprep.subr.mxu0 0.0
      %512 = vmatpush1.msra.mxu0 0.0
      %513 = vmatprep.subr.mxu0 0.0
      %514 = vmatpush1.msra.mxu0 0.0
      %515 = vmatprep.subr.mxu0 0.0
      %516 = vmatpush1.msra.mxu0 0.0
      %517 = vmatprep.subr.mxu0 0.0
      %518 = vmatpush1.msra.mxu0 0.0
      %519 = vmatprep.subr.mxu0 0.0
      %520 = vmatpush1.msra.mxu0 0.0
      %521 = vmatprep.subr.mxu0 0.0
      %522 = vmatpush1.msra.mxu0 0.0
      %523 = vmatprep.mubr.f32.mxu0 0.0
      %524 = vmatmul.mubr.f32.gmra.mrb[0].mxu0 %v457
      %v525 = vpop.f32.mrb[0].mxu0
      %v526 = vadd.f32 %v441, %v525
      %v527 = vpop.f32.mrb[0].mxu0
      %v528 = vadd.f32 %v443, %v527
      %529 = vdwg.mxu0
      %s530 = scalar_lea.vmem %s2, 16
      %v531 = vld [vmem:[%s530] sm:$0xff]
      %532 = vrot.lane.b32.xlu0 %v351, 17
      %v533 = vpop.permute.xlu0 %532
      %534 = vrot.lane.b32.xlu0 %v352, 17
      %v535 = vpop.permute.xlu0 %534
      %536 = vrot.lane.b32.xlu0 %v353, 17
      %v537 = vpop.permute.xlu0 %536
      %vm538 = vcmask 138240
      %v539 = vsel %vm538, %v533, %v535
      %v540 = vsel %vm538, %v535, %v537
      %v544 = vsel %vm370, %v531, 0
      %546 = vmatprep.subr.mxu0 %v540
      %547 = vmatpush1.msra.mxu0 %v539
      %548 = vmatprep.subr.mxu0 0.0
      %549 = vmatpush1.msra.mxu0 0.0
      %550 = vmatprep.subr.mxu0 0.0
      %551 = vmatpush1.msra.mxu0 0.0
      %552 = vmatprep.subr.mxu0 0.0
      %553 = vmatpush1.msra.mxu0 0.0
      %554 = vmatprep.subr.mxu0 0.0
      %555 = vmatpush1.msra.mxu0 0.0
      %556 = vmatprep.subr.mxu0 0.0
      %557 = vmatpush1.msra.mxu0 0.0
      %558 = vmatprep.subr.mxu0 0.0
      %559 = vmatpush1.msra.mxu0 0.0
      %560 = vmatprep.subr.mxu0 0.0
      %561 = vmatpush1.msra.mxu0 0.0
      %562 = vmatprep.subr.mxu0 0.0
      %563 = vmatpush1.msra.mxu0 0.0
      %564 = vmatprep.subr.mxu0 0.0
      %565 = vmatpush1.msra.mxu0 0.0
      %566 = vmatprep.subr.mxu0 0.0
      %567 = vmatpush1.msra.mxu0 0.0
      %568 = vmatprep.subr.mxu0 0.0
      %569 = vmatpush1.msra.mxu0 0.0
      %570 = vmatprep.subr.mxu0 0.0
      %571 = vmatpush1.msra.mxu0 0.0
      %572 = vmatprep.subr.mxu0 0.0
      %573 = vmatpush1.msra.mxu0 0.0
      %574 = vmatprep.subr.mxu0 0.0
      %575 = vmatpush1.msra.mxu0 0.0
      %576 = vmatprep.subr.mxu0 0.0
      %577 = vmatpush1.msra.mxu0 0.0
      %578 = vmatprep.subr.mxu0 0.0
      %579 = vmatpush1.msra.mxu0 0.0
      %580 = vmatprep.subr.mxu0 0.0
      %581 = vmatpush1.msra.mxu0 0.0
      %582 = vmatprep.subr.mxu0 0.0
      %583 = vmatpush1.msra.mxu0 0.0
      %584 = vmatprep.subr.mxu0 0.0
      %585 = vmatpush1.msra.mxu0 0.0
      %586 = vmatprep.subr.mxu0 0.0
      %587 = vmatpush1.msra.mxu0 0.0
      %588 = vmatprep.subr.mxu0 0.0
      %589 = vmatpush1.msra.mxu0 0.0
      %590 = vmatprep.subr.mxu0 0.0
      %591 = vmatpush1.msra.mxu0 0.0
      %592 = vmatprep.subr.mxu0 0.0
      %593 = vmatpush1.msra.mxu0 0.0
      %594 = vmatprep.subr.mxu0 0.0
      %595 = vmatpush1.msra.mxu0 0.0
      %596 = vmatprep.subr.mxu0 0.0
      %597 = vmatpush1.msra.mxu0 0.0
      %598 = vmatprep.subr.mxu0 0.0
      %599 = vmatpush1.msra.mxu0 0.0
      %600 = vmatprep.subr.mxu0 0.0
      %601 = vmatpush1.msra.mxu0 0.0
      %602 = vmatprep.subr.mxu0 0.0
      %603 = vmatpush1.msra.mxu0 0.0
      %604 = vmatprep.subr.mxu0 0.0
      %605 = vmatpush1.msra.mxu0 0.0
      %606 = vmatprep.subr.mxu0 0.0
      %607 = vmatpush1.msra.mxu0 0.0
      %608 = vmatprep.subr.mxu0 0.0
      %609 = vmatpush1.msra.mxu0 0.0
      %610 = vmatprep.mubr.f32.mxu0 0.0
      %611 = vmatmul.mubr.f32.gmra.mrb[0].mxu0 %v544
      %v612 = vpop.f32.mrb[0].mxu0
      %v613 = vadd.f32 0.0, %v612
      %v614 = vpop.f32.mrb[0].mxu0
      %v615 = vadd.f32 0.0, %v614
      %616 = vdwg.mxu0
      %v617 = vadd.f32 %v526, %v613
      %v618 = vadd.f32 %v528, %v615
      %s619 = scalar_lea.vmem %s2, 24
      %v620 = vld [vmem:[%s619] sm:$0xff]
      %621 = vrot.lane.b32.xlu0 %v351, 1
      %v622 = vpop.permute.xlu0 %621
      %623 = vrot.lane.b32.xlu0 %v352, 1
      %v624 = vpop.permute.xlu0 %623
      %625 = vrot.lane.b32.xlu0 %v353, 1
      %v626 = vpop.permute.xlu0 %625
      %vm627 = vcmask 7168
      %v628 = vsel %vm627, %v622, %v624
      %v629 = vsel %vm627, %v624, %v626
      %v633 = vsel %vm370, %v620, 0
      %635 = vmatprep.subr.mxu0 %v629
      %636 = vmatpush1.msra.mxu0 %v628
      %637 = vmatprep.subr.mxu0 0.0
      %638 = vmatpush1.msra.mxu0 0.0
      %639 = vmatprep.subr.mxu0 0.0
      %640 = vmatpush1.msra.mxu0 0.0
      %641 = vmatprep.subr.mxu0 0.0
      %642 = vmatpush1.msra.mxu0 0.0
      %643 = vmatprep.subr.mxu0 0.0
      %644 = vmatpush1.msra.mxu0 0.0
      %645 = vmatprep.subr.mxu0 0.0
      %646 = vmatpush1.msra.mxu0 0.0
      %647 = vmatprep.subr.mxu0 0.0
      %648 = vmatpush1.msra.mxu0 0.0
      %649 = vmatprep.subr.mxu0 0.0
      %650 = vmatpush1.msra.mxu0 0.0
      %651 = vmatprep.subr.mxu0 0.0
      %652 = vmatpush1.msra.mxu0 0.0
      %653 = vmatprep.subr.mxu0 0.0
      %654 = vmatpush1.msra.mxu0 0.0
      %655 = vmatprep.subr.mxu0 0.0
      %656 = vmatpush1.msra.mxu0 0.0
      %657 = vmatprep.subr.mxu0 0.0
      %658 = vmatpush1.msra.mxu0 0.0
      %659 = vmatprep.subr.mxu0 0.0
      %660 = vmatpush1.msra.mxu0 0.0
      %661 = vmatprep.subr.mxu0 0.0
      %662 = vmatpush1.msra.mxu0 0.0
      %663 = vmatprep.subr.mxu0 0.0
      %664 = vmatpush1.msra.mxu0 0.0
      %665 = vmatprep.subr.mxu0 0.0
      %666 = vmatpush1.msra.mxu0 0.0
      %667 = vmatprep.subr.mxu0 0.0
      %668 = vmatpush1.msra.mxu0 0.0
      %669 = vmatprep.subr.mxu0 0.0
      %670 = vmatpush1.msra.mxu0 0.0
      %671 = vmatprep.subr.mxu0 0.0
      %672 = vmatpush1.msra.mxu0 0.0
      %673 = vmatprep.subr.mxu0 0.0
      %674 = vmatpush1.msra.mxu0 0.0
      %675 = vmatprep.subr.mxu0 0.0
      %676 = vmatpush1.msra.mxu0 0.0
      %677 = vmatprep.subr.mxu0 0.0
      %678 = vmatpush1.msra.mxu0 0.0
      %679 = vmatprep.subr.mxu0 0.0
      %680 = vmatpush1.msra.mxu0 0.0
      %681 = vmatprep.subr.mxu0 0.0
      %682 = vmatpush1.msra.mxu0 0.0
      %683 = vmatprep.subr.mxu0 0.0
      %684 = vmatpush1.msra.mxu0 0.0
      %685 = vmatprep.subr.mxu0 0.0
      %686 = vmatpush1.msra.mxu0 0.0
      %687 = vmatprep.subr.mxu0 0.0
      %688 = vmatpush1.msra.mxu0 0.0
      %689 = vmatprep.subr.mxu0 0.0
      %690 = vmatpush1.msra.mxu0 0.0
      %691 = vmatprep.subr.mxu0 0.0
      %692 = vmatpush1.msra.mxu0 0.0
      %693 = vmatprep.subr.mxu0 0.0
      %694 = vmatpush1.msra.mxu0 0.0
      %695 = vmatprep.subr.mxu0 0.0
      %696 = vmatpush1.msra.mxu0 0.0
      %697 = vmatprep.subr.mxu0 0.0
      %698 = vmatpush1.msra.mxu0 0.0
      %699 = vmatprep.mubr.f32.mxu0 0.0
      %700 = vmatmul.mubr.f32.gmra.mrb[0].mxu0 %v633
      %v701 = vpop.f32.mrb[0].mxu0
      %v702 = vadd.f32 0.0, %v701
      %v703 = vpop.f32.mrb[0].mxu0
      %v704 = vadd.f32 0.0, %v703
      %705 = vdwg.mxu0
      %v706 = vadd.f32 %v617, %v702
      %v707 = vadd.f32 %v618, %v704
      %s708 = scalar_lea.vmem %s2, 32
      %v709 = vld [vmem:[%s708] sm:$0xff]
      %v711 = vsel %vm370, %v709, 0
      %713 = vmatprep.subr.mxu0 %v353
      %714 = vmatpush1.msra.mxu0 %v352
      %715 = vmatprep.subr.mxu0 0.0
      %716 = vmatpush1.msra.mxu0 0.0
      %717 = vmatprep.subr.mxu0 0.0
      %718 = vmatpush1.msra.mxu0 0.0
      %719 = vmatprep.subr.mxu0 0.0
      %720 = vmatpush1.msra.mxu0 0.0
      %721 = vmatprep.subr.mxu0 0.0
      %722 = vmatpush1.msra.mxu0 0.0
      %723 = vmatprep.subr.mxu0 0.0
      %724 = vmatpush1.msra.mxu0 0.0
      %725 = vmatprep.subr.mxu0 0.0
      %726 = vmatpush1.msra.mxu0 0.0
      %727 = vmatprep.subr.mxu0 0.0
      %728 = vmatpush1.msra.mxu0 0.0
      %729 = vmatprep.subr.mxu0 0.0
      %730 = vmatpush1.msra.mxu0 0.0
      %731 = vmatprep.subr.mxu0 0.0
      %732 = vmatpush1.msra.mxu0 0.0
      %733 = vmatprep.subr.mxu0 0.0
      %734 = vmatpush1.msra.mxu0 0.0
      %735 = vmatprep.subr.mxu0 0.0
      %736 = vmatpush1.msra.mxu0 0.0
      %737 = vmatprep.subr.mxu0 0.0
      %738 = vmatpush1.msra.mxu0 0.0
      %739 = vmatprep.subr.mxu0 0.0
      %740 = vmatpush1.msra.mxu0 0.0
      %741 = vmatprep.subr.mxu0 0.0
      %742 = vmatpush1.msra.mxu0 0.0
      %743 = vmatprep.subr.mxu0 0.0
      %744 = vmatpush1.msra.mxu0 0.0
      %745 = vmatprep.subr.mxu0 0.0
      %746 = vmatpush1.msra.mxu0 0.0
      %747 = vmatprep.subr.mxu0 0.0
      %748 = vmatpush1.msra.mxu0 0.0
      %749 = vmatprep.subr.mxu0 0.0
      %750 = vmatpush1.msra.mxu0 0.0
      %751 = vmatprep.subr.mxu0 0.0
      %752 = vmatpush1.msra.mxu0 0.0
      %753 = vmatprep.subr.mxu0 0.0
      %754 = vmatpush1.msra.mxu0 0.0
      %755 = vmatprep.subr.mxu0 0.0
      %756 = vmatpush1.msra.mxu0 0.0
      %757 = vmatprep.subr.mxu0 0.0
      %758 = vmatpush1.msra.mxu0 0.0
      %759 = vmatprep.subr.mxu0 0.0
      %760 = vmatpush1.msra.mxu0 0.0
      %761 = vmatprep.subr.mxu0 0.0
      %762 = vmatpush1.msra.mxu0 0.0
      %763 = vmatprep.subr.mxu0 0.0
      %764 = vmatpush1.msra.mxu0 0.0
      %765 = vmatprep.subr.mxu0 0.0
      %766 = vmatpush1.msra.mxu0 0.0
      %767 = vmatprep.subr.mxu0 0.0
      %768 = vmatpush1.msra.mxu0 0.0
      %769 = vmatprep.subr.mxu0 0.0
      %770 = vmatpush1.msra.mxu0 0.0
      %771 = vmatprep.subr.mxu0 0.0
      %772 = vmatpush1.msra.mxu0 0.0
      %773 = vmatprep.subr.mxu0 0.0
      %774 = vmatpush1.msra.mxu0 0.0
      %775 = vmatprep.subr.mxu0 0.0
      %776 = vmatpush1.msra.mxu0 0.0
      %777 = vmatprep.mubr.f32.mxu0 0.0
      %778 = vmatmul.mubr.f32.gmra.mrb[0].mxu0 %v711
      %v779 = vpop.f32.mrb[0].mxu0
      %v780 = vadd.f32 0.0, %v779
      %v781 = vpop.f32.mrb[0].mxu0
      %v782 = vadd.f32 0.0, %v781
      %783 = vdwg.mxu0
      %v784 = vadd.f32 %v706, %v780
      %v785 = vadd.f32 %v707, %v782
      %s786 = scalar_lea.vmem %s2, 40
      %v787 = vld [vmem:[%s786] sm:$0xff]
      %v788 = vld [vmem:[#allocation2 + $0x8] sm:$0xff]
      %v789 = vld [vmem:[#allocation2 + $0x10] sm:$0xff]
      %v790 = vld [vmem:[#allocation2 + $0x18] sm:$0xff]
      %794 = vrot.lane.b32.xlu0 %v788, 127
      %v795 = vpop.permute.xlu0 %794
      %796 = vrot.lane.b32.xlu0 %v789, 127
      %v797 = vpop.permute.xlu0 %796
      %798 = vrot.lane.b32.xlu0 %v790, 127
      %v799 = vpop.permute.xlu0 %798
      %vm800 = vcmask 1039360
      %v801 = vsel %vm800, %v795, %v797
      %v802 = vsel %vm800, %v797, %v799
      %v806 = vsel %vm370, %v787, 0
      %808 = vmatprep.subr.mxu0 %v802
      %809 = vmatpush1.msra.mxu0 %v801
      %810 = vmatprep.subr.mxu0 0.0
      %811 = vmatpush1.msra.mxu0 0.0
      %812 = vmatprep.subr.mxu0 0.0
      %813 = vmatpush1.msra.mxu0 0.0
      %814 = vmatprep.subr.mxu0 0.0
      %815 = vmatpush1.msra.mxu0 0.0
      %816 = vmatprep.subr.mxu0 0.0
      %817 = vmatpush1.msra.mxu0 0.0
      %818 = vmatprep.subr.mxu0 0.0
      %819 = vmatpush1.msra.mxu0 0.0
      %820 = vmatprep.subr.mxu0 0.0
      %821 = vmatpush1.msra.mxu0 0.0
      %822 = vmatprep.subr.mxu0 0.0
      %823 = vmatpush1.msra.mxu0 0.0
      %824 = vmatprep.subr.mxu0 0.0
      %825 = vmatpush1.msra.mxu0 0.0
      %826 = vmatprep.subr.mxu0 0.0
      %827 = vmatpush1.msra.mxu0 0.0
      %828 = vmatprep.subr.mxu0 0.0
      %829 = vmatpush1.msra.mxu0 0.0
      %830 = vmatprep.subr.mxu0 0.0
      %831 = vmatpush1.msra.mxu0 0.0
      %832 = vmatprep.subr.mxu0 0.0
      %833 = vmatpush1.msra.mxu0 0.0
      %834 = vmatprep.subr.mxu0 0.0
      %835 = vmatpush1.msra.mxu0 0.0
      %836 = vmatprep.subr.mxu0 0.0
      %837 = vmatpush1.msra.mxu0 0.0
      %838 = vmatprep.subr.mxu0 0.0
      %839 = vmatpush1.msra.mxu0 0.0
      %840 = vmatprep.subr.mxu0 0.0
      %841 = vmatpush1.msra.mxu0 0.0
      %842 = vmatprep.subr.mxu0 0.0
      %843 = vmatpush1.msra.mxu0 0.0
      %844 = vmatprep.subr.mxu0 0.0
      %845 = vmatpush1.msra.mxu0 0.0
      %846 = vmatprep.subr.mxu0 0.0
      %847 = vmatpush1.msra.mxu0 0.0
      %848 = vmatprep.subr.mxu0 0.0
      %849 = vmatpush1.msra.mxu0 0.0
      %850 = vmatprep.subr.mxu0 0.0
      %851 = vmatpush1.msra.mxu0 0.0
      %852 = vmatprep.subr.mxu0 0.0
      %853 = vmatpush1.msra.mxu0 0.0
      %854 = vmatprep.subr.mxu0 0.0
      %855 = vmatpush1.msra.mxu0 0.0
      %856 = vmatprep.subr.mxu0 0.0
      %857 = vmatpush1.msra.mxu0 0.0
      %858 = vmatprep.subr.mxu0 0.0
      %859 = vmatpush1.msra.mxu0 0.0
      %860 = vmatprep.subr.mxu0 0.0
      %861 = vmatpush1.msra.mxu0 0.0
      %862 = vmatprep.subr.mxu0 0.0
      %863 = vmatpush1.msra.mxu0 0.0
      %864 = vmatprep.subr.mxu0 0.0
      %865 = vmatpush1.msra.mxu0 0.0
      %866 = vmatprep.subr.mxu0 0.0
      %867 = vmatpush1.msra.mxu0 0.0
      %868 = vmatprep.subr.mxu0 0.0
      %869 = vmatpush1.msra.mxu0 0.0
      %870 = vmatprep.subr.mxu0 0.0
      %871 = vmatpush1.msra.mxu0 0.0
      %872 = vmatprep.mubr.f32.mxu0 0.0
      %873 = vmatmul.mubr.f32.gmra.mrb[0].mxu0 %v806
      %v874 = vpop.f32.mrb[0].mxu0
      %v875 = vadd.f32 0.0, %v874
      %v876 = vpop.f32.mrb[0].mxu0
      %v877 = vadd.f32 0.0, %v876
      %878 = vdwg.mxu0
      %v879 = vadd.f32 %v784, %v875
      %v880 = vadd.f32 %v785, %v877
      %s881 = scalar_lea.vmem %s2, 48
      %v882 = vld [vmem:[%s881] sm:$0xff]
      %883 = vrot.lane.b32.xlu0 %v788, 111
      %v884 = vpop.permute.xlu0 %883
      %885 = vrot.lane.b32.xlu0 %v789, 111
      %v886 = vpop.permute.xlu0 %885
      %887 = vrot.lane.b32.xlu0 %v790, 111
      %v888 = vpop.permute.xlu0 %887
      %vm889 = vcmask 908288
      %v890 = vsel %vm889, %v884, %v886
      %v891 = vsel %vm889, %v886, %v888
      %v895 = vsel %vm370, %v882, 0
      %897 = vmatprep.subr.mxu0 %v891
      %898 = vmatpush1.msra.mxu0 %v890
      %899 = vmatprep.subr.mxu0 0.0
      %900 = vmatpush1.msra.mxu0 0.0
      %901 = vmatprep.subr.mxu0 0.0
      %902 = vmatpush1.msra.mxu0 0.0
      %903 = vmatprep.subr.mxu0 0.0
      %904 = vmatpush1.msra.mxu0 0.0
      %905 = vmatprep.subr.mxu0 0.0
      %906 = vmatpush1.msra.mxu0 0.0
      %907 = vmatprep.subr.mxu0 0.0
      %908 = vmatpush1.msra.mxu0 0.0
      %909 = vmatprep.subr.mxu0 0.0
      %910 = vmatpush1.msra.mxu0 0.0
      %911 = vmatprep.subr.mxu0 0.0
      %912 = vmatpush1.msra.mxu0 0.0
      %913 = vmatprep.subr.mxu0 0.0
      %914 = vmatpush1.msra.mxu0 0.0
      %915 = vmatprep.subr.mxu0 0.0
      %916 = vmatpush1.msra.mxu0 0.0
      %917 = vmatprep.subr.mxu0 0.0
      %918 = vmatpush1.msra.mxu0 0.0
      %919 = vmatprep.subr.mxu0 0.0
      %920 = vmatpush1.msra.mxu0 0.0
      %921 = vmatprep.subr.mxu0 0.0
      %922 = vmatpush1.msra.mxu0 0.0
      %923 = vmatprep.subr.mxu0 0.0
      %924 = vmatpush1.msra.mxu0 0.0
      %925 = vmatprep.subr.mxu0 0.0
      %926 = vmatpush1.msra.mxu0 0.0
      %927 = vmatprep.subr.mxu0 0.0
      %928 = vmatpush1.msra.mxu0 0.0
      %929 = vmatprep.subr.mxu0 0.0
      %930 = vmatpush1.msra.mxu0 0.0
      %931 = vmatprep.subr.mxu0 0.0
      %932 = vmatpush1.msra.mxu0 0.0
      %933 = vmatprep.subr.mxu0 0.0
      %934 = vmatpush1.msra.mxu0 0.0
      %935 = vmatprep.subr.mxu0 0.0
      %936 = vmatpush1.msra.mxu0 0.0
      %937 = vmatprep.subr.mxu0 0.0
      %938 = vmatpush1.msra.mxu0 0.0
      %939 = vmatprep.subr.mxu0 0.0
      %940 = vmatpush1.msra.mxu0 0.0
      %941 = vmatprep.subr.mxu0 0.0
      %942 = vmatpush1.msra.mxu0 0.0
      %943 = vmatprep.subr.mxu0 0.0
      %944 = vmatpush1.msra.mxu0 0.0
      %945 = vmatprep.subr.mxu0 0.0
      %946 = vmatpush1.msra.mxu0 0.0
      %947 = vmatprep.subr.mxu0 0.0
      %948 = vmatpush1.msra.mxu0 0.0
      %949 = vmatprep.subr.mxu0 0.0
      %950 = vmatpush1.msra.mxu0 0.0
      %951 = vmatprep.subr.mxu0 0.0
      %952 = vmatpush1.msra.mxu0 0.0
      %953 = vmatprep.subr.mxu0 0.0
      %954 = vmatpush1.msra.mxu0 0.0
      %955 = vmatprep.subr.mxu0 0.0
      %956 = vmatpush1.msra.mxu0 0.0
      %957 = vmatprep.subr.mxu0 0.0
      %958 = vmatpush1.msra.mxu0 0.0
      %959 = vmatprep.subr.mxu0 0.0
      %960 = vmatpush1.msra.mxu0 0.0
      %961 = vmatprep.mubr.f32.mxu0 0.0
      %962 = vmatmul.mubr.f32.gmra.mrb[0].mxu0 %v895
      %v963 = vpop.f32.mrb[0].mxu0
      %v964 = vadd.f32 0.0, %v963
      %v965 = vpop.f32.mrb[0].mxu0
      %v966 = vadd.f32 0.0, %v965
      %967 = vdwg.mxu0
      %v968 = vadd.f32 %v879, %v964
      %v969 = vadd.f32 %v880, %v966
      %s970 = scalar_lea.vmem %s2, 56
      %v971 = vld [vmem:[%s970] sm:$0xff]
      %972 = vrot.lane.b32.xlu0 %v788, 110
      %v973 = vpop.permute.xlu0 %972
      %974 = vrot.lane.b32.xlu0 %v789, 110
      %v975 = vpop.permute.xlu0 %974
      %976 = vrot.lane.b32.xlu0 %v790, 110
      %v977 = vpop.permute.xlu0 %976
      %vm978 = vcmask 900096
      %v979 = vsel %vm978, %v973, %v975
      %v980 = vsel %vm978, %v975, %v977
      %v984 = vsel %vm370, %v971, 0
      %986 = vmatprep.subr.mxu0 %v980
      %987 = vmatpush1.msra.mxu0 %v979
      %988 = vmatprep.subr.mxu0 0.0
      %989 = vmatpush1.msra.mxu0 0.0
      %990 = vmatprep.subr.mxu0 0.0
      %991 = vmatpush1.msra.mxu0 0.0
      %992 = vmatprep.subr.mxu0 0.0
      %993 = vmatpush1.msra.mxu0 0.0
      %994 = vmatprep.subr.mxu0 0.0
      %995 = vmatpush1.msra.mxu0 0.0
      %996 = vmatprep.subr.mxu0 0.0
      %997 = vmatpush1.msra.mxu0 0.0
      %998 = vmatprep.subr.mxu0 0.0
      %999 = vmatpush1.msra.mxu0 0.0
      %1000 = vmatprep.subr.mxu0 0.0
      %1001 = vmatpush1.msra.mxu0 0.0
      %1002 = vmatprep.subr.mxu0 0.0
      %1003 = vmatpush1.msra.mxu0 0.0
      %1004 = vmatprep.subr.mxu0 0.0
      %1005 = vmatpush1.msra.mxu0 0.0
      %1006 = vmatprep.subr.mxu0 0.0
      %1007 = vmatpush1.msra.mxu0 0.0
      %1008 = vmatprep.subr.mxu0 0.0
      %1009 = vmatpush1.msra.mxu0 0.0
      %1010 = vmatprep.subr.mxu0 0.0
      %1011 = vmatpush1.msra.mxu0 0.0
      %1012 = vmatprep.subr.mxu0 0.0
      %1013 = vmatpush1.msra.mxu0 0.0
      %1014 = vmatprep.subr.mxu0 0.0
      %1015 = vmatpush1.msra.mxu0 0.0
      %1016 = vmatprep.subr.mxu0 0.0
      %1017 = vmatpush1.msra.mxu0 0.0
      %1018 = vmatprep.subr.mxu0 0.0
      %1019 = vmatpush1.msra.mxu0 0.0
      %1020 = vmatprep.subr.mxu0 0.0
      %1021 = vmatpush1.msra.mxu0 0.0
      %1022 = vmatprep.subr.mxu0 0.0
      %1023 = vmatpush1.msra.mxu0 0.0
      %1024 = vmatprep.subr.mxu0 0.0
      %1025 = vmatpush1.msra.mxu0 0.0
      %1026 = vmatprep.subr.mxu0 0.0
      %1027 = vmatpush1.msra.mxu0 0.0
      %1028 = vmatprep.subr.mxu0 0.0
      %1029 = vmatpush1.msra.mxu0 0.0
      %1030 = vmatprep.subr.mxu0 0.0
      %1031 = vmatpush1.msra.mxu0 0.0
      %1032 = vmatprep.subr.mxu0 0.0
      %1033 = vmatpush1.msra.mxu0 0.0
      %1034 = vmatprep.subr.mxu0 0.0
      %1035 = vmatpush1.msra.mxu0 0.0
      %1036 = vmatprep.subr.mxu0 0.0
      %1037 = vmatpush1.msra.mxu0 0.0
      %1038 = vmatprep.subr.mxu0 0.0
      %1039 = vmatpush1.msra.mxu0 0.0
      %1040 = vmatprep.subr.mxu0 0.0
      %1041 = vmatpush1.msra.mxu0 0.0
      %1042 = vmatprep.subr.mxu0 0.0
      %1043 = vmatpush1.msra.mxu0 0.0
      %1044 = vmatprep.subr.mxu0 0.0
      %1045 = vmatpush1.msra.mxu0 0.0
      %1046 = vmatprep.subr.mxu0 0.0
      %1047 = vmatpush1.msra.mxu0 0.0
      %1048 = vmatprep.subr.mxu0 0.0
      %1049 = vmatpush1.msra.mxu0 0.0
      %1050 = vmatprep.mubr.f32.mxu0 0.0
      %1051 = vmatmul.mubr.f32.gmra.mrb[0].mxu0 %v984
      %v1052 = vpop.f32.mrb[0].mxu0
      %v1053 = vadd.f32 0.0, %v1052
      %v1054 = vpop.f32.mrb[0].mxu0
      %v1055 = vadd.f32 0.0, %v1054
      %1056 = vdwg.mxu0
      %v1057 = vadd.f32 %v968, %v1053
      %v1058 = vadd.f32 %v969, %v1055
      %s1059 = scalar_lea.vmem %s2, 64
      %v1060 = vld [vmem:[%s1059] sm:$0xff]
      %1061 = vrot.lane.b32.xlu0 %v788, 109
      %v1062 = vpop.permute.xlu0 %1061
      %1063 = vrot.lane.b32.xlu0 %v789, 109
      %v1064 = vpop.permute.xlu0 %1063
      %1065 = vrot.lane.b32.xlu0 %v790, 109
      %v1066 = vpop.permute.xlu0 %1065
      %vm1067 = vcmask 891904
      %v1068 = vsel %vm1067, %v1062, %v1064
      %v1069 = vsel %vm1067, %v1064, %v1066
      %v1073 = vsel %vm370, %v1060, 0
      %1075 = vmatprep.subr.mxu0 %v1069
      %1076 = vmatpush1.msra.mxu0 %v1068
      %1077 = vmatprep.subr.mxu0 0.0
      %1078 = vmatpush1.msra.mxu0 0.0
      %1079 = vmatprep.subr.mxu0 0.0
      %1080 = vmatpush1.msra.mxu0 0.0
      %1081 = vmatprep.subr.mxu0 0.0
      %1082 = vmatpush1.msra.mxu0 0.0
      %1083 = vmatprep.subr.mxu0 0.0
      %1084 = vmatpush1.msra.mxu0 0.0
      %1085 = vmatprep.subr.mxu0 0.0
      %1086 = vmatpush1.msra.mxu0 0.0
      %1087 = vmatprep.subr.mxu0 0.0
      %1088 = vmatpush1.msra.mxu0 0.0
      %1089 = vmatprep.subr.mxu0 0.0
      %1090 = vmatpush1.msra.mxu0 0.0
      %1091 = vmatprep.subr.mxu0 0.0
      %1092 = vmatpush1.msra.mxu0 0.0
      %1093 = vmatprep.subr.mxu0 0.0
      %1094 = vmatpush1.msra.mxu0 0.0
      %1095 = vmatprep.subr.mxu0 0.0
      %1096 = vmatpush1.msra.mxu0 0.0
      %1097 = vmatprep.subr.mxu0 0.0
      %1098 = vmatpush1.msra.mxu0 0.0
      %1099 = vmatprep.subr.mxu0 0.0
      %1100 = vmatpush1.msra.mxu0 0.0
      %1101 = vmatprep.subr.mxu0 0.0
      %1102 = vmatpush1.msra.mxu0 0.0
      %1103 = vmatprep.subr.mxu0 0.0
      %1104 = vmatpush1.msra.mxu0 0.0
      %1105 = vmatprep.subr.mxu0 0.0
      %1106 = vmatpush1.msra.mxu0 0.0
      %1107 = vmatprep.subr.mxu0 0.0
      %1108 = vmatpush1.msra.mxu0 0.0
      %1109 = vmatprep.subr.mxu0 0.0
      %1110 = vmatpush1.msra.mxu0 0.0
      %1111 = vmatprep.subr.mxu0 0.0
      %1112 = vmatpush1.msra.mxu0 0.0
      %1113 = vmatprep.subr.mxu0 0.0
      %1114 = vmatpush1.msra.mxu0 0.0
      %1115 = vmatprep.subr.mxu0 0.0
      %1116 = vmatpush1.msra.mxu0 0.0
      %1117 = vmatprep.subr.mxu0 0.0
      %1118 = vmatpush1.msra.mxu0 0.0
      %1119 = vmatprep.subr.mxu0 0.0
      %1120 = vmatpush1.msra.mxu0 0.0
      %1121 = vmatprep.subr.mxu0 0.0
      %1122 = vmatpush1.msra.mxu0 0.0
      %1123 = vmatprep.subr.mxu0 0.0
      %1124 = vmatpush1.msra.mxu0 0.0
      %1125 = vmatprep.subr.mxu0 0.0
      %1126 = vmatpush1.msra.mxu0 0.0
      %1127 = vmatprep.subr.mxu0 0.0
      %1128 = vmatpush1.msra.mxu0 0.0
      %1129 = vmatprep.subr.mxu0 0.0
      %1130 = vmatpush1.msra.mxu0 0.0
      %1131 = vmatprep.subr.mxu0 0.0
      %1132 = vmatpush1.msra.mxu0 0.0
      %1133 = vmatprep.subr.mxu0 0.0
      %1134 = vmatpush1.msra.mxu0 0.0
      %1135 = vmatprep.subr.mxu0 0.0
      %1136 = vmatpush1.msra.mxu0 0.0
      %1137 = vmatprep.subr.mxu0 0.0
      %1138 = vmatpush1.msra.mxu0 0.0
      %1139 = vmatprep.mubr.f32.mxu0 0.0
      %1140 = vmatmul.mubr.f32.gmra.mrb[0].mxu0 %v1073
      %v1141 = vpop.f32.mrb[0].mxu0
      %v1142 = vadd.f32 0.0, %v1141
      %v1143 = vpop.f32.mrb[0].mxu0
      %v1144 = vadd.f32 0.0, %v1143
      %1145 = vdwg.mxu0
      %v1146 = vadd.f32 %v1057, %v1142
      %v1147 = vadd.f32 %v1058, %v1144
      %1148 = vst [vmem:[%s290] sm:$0xff] %v1146
      %1149 = vst [vmem:[%s290 + $0x8] sm:$0xff] %v1147
      %p1150 = scmp.eq.s32.totalorder %s19, 0
      // Predicated region
      $region41: #{conv_block_nested_forward.4} parent=39 // pred_check
        %p1151 = pneg %p1150
      $region42: #{conv_block_nested_forward.4} parent=39 // pred_check_branch
        %1153 = sbr.rel (%p1151) target = $region44
      $region43: #{conv_block_nested_forward.4} parent=39 // pred_region
        %1154 = vst.msk [vmem:[%s6] sm:$0xff] %vm627, 0.0
        %1155 = vst.msk [vmem:[%s7] sm:$0xff] %vm627, 0.0
      $region44: #{conv_block_nested_forward.4} parent=39 // pred_fallthru
        _
      %v1156 = vld [vmem:[%s285 + $0x1] sm:$0x3]
      %v1158 = vlaneseq
      %v1159 = vshrl.u32 %v1158, 7
      %v1160 = vsub.s32 0, %v1159
      %v1161 = vrot.slane %v1156, %v1160
      %v1162 = vlaneseq
      %v1163 = vshrl.u32 %v1162, 7
      %v1164 = vsub.s32 1, %v1163
      %v1165 = vrot.slane %v1156, %v1164
      %v1168 = vmul.f32 %v1146, %v1161
      %v1169 = vmul.f32 %v1147, %v1165
      %v1170 = vld [vmem:[%s6] sm:$0xff]
      %v1171 = vadd.f32 %v1168, %v1169
      %1172 = vadd.xlane.f32.xlu0 %v1171
      %v1173 = vpop.xlane.xlu0 %1172
      %v1174 = vadd.f32 %v1170, %v1173
      %1175 = vst.msk [vmem:[%s6] sm:$0xff] %vm627, %v1174
      %v1176 = vld [vmem:[%s7] sm:$0xff]
      %v1177 = vmul.f32 %v1168, %v1168
      %v1178 = vmul.f32 %v1169, %v1169
      %v1179 = vadd.f32 %v1177, %v1178
      %1180 = vadd.xlane.f32.xlu0 %v1179
      %v1181 = vpop.xlane.xlu0 %1180
      %v1182 = vadd.f32 %v1176, %v1181
      %1183 = vst.msk [vmem:[%s7] sm:$0xff] %vm627, %v1182
      %s1184 = smul.u32 2, %s19
      %p1185 = scmp.lt.s32.totalorder %s1184, 5
      %s1186 = scalar_select %p1185, %s1184, 5
      %s1187 = smul.addr %s1186, 8
      %s1188 = scalar_lea.vmem %s5, %s1187
      // Predicated region
      $region45: #{conv_block_nested_forward.4} parent=39 // pred_check
        %p1189 = pneg %p152
      $region46: #{conv_block_nested_forward.4} parent=39 // pred_check_branch
        %1191 = sbr.rel (%p1189) target = $region48
      $region47: #{conv_block_nested_forward.4} parent=39 // pred_region
        %s1192 = smul.u32 2, %s19
      $region48: #{conv_block_nested_forward.4} parent=39 // pred_fallthru
        _
      // Predicated region
      $region49: #{conv_block_nested_forward.4} parent=39 // pred_check
        %p1193 = pneg %p173
      $region50: #{conv_block_nested_forward.4} parent=39 // pred_check_branch
        %1195 = sbr.rel (%p1193) target = $region52
      $region51: #{conv_block_nested_forward.4} parent=39 // pred_region
        _
      $region52: #{conv_block_nested_forward.4} parent=39 // pred_fallthru
        _
      // Predicated region
      $region53: #{conv_block_nested_forward.4} parent=39 // pred_check
        %p1196 = pneg %p194
      $region54: #{conv_block_nested_forward.4} parent=39 // pred_check_branch
        %1198 = sbr.rel (%p1196) target = $region56
      $region55: #{conv_block_nested_forward.4} parent=39 // pred_region
        _
      $region56: #{conv_block_nested_forward.4} parent=39 // pred_fallthru
        _
      // Predicated region
      $region57: #{conv_block_nested_forward.4} parent=39 // pred_check
        %p1199 = pneg %p173
      $region58: #{conv_block_nested_forward.4} parent=39 // pred_check_branch
        %1201 = sbr.rel (%p1199) target = $region60
      $region59: #{conv_block_nested_forward.4} parent=39 // pred_region
        _
      $region60: #{conv_block_nested_forward.4} parent=39 // pred_fallthru
        _
      // Predicated region
      $region61: #{conv_block_nested_forward.4} parent=39 // pred_check
        %p1202 = pneg %p194
      $region62: #{conv_block_nested_forward.4} parent=39 // pred_check_branch
        %1204 = sbr.rel (%p1202) target = $region64
      $region63: #{conv_block_nested_forward.4} parent=39 // pred_region
        _
      $region64: #{conv_block_nested_forward.4} parent=39 // pred_fallthru
        _
    $region40: #{conv_block_nested_forward.4} parent=5 // pred_fallthru
      _
    %p1205 = scmp.le.s32.totalorder 2, %s14
    // Predicated region
    $region65: #{conv_block_nested_forward.4} parent=5 // pred_check
      %p1206 = pneg %p1205
    $region66: #{conv_block_nested_forward.4} parent=5 // pred_check_branch
      %1208 = sbr.rel (%p1206) target = $region68
    $region67: #{conv_block_nested_forward.4} parent=5 // pred_region
      %s1209 = ssub.s32 %s14, 2
      // Predicated region
      $region69: #{conv_block_nested_forward.4} parent=67 // pred_check
        %p1210 = pneg %p158
      $region70: #{conv_block_nested_forward.4} parent=67 // pred_check_branch
        %1212 = sbr.rel (%p1210) target = $region72
      $region71: #{conv_block_nested_forward.4} parent=67 // pred_region
        %s1213 = smul.u32 2, %s20
        %p1214 = scmp.lt.s32.totalorder %s1213, 5
        %s1215 = scalar_select %p1214, %s1213, 5
        %s1216 = smul.addr %s1215, 8
        %s1217 = scalar_lea.vmem %s5, %s1216
      $region72: #{conv_block_nested_forward.4} parent=67 // pred_fallthru
        _
    $region68: #{conv_block_nested_forward.4} parent=5 // pred_fallthru
      _
  $region6: #{conv_block_nested_forward.4} parent=0 // loop_footer
    %s18 = sadd.s32 1, %s14
  $region7: #{conv_block_nested_forward.4} parent=0 // loop_footer_branch
    %13 = sbr.rel target = $region3
  $region8: #{conv_block_nested_forward.4} parent=0 // loop_exit
    _

</llo_original>
